<compile_context>
chip_gen: v5e
topology: v5e:2x2
jax: 0.10.0
libtpu: 0.0.40
codegen_flags: <defaults>
</compile_context>

<pallas_src>
import functools
import math

import jax
import jax.numpy as jnp
import numpy as np
from jax.experimental import pallas as pl
from jax.experimental.pallas import tpu as pltpu


# ----------------------------------------------------------------------------
# shared math (always f32)
# ----------------------------------------------------------------------------
def _layernorm(x, gamma, beta, eps=1e-6):
    mean = jnp.mean(x, axis=-1, keepdims=True)
    var = jnp.mean((x - mean) ** 2, axis=-1, keepdims=True)
    return (x - mean) * jax.lax.rsqrt(var + eps) * gamma + beta


# ----------------------------------------------------------------------------
# in-kernel multi-head attention (post_LN=True)
# ----------------------------------------------------------------------------
def _mha(q, k, v, *, kv_len, causal, q_off, head, att_dim, weights):
    """Multi_Head_ATT: per-head attention -> (WO) -> +res -> LN.  Returns f32 (Lq, E)."""
    wq, wk, wv, wo, bo, g, beta = weights
    Lq = q.shape[0]
    Lk = k.shape[0]
    mm_dtype = wq.dtype                       # matmul-operand dtype (f32 or bf16)
    scale = 1.0 / math.sqrt(att_dim)

    q_res = q.astype(jnp.float32)             # residual (res = q) kept in f32

    # Full-width projections: one (L,E)x(E,E) matmul per tensor; scale folded into Q.
    qh_all = jnp.dot(q.astype(mm_dtype), wq, preferred_element_type=jnp.float32) * scale
    kh_all = jnp.dot(k.astype(mm_dtype), wk, preferred_element_type=jnp.float32)
    vh_all = jnp.dot(v.astype(mm_dtype), wv, preferred_element_type=jnp.float32)

    # Key-padding (and causal) mask rebuilt from the per-batch length; hoisted
    # out of the head loop and applied as ONE where per head.
    col = jax.lax.broadcasted_iota(jnp.int32, (Lq, Lk), 1)
    keep = col < kv_len
    if causal:
        row = jax.lax.broadcasted_iota(jnp.int32, (Lq, Lk), 0) + q_off
        keep = jnp.logical_and(keep, row >= col)

    ctxs = []
    for h in range(head):                     # static, small head count
        lo, hi = h * att_dim, (h + 1) * att_dim
        qh = qh_all[:, lo:hi]                 # (Lq, d)
        kh = kh_all[:, lo:hi]                 # (Lk, d)
        vh = vh_all[:, lo:hi]                 # (Lk, d)

        # scores = qh @ kh.T (contraction on d, no explicit transpose materialized)
        s = jax.lax.dot_general(qh, kh, (((1,), (1,)), ((), ())),
                                preferred_element_type=jnp.float32)      # (Lq, Lk)
        if causal:
            # fused pad-mask AND tril AND the PyTorch `masked_fill(qk == 0)` quirk
            s = jnp.where(jnp.logical_and(keep, s != 0.0), s, -1e20)
        else:
            s = jnp.where(keep, s, -1e20)                                # masked_fill(pad)

        # stable softmax (dim=-1); reciprocal on the EUP + one Newton step for accuracy
        s = s - jnp.max(s, axis=-1, keepdims=True)
        p = jnp.exp(s)
        denom = jnp.sum(p, axis=-1, keepdims=True)
        inv = pl.reciprocal(denom, approx=True)
        inv = inv * (2.0 - denom * inv)
        p = p * inv

        ctxs.append(jnp.dot(p.astype(mm_dtype), vh.astype(mm_dtype),
                            preferred_element_type=jnp.float32))         # (Lq, d)

    # heads concatenated on the lane axis -> ONE full-K WO matmul (MXU depth = E)
    ctx = ctxs[0] if head == 1 else jnp.concatenate(ctxs, axis=-1)       # (Lq, E)

    if wo is None:                            # head == 1: PyTorch skips WO
        out = ctx
    else:
        out = jnp.dot(ctx.astype(mm_dtype), wo,
                      preferred_element_type=jnp.float32) + bo           # (Lq, E)
    out = out + q_res                         # residual
    return _layernorm(out, g, beta)           # post-LN


def _split_att(refs, use_wo):
    """Unpack one attention block's weight refs (wo/bo omitted when head == 1)."""
    n = 7 if use_wo else 5
    vals = [r[...] for r in refs[:n]]
    if use_wo:
        wq, wk, wv, wo, bo, g, beta = vals
    else:
        wq, wk, wv, g, beta = vals
        wo = bo = None
    return (wq, wk, wv, wo, bo, g, beta), refs[n:]


# ----------------------------------------------------------------------------
# fused decoder-layer kernel: masked self-attn -> cross-attn -> FFN (post-LN)
# ----------------------------------------------------------------------------
def _decoder_layer_kernel(dec_len_ref, enc_len_ref,          # scalar prefetch (SMEM)
                          x_ref, enc_ref, *rest,
                          head, att_dim, tq, use_wo):
    o_ref = rest[-1]
    refs = list(rest[:-1])
    sa_w, refs = _split_att(refs, use_wo)     # self-attention weights
    ca_w, refs = _split_att(refs, use_wo)     # cross-attention weights
    f_w1, f_b1, f_w2, f_b2, f_g, f_beta = [r[...] for r in refs]

    b = pl.program_id(0)
    q_off = pl.multiple_of(pl.program_id(1) * tq, tq)
    dec_len = dec_len_ref[b]
    enc_len = enc_len_ref[b]

    xf = x_ref[0]                                  # (Lq_pad, E) full decoder seq (self K/V)
    xq = x_ref[0, pl.ds(q_off, tq), :]             # (tq, E)     query tile / residual
    enc = enc_ref[0]                               # (Lenc, E)   encoder output (cross K/V)

    # masked self-attention (causal + key padding), post-LN
    h1 = _mha(xq, xf, xf, kv_len=dec_len, causal=True, q_off=q_off,
              head=head, att_dim=att_dim, weights=sa_w)
    # cross-attention (key padding only), post-LN
    h2 = _mha(h1, enc, enc, kv_len=enc_len, causal=False, q_off=0,
              head=head, att_dim=att_dim, weights=ca_w)

    # feed-forward, post-LN
    mm_dtype = f_w1.dtype
    ih = jnp.maximum(jnp.dot(h2.astype(mm_dtype), f_w1,
                             preferred_element_type=jnp.float32) + f_b1, 0.0)
    o = jnp.dot(ih.astype(mm_dtype), f_w2,
                preferred_element_type=jnp.float32) + f_b2
    out = _layernorm(o + h2, f_g, f_beta)

    o_ref[0] = out.astype(o_ref.dtype)


# ----------------------------------------------------------------------------
# wrapper: one fused pallas_call per decoder layer
# ----------------------------------------------------------------------------
def _att_weight_arrays(p, cd, use_wo):
    wq, wk, wv, wo, bo, g, beta = p
    arrs = [wq.astype(cd), wk.astype(cd), wv.astype(cd)]
    if use_wo:
        arrs += [wo.astype(cd), bo.astype(jnp.float32)]
    arrs += [g.astype(jnp.float32), beta.astype(jnp.float32)]
    return arrs


def _build_layer_call(B, Lq_pad, Lenc, E, tq, head, att_dim, use_wo,
                      weight_arrays, out_dtype, single_buffer_weights):
    kernel = functools.partial(_decoder_layer_kernel, head=head, att_dim=att_dim,
                               tq=tq, use_wo=use_wo)

    def _const_map(b_, q_, dl, el):           # weights are grid-invariant
        return (0, 0)

    if single_buffer_weights:
        # No double-buffering for grid-invariant operands: halves weight VMEM.
        weight_specs = [pl.BlockSpec(w.shape, _const_map, pipeline_mode=pl.Buffered(1))
                        for w in weight_arrays]
    else:
        weight_specs = [pl.BlockSpec(w.shape, _const_map) for w in weight_arrays]

    grid_spec = pltpu.PrefetchScalarGridSpec(
        num_scalar_prefetch=2,
        grid=(B, Lq_pad // tq),
        in_specs=[pl.BlockSpec((1, Lq_pad, E), lambda b_, q_, dl, el: (b_, 0, 0)),   # self K/V
                  pl.BlockSpec((1, Lenc, E), lambda b_, q_, dl, el: (b_, 0, 0)),     # cross K/V
                  *weight_specs],
        out_specs=pl.BlockSpec((1, tq, E), lambda b_, q_, dl, el: (b_, q_, 0)),
    )

    # Explicit scoped-VMEM budget: single-buffered weights + double-buffered K/V
    # blocks + output tile + per-step f32 temporaries, with 2x headroom; clamped
    # to [32 MiB, 64 MiB] so it is a valid setting on v5e/v6e and v7x (64 MiB VMEM).
    act_itemsize = jnp.dtype(weight_arrays[0].dtype).itemsize
    wbytes = sum(int(np.prod(w.shape)) * jnp.dtype(w.dtype).itemsize
                 for w in weight_arrays)
    abytes = (Lq_pad + Lenc) * E * act_itemsize * 2
    obytes = tq * E * jnp.dtype(out_dtype).itemsize * 2
    tbytes = (2 * tq * max(Lq_pad, Lenc) + tq * 4 * E + 6 * tq * E) * 4
    vmem_limit = int(min(max(2 * (wbytes + abytes + obytes + tbytes), 32 * 2 ** 20),
                         64 * 2 ** 20))

    return pl.pallas_call(
        kernel,
        out_shape=jax.ShapeDtypeStruct((B, Lq_pad, E), out_dtype),
        grid_spec=grid_spec,
        compiler_params=pltpu.CompilerParams(
            dimension_semantics=("parallel", "parallel"),   # megacore / v7x 2-TC
            vmem_limit_bytes=vmem_limit),
    )


def decoder_layer(x, enc, dec_lens, enc_lens, params, *, head, tq=None,
                  compute_dtype=jnp.float32):
    """One fused decoder layer as a single pallas_call."""
    B, Lq, E = x.shape
    Lenc = enc.shape[1]
    assert E % head == 0
    att_dim = E // head
    use_wo = head > 1
    cd = compute_dtype

    if tq is None:
        # 256 rows per weight pass on v6e/v7x-class MXUs; whole sequence if short.
        tq = 256 if Lq >= 256 else (128 if Lq >= 128 else Lq)
    Lq_pad = int(pl.cdiv(Lq, tq)) * tq

    x = x.astype(cd)
    if Lq_pad != Lq:
        # zero-pad: padded key rows are masked out via dec_lens, padded query rows
        # are sliced off below.
        x = jnp.pad(x, ((0, 0), (0, Lq_pad - Lq), (0, 0)))

    w1, b1, w2, b2, fg, fb = params["ff"]
    weight_arrays = (_att_weight_arrays(params["self_att"], cd, use_wo)
                     + _att_weight_arrays(params["cross_att"], cd, use_wo)
                     + [w1.astype(cd), b1.astype(jnp.float32), w2.astype(cd),
                        b2.astype(jnp.float32), fg.astype(jnp.float32),
                        fb.astype(jnp.float32)])

    args = (dec_lens.astype(jnp.int32), enc_lens.astype(jnp.int32),
            x, enc.astype(cd), *weight_arrays)

    try:
        call = _build_layer_call(B, Lq_pad, Lenc, E, tq, head, att_dim, use_wo,
                                 weight_arrays, cd, single_buffer_weights=True)
        out = call(*args)
    except Exception:
        # Fallback for toolchains without BlockSpec(pipeline_mode=pl.Buffered(1)):
        # identical kernel, default (double) buffering of the invariant weights.
        call = _build_layer_call(B, Lq_pad, Lenc, E, tq, head, att_dim, use_wo,
                                 weight_arrays, cd, single_buffer_weights=False)
        out = call(*args)

    if Lq_pad != Lq:
        out = out[:, :Lq, :]
    return out


def decoder_forward(x, enc_out, dec_lens, enc_lens, layers, *, head, tq=None,
                    compute_dtype=jnp.float32):
    out = x
    for lp in layers:
        out = decoder_layer(out, enc_out, dec_lens, enc_lens, lp, head=head,
                            tq=tq, compute_dtype=compute_dtype)
    return out


# ----------------------------------------------------------------------------
# pure-JAX reference (mirrors PyTorch semantics exactly) for verification
# ----------------------------------------------------------------------------
def _ref_mha(q, k, v, mask, params, *, head, causal):
    wq, wk, wv, wo, bo, g, beta = params
    E = q.shape[-1]
    d = E // head
    outs = []
    for h in range(head):
        lo, hi = h * d, (h + 1) * d
        qh = q @ wq[:, lo:hi]
        kh = k @ wk[:, lo:hi]
        vh = v @ wv[:, lo:hi]
        s = jnp.einsum("bqd,bkd->bqk", qh, kh) / math.sqrt(d)
        s = jnp.where(mask == 0.0, -1e20, s)
        if causal:
            lq, lk = s.shape[-2:]
            tri = jnp.tril(jnp.ones((lq, lk), jnp.float32))
            s = jnp.where(tri > 0, s, 0.0)
            s = jnp.where(s == 0.0, -1e20, s)
        p = jax.nn.softmax(s, axis=-1)
        outs.append(jnp.einsum("bqk,bkd->bqd", p, vh))
    out = jnp.concatenate(outs, axis=-1)
    if head > 1:
        out = out @ wo + bo
    return _layernorm(out + q, g, beta)


def _ref_ff(x, params):
    w1, b1, w2, b2, g, beta = params
    h = jnp.maximum(x @ w1 + b1, 0.0)
    o = h @ w2 + b2
    return _layernorm(o + x, g, beta)


def decoder_reference(x, enc_out, mask_pad, c_att_pad, layers, *, head):
    out = x
    for lp in layers:
        out = _ref_mha(out, out, out, mask_pad, lp["self_att"], head=head, causal=True)
        out = _ref_mha(out, enc_out, enc_out, c_att_pad, lp["cross_att"], head=head, causal=False)
        out = _ref_ff(out, lp["ff"])
    return out


# ----------------------------------------------------------------------------
# deterministic parameter init
# ----------------------------------------------------------------------------
def init_mha_params(key, E):
    ks = jax.random.split(key, 7)
    sc = 0.1
    wq = jax.random.normal(ks[0], (E, E), jnp.float32) * sc
    wk = jax.random.normal(ks[1], (E, E), jnp.float32) * sc
    wv = jax.random.normal(ks[2], (E, E), jnp.float32) * sc
    wo = jax.random.normal(ks[3], (E, E), jnp.float32) * sc
    bo = jax.random.normal(ks[4], (1, E), jnp.float32) * sc
    g = jnp.ones((1, E), jnp.float32) + jax.random.normal(ks[5], (1, E), jnp.float32) * 0.01
    beta = jax.random.normal(ks[6], (1, E), jnp.float32) * 0.01
    return (wq, wk, wv, wo, bo, g, beta)


def init_ff_params(key, E, expan):
    ks = jax.random.split(key, 6)
    sc = 0.1
    w1 = jax.random.normal(ks[0], (E, expan * E), jnp.float32) * sc
    b1 = jax.random.normal(ks[1], (1, expan * E), jnp.float32) * sc
    w2 = jax.random.normal(ks[2], (expan * E, E), jnp.float32) * sc
    b2 = jax.random.normal(ks[3], (1, E), jnp.float32) * sc
    g = jnp.ones((1, E), jnp.float32) + jax.random.normal(ks[4], (1, E), jnp.float32) * 0.01
    beta = jax.random.normal(ks[5], (1, E), jnp.float32) * 0.01
    return (w1, b1, w2, b2, g, beta)


def init_layer_params(key, E, expan):
    k1, k2, k3 = jax.random.split(key, 3)
    return {"self_att": init_mha_params(k1, E),
            "cross_att": init_mha_params(k2, E),
            "ff": init_ff_params(k3, E, expan)}


# ----------------------------------------------------------------------------
if __name__ == "__main__":
    # Decoder(num_layer=2, emb_dim=32, head=2, dim_expan=4, post_LN=True, dropout=0)
    B, L_dec, L_enc, E = 2, 8, 8, 32
    HEAD, NUM_LAYER, EXPAN = 2, 2, 4

    root = jax.random.PRNGKey(0)
    k_in, k_enc, k_p = jax.random.split(root, 3)

    x = jax.random.normal(k_in, (B, L_dec, E), jnp.float32)
    enc_out = jax.random.normal(k_enc, (B, L_enc, E), jnp.float32)

    # key-padding lengths (kernel builds the masks in-kernel from these)
    dec_lens = jnp.array([8, 6], jnp.int32)
    enc_lens = jnp.array([8, 5], jnp.int32)

    # materialized masks only for the pure-JAX reference (matches the PyTorch interface)
    mask_pad = (jnp.arange(L_dec)[None, None, :] < dec_lens[:, None, None])
    mask_pad = jnp.broadcast_to(mask_pad, (B, L_dec, L_dec)).astype(jnp.float32)
    c_att_pad = (jnp.arange(L_enc)[None, None, :] < enc_lens[:, None, None])
    c_att_pad = jnp.broadcast_to(c_att_pad, (B, L_dec, L_enc)).astype(jnp.float32)

    layer_keys = jax.random.split(k_p, NUM_LAYER)
    layers = [init_layer_params(k, E, EXPAN) for k in layer_keys]

    # compute_dtype=jnp.bfloat16 is the recommended setting for v6e/v7x throughput
    # (outputs then also stored in bf16); f32 here so the check vs the f32 reference
    # is tight.
    out = decoder_forward(x, enc_out, dec_lens, enc_lens, layers,
                          head=HEAD, compute_dtype=jnp.float32)
    out = jax.block_until_ready(out)

    ref = decoder_reference(x, enc_out, mask_pad, c_att_pad, layers, head=HEAD)
    np.testing.assert_allclose(np.asarray(out), np.asarray(ref), rtol=5e-3, atol=5e-3)

    print("KERNEL_OK")
</pallas_src>

<mosaic_0001>
module attributes {stable_mosaic.version = 11 : i64} {
  func.func @_decoder_layer_kernel(%arg0: i32, %arg1: i32, %arg2: memref<2xi32, #tpu.memory_space<smem>>, %arg3: memref<2xi32, #tpu.memory_space<smem>>, %arg4: memref<1x8x32xf32, #tpu.memory_space<vmem>>, %arg5: memref<1x8x32xf32, #tpu.memory_space<vmem>>, %arg6: memref<32x32xf32, #tpu.memory_space<vmem>>, %arg7: memref<32x32xf32, #tpu.memory_space<vmem>>, %arg8: memref<32x32xf32, #tpu.memory_space<vmem>>, %arg9: memref<32x32xf32, #tpu.memory_space<vmem>>, %arg10: memref<1x32xf32, #tpu.memory_space<vmem>>, %arg11: memref<1x32xf32, #tpu.memory_space<vmem>>, %arg12: memref<1x32xf32, #tpu.memory_space<vmem>>, %arg13: memref<32x32xf32, #tpu.memory_space<vmem>>, %arg14: memref<32x32xf32, #tpu.memory_space<vmem>>, %arg15: memref<32x32xf32, #tpu.memory_space<vmem>>, %arg16: memref<32x32xf32, #tpu.memory_space<vmem>>, %arg17: memref<1x32xf32, #tpu.memory_space<vmem>>, %arg18: memref<1x32xf32, #tpu.memory_space<vmem>>, %arg19: memref<1x32xf32, #tpu.memory_space<vmem>>, %arg20: memref<32x128xf32, #tpu.memory_space<vmem>>, %arg21: memref<1x128xf32, #tpu.memory_space<vmem>>, %arg22: memref<128x32xf32, #tpu.memory_space<vmem>>, %arg23: memref<1x32xf32, #tpu.memory_space<vmem>>, %arg24: memref<1x32xf32, #tpu.memory_space<vmem>>, %arg25: memref<1x32xf32, #tpu.memory_space<vmem>>, %arg26: memref<1x8x32xf32, #tpu.memory_space<vmem>>) attributes {dimension_semantics = [#tpu.dimension_semantics<parallel>, #tpu.dimension_semantics<parallel>], iteration_bounds = array<i64: 2, 1>, scalar_prefetch = 2 : i64, scratch_operands = 0 : i64, tpu.core_type = #tpu.core_type<tc>, window_params = [{transform_indices = @transform_0, window_bounds = array<i64: 1, 8, 32>}, {transform_indices = @transform_1, window_bounds = array<i64: 1, 8, 32>}, {pipeline_mode = #tpu.pipeline_mode<synchronous>, transform_indices = @transform_2, window_bounds = array<i64: 32, 32>}, {pipeline_mode = #tpu.pipeline_mode<synchronous>, transform_indices = @transform_3, window_bounds = array<i64: 32, 32>}, {pipeline_mode = #tpu.pipeline_mode<synchronous>, transform_indices = @transform_4, window_bounds = array<i64: 32, 32>}, {pipeline_mode = #tpu.pipeline_mode<synchronous>, transform_indices = @transform_5, window_bounds = array<i64: 32, 32>}, {pipeline_mode = #tpu.pipeline_mode<synchronous>, transform_indices = @transform_6, window_bounds = array<i64: 1, 32>}, {pipeline_mode = #tpu.pipeline_mode<synchronous>, transform_indices = @transform_7, window_bounds = array<i64: 1, 32>}, {pipeline_mode = #tpu.pipeline_mode<synchronous>, transform_indices = @transform_8, window_bounds = array<i64: 1, 32>}, {pipeline_mode = #tpu.pipeline_mode<synchronous>, transform_indices = @transform_9, window_bounds = array<i64: 32, 32>}, {pipeline_mode = #tpu.pipeline_mode<synchronous>, transform_indices = @transform_10, window_bounds = array<i64: 32, 32>}, {pipeline_mode = #tpu.pipeline_mode<synchronous>, transform_indices = @transform_11, window_bounds = array<i64: 32, 32>}, {pipeline_mode = #tpu.pipeline_mode<synchronous>, transform_indices = @transform_12, window_bounds = array<i64: 32, 32>}, {pipeline_mode = #tpu.pipeline_mode<synchronous>, transform_indices = @transform_13, window_bounds = array<i64: 1, 32>}, {pipeline_mode = #tpu.pipeline_mode<synchronous>, transform_indices = @transform_14, window_bounds = array<i64: 1, 32>}, {pipeline_mode = #tpu.pipeline_mode<synchronous>, transform_indices = @transform_15, window_bounds = array<i64: 1, 32>}, {pipeline_mode = #tpu.pipeline_mode<synchronous>, transform_indices = @transform_16, window_bounds = array<i64: 32, 128>}, {pipeline_mode = #tpu.pipeline_mode<synchronous>, transform_indices = @transform_17, window_bounds = array<i64: 1, 128>}, {pipeline_mode = #tpu.pipeline_mode<synchronous>, transform_indices = @transform_18, window_bounds = array<i64: 128, 32>}, {pipeline_mode = #tpu.pipeline_mode<synchronous>, transform_indices = @transform_19, window_bounds = array<i64: 1, 32>}, {pipeline_mode = #tpu.pipeline_mode<synchronous>, transform_indices = @transform_20, window_bounds = array<i64: 1, 32>}, {pipeline_mode = #tpu.pipeline_mode<synchronous>, transform_indices = @transform_21, window_bounds = array<i64: 1, 32>}, {transform_indices = @transform_22, window_bounds = array<i64: 1, 8, 32>}]} {
    %c0 = arith.constant 0 : index
    %c0_0 = arith.constant 0 : index
    %0 = vector.load %arg6[%c0, %c0_0] : memref<32x32xf32, #tpu.memory_space<vmem>>, vector<32x32xf32>
    %c0_1 = arith.constant 0 : index
    %c0_2 = arith.constant 0 : index
    %1 = vector.load %arg7[%c0_1, %c0_2] : memref<32x32xf32, #tpu.memory_space<vmem>>, vector<32x32xf32>
    %c0_3 = arith.constant 0 : index
    %c0_4 = arith.constant 0 : index
    %2 = vector.load %arg8[%c0_3, %c0_4] : memref<32x32xf32, #tpu.memory_space<vmem>>, vector<32x32xf32>
    %c0_5 = arith.constant 0 : index
    %c0_6 = arith.constant 0 : index
    %3 = vector.load %arg9[%c0_5, %c0_6] : memref<32x32xf32, #tpu.memory_space<vmem>>, vector<32x32xf32>
    %c0_7 = arith.constant 0 : index
    %c0_8 = arith.constant 0 : index
    %4 = vector.load %arg10[%c0_7, %c0_8] : memref<1x32xf32, #tpu.memory_space<vmem>>, vector<1x32xf32>
    %c0_9 = arith.constant 0 : index
    %c0_10 = arith.constant 0 : index
    %5 = vector.load %arg11[%c0_9, %c0_10] : memref<1x32xf32, #tpu.memory_space<vmem>>, vector<1x32xf32>
    %c0_11 = arith.constant 0 : index
    %c0_12 = arith.constant 0 : index
    %6 = vector.load %arg12[%c0_11, %c0_12] : memref<1x32xf32, #tpu.memory_space<vmem>>, vector<1x32xf32>
    %c0_13 = arith.constant 0 : index
    %c0_14 = arith.constant 0 : index
    %7 = vector.load %arg13[%c0_13, %c0_14] : memref<32x32xf32, #tpu.memory_space<vmem>>, vector<32x32xf32>
    %c0_15 = arith.constant 0 : index
    %c0_16 = arith.constant 0 : index
    %8 = vector.load %arg14[%c0_15, %c0_16] : memref<32x32xf32, #tpu.memory_space<vmem>>, vector<32x32xf32>
    %c0_17 = arith.constant 0 : index
    %c0_18 = arith.constant 0 : index
    %9 = vector.load %arg15[%c0_17, %c0_18] : memref<32x32xf32, #tpu.memory_space<vmem>>, vector<32x32xf32>
    %c0_19 = arith.constant 0 : index
    %c0_20 = arith.constant 0 : index
    %10 = vector.load %arg16[%c0_19, %c0_20] : memref<32x32xf32, #tpu.memory_space<vmem>>, vector<32x32xf32>
    %c0_21 = arith.constant 0 : index
    %c0_22 = arith.constant 0 : index
    %11 = vector.load %arg17[%c0_21, %c0_22] : memref<1x32xf32, #tpu.memory_space<vmem>>, vector<1x32xf32>
    %c0_23 = arith.constant 0 : index
    %c0_24 = arith.constant 0 : index
    %12 = vector.load %arg18[%c0_23, %c0_24] : memref<1x32xf32, #tpu.memory_space<vmem>>, vector<1x32xf32>
    %c0_25 = arith.constant 0 : index
    %c0_26 = arith.constant 0 : index
    %13 = vector.load %arg19[%c0_25, %c0_26] : memref<1x32xf32, #tpu.memory_space<vmem>>, vector<1x32xf32>
    %c0_27 = arith.constant 0 : index
    %c0_28 = arith.constant 0 : index
    %14 = vector.load %arg20[%c0_27, %c0_28] : memref<32x128xf32, #tpu.memory_space<vmem>>, vector<32x128xf32>
    %c0_29 = arith.constant 0 : index
    %c0_30 = arith.constant 0 : index
    %15 = vector.load %arg21[%c0_29, %c0_30] : memref<1x128xf32, #tpu.memory_space<vmem>>, vector<1x128xf32>
    %c0_31 = arith.constant 0 : index
    %c0_32 = arith.constant 0 : index
    %16 = vector.load %arg22[%c0_31, %c0_32] : memref<128x32xf32, #tpu.memory_space<vmem>>, vector<128x32xf32>
    %c0_33 = arith.constant 0 : index
    %c0_34 = arith.constant 0 : index
    %17 = vector.load %arg23[%c0_33, %c0_34] : memref<1x32xf32, #tpu.memory_space<vmem>>, vector<1x32xf32>
    %c0_35 = arith.constant 0 : index
    %c0_36 = arith.constant 0 : index
    %18 = vector.load %arg24[%c0_35, %c0_36] : memref<1x32xf32, #tpu.memory_space<vmem>>, vector<1x32xf32>
    %c0_37 = arith.constant 0 : index
    %c0_38 = arith.constant 0 : index
    %19 = vector.load %arg25[%c0_37, %c0_38] : memref<1x32xf32, #tpu.memory_space<vmem>>, vector<1x32xf32>
    %c8_i32 = arith.constant 8 : i32
    %20 = arith.muli %arg1, %c8_i32 : i32
    %21 = tpu.assume_multiple %20, 8 : i32
    %22 = arith.index_cast %arg0 : i32 to index
    %23 = memref.load %arg2[%22] : memref<2xi32, #tpu.memory_space<smem>>
    %24 = arith.index_cast %arg0 : i32 to index
    %25 = memref.load %arg3[%24] : memref<2xi32, #tpu.memory_space<smem>>
    %c0_39 = arith.constant 0 : index
    %c0_40 = arith.constant 0 : index
    %c0_41 = arith.constant 0 : index
    %26 = vector.load %arg4[%c0_39, %c0_40, %c0_41] : memref<1x8x32xf32, #tpu.memory_space<vmem>>, vector<1x8x32xf32>
    %27 = vector.shape_cast %26 : vector<1x8x32xf32> to vector<8x32xf32>
    %c0_42 = arith.constant 0 : index
    %28 = arith.index_cast %21 : i32 to index
    %c0_43 = arith.constant 0 : index
    %29 = vector.load %arg4[%c0_42, %28, %c0_43] : memref<1x8x32xf32, #tpu.memory_space<vmem>>, vector<1x8x32xf32>
    %30 = vector.shape_cast %29 : vector<1x8x32xf32> to vector<8x32xf32>
    %c0_44 = arith.constant 0 : index
    %c0_45 = arith.constant 0 : index
    %c0_46 = arith.constant 0 : index
    %31 = vector.load %arg5[%c0_44, %c0_45, %c0_46] : memref<1x8x32xf32, #tpu.memory_space<vmem>>, vector<1x8x32xf32>
    %32 = vector.shape_cast %31 : vector<1x8x32xf32> to vector<8x32xf32>
    %cst = arith.constant dense<0.000000e+00> : vector<8x32xf32>
    %33 = tpu.matmul %30, %0, %cst {dimension_numbers = #tpu.dot_dimension_numbers<[1], [0], [0], [1], [0, 0, 1, 1], [], []>} : vector<8x32xf32>, vector<32x32xf32>, vector<8x32xf32> -> vector<8x32xf32>
    %cst_47 = arith.constant 2.500000e-01 : f32
    %34 = vector.broadcast %cst_47 : f32 to vector<8x32xf32>
    %35 = arith.mulf %33, %34 : vector<8x32xf32>
    %cst_48 = arith.constant dense<0.000000e+00> : vector<8x32xf32>
    %36 = tpu.matmul %27, %1, %cst_48 {dimension_numbers = #tpu.dot_dimension_numbers<[1], [0], [0], [1], [0, 0, 1, 1], [], []>} : vector<8x32xf32>, vector<32x32xf32>, vector<8x32xf32> -> vector<8x32xf32>
    %cst_49 = arith.constant dense<0.000000e+00> : vector<8x32xf32>
    %37 = tpu.matmul %27, %2, %cst_49 {dimension_numbers = #tpu.dot_dimension_numbers<[1], [0], [0], [1], [0, 0, 1, 1], [], []>} : vector<8x32xf32>, vector<32x32xf32>, vector<8x32xf32> -> vector<8x32xf32>
    %38 = tpu.iota {dimensions = array<i32: 1>} : vector<8x8xi32>
    %39 = vector.broadcast %23 : i32 to vector<8x8xi32>
    %40 = arith.cmpi slt, %38, %39 : vector<8x8xi32>
    %41 = tpu.iota {dimensions = array<i32: 0>} : vector<8x8xi32>
    %42 = vector.broadcast %21 : i32 to vector<8x8xi32>
    %43 = arith.addi %41, %42 : vector<8x8xi32>
    %44 = arith.cmpi sge, %43, %38 : vector<8x8xi32>
    %45 = arith.andi %40, %44 : vector<8x8xi1>
    %46 = vector.extract_strided_slice %35 {offsets = [0, 0], sizes = [8, 16], strides = [1, 1]} : vector<8x32xf32> to vector<8x16xf32>
    %47 = vector.extract_strided_slice %36 {offsets = [0, 0], sizes = [8, 16], strides = [1, 1]} : vector<8x32xf32> to vector<8x16xf32>
    %48 = vector.extract_strided_slice %37 {offsets = [0, 0], sizes = [8, 16], strides = [1, 1]} : vector<8x32xf32> to vector<8x16xf32>
    %cst_50 = arith.constant dense<0.000000e+00> : vector<8x8xf32>
    %49 = tpu.matmul %46, %47, %cst_50 {dimension_numbers = #tpu.dot_dimension_numbers<[1], [1], [0], [0], [0, 0, 1, 0], [], []>} : vector<8x16xf32>, vector<8x16xf32>, vector<8x8xf32> -> vector<8x8xf32>
    %cst_51 = arith.constant 0.000000e+00 : f32
    %50 = vector.broadcast %cst_51 : f32 to vector<8x8xf32>
    %51 = arith.cmpf one, %49, %50 : vector<8x8xf32>
    %52 = arith.andi %45, %51 : vector<8x8xi1>
    %cst_52 = arith.constant -1.000000e+20 : f32
    %53 = vector.broadcast %cst_52 : f32 to vector<8x8xf32>
    %54 = arith.select %52, %49, %53 : vector<8x8xi1>, vector<8x8xf32>
    %cst_53 = arith.constant dense<0xFF800000> : vector<8xf32>
    %55 = vector.multi_reduction <maximumf>, %54, %cst_53 [1] : vector<8x8xf32> to vector<8xf32>
    %56 = vector.shape_cast %55 : vector<8xf32> to vector<8x1xf32>
    %57 = vector.broadcast %56 : vector<8x1xf32> to vector<8x8xf32>
    %58 = arith.subf %54, %57 : vector<8x8xf32>
    %59 = math.exp %58 : vector<8x8xf32>
    %cst_54 = arith.constant dense<0.000000e+00> : vector<8xf32>
    %60 = vector.multi_reduction <add>, %59, %cst_54 [1] : vector<8x8xf32> to vector<8xf32>
    %61 = vector.shape_cast %60 : vector<8xf32> to vector<8x1xf32>
    %62 = tpu.reciprocal %61 {approx = true} : vector<8x1xf32> -> vector<8x1xf32>
    %63 = arith.mulf %61, %62 : vector<8x1xf32>
    %cst_55 = arith.constant 2.000000e+00 : f32
    %64 = vector.broadcast %cst_55 : f32 to vector<8x1xf32>
    %65 = arith.subf %64, %63 : vector<8x1xf32>
    %66 = arith.mulf %62, %65 : vector<8x1xf32>
    %67 = vector.broadcast %66 : vector<8x1xf32> to vector<8x8xf32>
    %68 = arith.mulf %59, %67 : vector<8x8xf32>
    %cst_56 = arith.constant dense<0.000000e+00> : vector<8x16xf32>
    %69 = tpu.matmul %68, %48, %cst_56 {dimension_numbers = #tpu.dot_dimension_numbers<[1], [0], [0], [1], [0, 0, 1, 1], [], []>} : vector<8x8xf32>, vector<8x16xf32>, vector<8x16xf32> -> vector<8x16xf32>
    %70 = vector.extract_strided_slice %35 {offsets = [0, 16], sizes = [8, 16], strides = [1, 1]} : vector<8x32xf32> to vector<8x16xf32>
    %71 = vector.extract_strided_slice %36 {offsets = [0, 16], sizes = [8, 16], strides = [1, 1]} : vector<8x32xf32> to vector<8x16xf32>
    %72 = vector.extract_strided_slice %37 {offsets = [0, 16], sizes = [8, 16], strides = [1, 1]} : vector<8x32xf32> to vector<8x16xf32>
    %cst_57 = arith.constant dense<0.000000e+00> : vector<8x8xf32>
    %73 = tpu.matmul %70, %71, %cst_57 {dimension_numbers = #tpu.dot_dimension_numbers<[1], [1], [0], [0], [0, 0, 1, 0], [], []>} : vector<8x16xf32>, vector<8x16xf32>, vector<8x8xf32> -> vector<8x8xf32>
    %cst_58 = arith.constant 0.000000e+00 : f32
    %74 = vector.broadcast %cst_58 : f32 to vector<8x8xf32>
    %75 = arith.cmpf one, %73, %74 : vector<8x8xf32>
    %76 = arith.andi %45, %75 : vector<8x8xi1>
    %cst_59 = arith.constant -1.000000e+20 : f32
    %77 = vector.broadcast %cst_59 : f32 to vector<8x8xf32>
    %78 = arith.select %76, %73, %77 : vector<8x8xi1>, vector<8x8xf32>
    %cst_60 = arith.constant dense<0xFF800000> : vector<8xf32>
    %79 = vector.multi_reduction <maximumf>, %78, %cst_60 [1] : vector<8x8xf32> to vector<8xf32>
    %80 = vector.shape_cast %79 : vector<8xf32> to vector<8x1xf32>
    %81 = vector.broadcast %80 : vector<8x1xf32> to vector<8x8xf32>
    %82 = arith.subf %78, %81 : vector<8x8xf32>
    %83 = math.exp %82 : vector<8x8xf32>
    %cst_61 = arith.constant dense<0.000000e+00> : vector<8xf32>
    %84 = vector.multi_reduction <add>, %83, %cst_61 [1] : vector<8x8xf32> to vector<8xf32>
    %85 = vector.shape_cast %84 : vector<8xf32> to vector<8x1xf32>
    %86 = tpu.reciprocal %85 {approx = true} : vector<8x1xf32> -> vector<8x1xf32>
    %87 = arith.mulf %85, %86 : vector<8x1xf32>
    %cst_62 = arith.constant 2.000000e+00 : f32
    %88 = vector.broadcast %cst_62 : f32 to vector<8x1xf32>
    %89 = arith.subf %88, %87 : vector<8x1xf32>
    %90 = arith.mulf %86, %89 : vector<8x1xf32>
    %91 = vector.broadcast %90 : vector<8x1xf32> to vector<8x8xf32>
    %92 = arith.mulf %83, %91 : vector<8x8xf32>
    %cst_63 = arith.constant dense<0.000000e+00> : vector<8x16xf32>
    %93 = tpu.matmul %92, %72, %cst_63 {dimension_numbers = #tpu.dot_dimension_numbers<[1], [0], [0], [1], [0, 0, 1, 1], [], []>} : vector<8x8xf32>, vector<8x16xf32>, vector<8x16xf32> -> vector<8x16xf32>
    %94 = tpu.concatenate %69, %93 in 1 : vector<8x16xf32>, vector<8x16xf32> -> vector<8x32xf32>
    %cst_64 = arith.constant dense<0.000000e+00> : vector<8x32xf32>
    %95 = tpu.matmul %94, %3, %cst_64 {dimension_numbers = #tpu.dot_dimension_numbers<[1], [0], [0], [1], [0, 0, 1, 1], [], []>} : vector<8x32xf32>, vector<32x32xf32>, vector<8x32xf32> -> vector<8x32xf32>
    %96 = vector.broadcast %4 : vector<1x32xf32> to vector<8x32xf32>
    %97 = arith.addf %95, %96 : vector<8x32xf32>
    %98 = arith.addf %97, %30 : vector<8x32xf32>
    %cst_65 = arith.constant dense<0.000000e+00> : vector<8xf32>
    %99 = vector.multi_reduction <add>, %98, %cst_65 [1] : vector<8x32xf32> to vector<8xf32>
    %100 = vector.shape_cast %99 : vector<8xf32> to vector<8x1xf32>
    %cst_66 = arith.constant 3.200000e+01 : f32
    %101 = vector.broadcast %cst_66 : f32 to vector<8x1xf32>
    %102 = arith.divf %100, %101 : vector<8x1xf32>
    %103 = vector.broadcast %102 : vector<8x1xf32> to vector<8x32xf32>
    %104 = arith.subf %98, %103 : vector<8x32xf32>
    %105 = arith.mulf %104, %104 : vector<8x32xf32>
    %cst_67 = arith.constant dense<0.000000e+00> : vector<8xf32>
    %106 = vector.multi_reduction <add>, %105, %cst_67 [1] : vector<8x32xf32> to vector<8xf32>
    %107 = vector.shape_cast %106 : vector<8xf32> to vector<8x1xf32>
    %cst_68 = arith.constant 3.200000e+01 : f32
    %108 = vector.broadcast %cst_68 : f32 to vector<8x1xf32>
    %109 = arith.divf %107, %108 : vector<8x1xf32>
    %110 = vector.broadcast %102 : vector<8x1xf32> to vector<8x32xf32>
    %111 = arith.subf %98, %110 : vector<8x32xf32>
    %cst_69 = arith.constant 9.99999997E-7 : f32
    %112 = vector.broadcast %cst_69 : f32 to vector<8x1xf32>
    %113 = arith.addf %109, %112 : vector<8x1xf32>
    %114 = math.rsqrt %113 : vector<8x1xf32>
    %115 = vector.broadcast %114 : vector<8x1xf32> to vector<8x32xf32>
    %116 = arith.mulf %111, %115 : vector<8x32xf32>
    %117 = vector.broadcast %5 : vector<1x32xf32> to vector<8x32xf32>
    %118 = arith.mulf %116, %117 : vector<8x32xf32>
    %119 = vector.broadcast %6 : vector<1x32xf32> to vector<8x32xf32>
    %120 = arith.addf %118, %119 : vector<8x32xf32>
    %cst_70 = arith.constant dense<0.000000e+00> : vector<8x32xf32>
    %121 = tpu.matmul %120, %7, %cst_70 {dimension_numbers = #tpu.dot_dimension_numbers<[1], [0], [0], [1], [0, 0, 1, 1], [], []>} : vector<8x32xf32>, vector<32x32xf32>, vector<8x32xf32> -> vector<8x32xf32>
    %cst_71 = arith.constant 2.500000e-01 : f32
    %122 = vector.broadcast %cst_71 : f32 to vector<8x32xf32>
    %123 = arith.mulf %121, %122 : vector<8x32xf32>
    %cst_72 = arith.constant dense<0.000000e+00> : vector<8x32xf32>
    %124 = tpu.matmul %32, %8, %cst_72 {dimension_numbers = #tpu.dot_dimension_numbers<[1], [0], [0], [1], [0, 0, 1, 1], [], []>} : vector<8x32xf32>, vector<32x32xf32>, vector<8x32xf32> -> vector<8x32xf32>
    %cst_73 = arith.constant dense<0.000000e+00> : vector<8x32xf32>
    %125 = tpu.matmul %32, %9, %cst_73 {dimension_numbers = #tpu.dot_dimension_numbers<[1], [0], [0], [1], [0, 0, 1, 1], [], []>} : vector<8x32xf32>, vector<32x32xf32>, vector<8x32xf32> -> vector<8x32xf32>
    %126 = tpu.iota {dimensions = array<i32: 1>} : vector<8x8xi32>
    %127 = vector.broadcast %25 : i32 to vector<8x8xi32>
    %128 = arith.cmpi slt, %126, %127 : vector<8x8xi32>
    %129 = vector.extract_strided_slice %123 {offsets = [0, 0], sizes = [8, 16], strides = [1, 1]} : vector<8x32xf32> to vector<8x16xf32>
    %130 = vector.extract_strided_slice %124 {offsets = [0, 0], sizes = [8, 16], strides = [1, 1]} : vector<8x32xf32> to vector<8x16xf32>
    %131 = vector.extract_strided_slice %125 {offsets = [0, 0], sizes = [8, 16], strides = [1, 1]} : vector<8x32xf32> to vector<8x16xf32>
    %cst_74 = arith.constant dense<0.000000e+00> : vector<8x8xf32>
    %132 = tpu.matmul %129, %130, %cst_74 {dimension_numbers = #tpu.dot_dimension_numbers<[1], [1], [0], [0], [0, 0, 1, 0], [], []>} : vector<8x16xf32>, vector<8x16xf32>, vector<8x8xf32> -> vector<8x8xf32>
    %cst_75 = arith.constant -1.000000e+20 : f32
    %133 = vector.broadcast %cst_75 : f32 to vector<8x8xf32>
    %134 = arith.select %128, %132, %133 : vector<8x8xi1>, vector<8x8xf32>
    %cst_76 = arith.constant dense<0xFF800000> : vector<8xf32>
    %135 = vector.multi_reduction <maximumf>, %134, %cst_76 [1] : vector<8x8xf32> to vector<8xf32>
    %136 = vector.shape_cast %135 : vector<8xf32> to vector<8x1xf32>
    %137 = vector.broadcast %136 : vector<8x1xf32> to vector<8x8xf32>
    %138 = arith.subf %134, %137 : vector<8x8xf32>
    %139 = math.exp %138 : vector<8x8xf32>
    %cst_77 = arith.constant dense<0.000000e+00> : vector<8xf32>
    %140 = vector.multi_reduction <add>, %139, %cst_77 [1] : vector<8x8xf32> to vector<8xf32>
    %141 = vector.shape_cast %140 : vector<8xf32> to vector<8x1xf32>
    %142 = tpu.reciprocal %141 {approx = true} : vector<8x1xf32> -> vector<8x1xf32>
    %143 = arith.mulf %141, %142 : vector<8x1xf32>
    %cst_78 = arith.constant 2.000000e+00 : f32
    %144 = vector.broadcast %cst_78 : f32 to vector<8x1xf32>
    %145 = arith.subf %144, %143 : vector<8x1xf32>
    %146 = arith.mulf %142, %145 : vector<8x1xf32>
    %147 = vector.broadcast %146 : vector<8x1xf32> to vector<8x8xf32>
    %148 = arith.mulf %139, %147 : vector<8x8xf32>
    %cst_79 = arith.constant dense<0.000000e+00> : vector<8x16xf32>
    %149 = tpu.matmul %148, %131, %cst_79 {dimension_numbers = #tpu.dot_dimension_numbers<[1], [0], [0], [1], [0, 0, 1, 1], [], []>} : vector<8x8xf32>, vector<8x16xf32>, vector<8x16xf32> -> vector<8x16xf32>
    %150 = vector.extract_strided_slice %123 {offsets = [0, 16], sizes = [8, 16], strides = [1, 1]} : vector<8x32xf32> to vector<8x16xf32>
    %151 = vector.extract_strided_slice %124 {offsets = [0, 16], sizes = [8, 16], strides = [1, 1]} : vector<8x32xf32> to vector<8x16xf32>
    %152 = vector.extract_strided_slice %125 {offsets = [0, 16], sizes = [8, 16], strides = [1, 1]} : vector<8x32xf32> to vector<8x16xf32>
    %cst_80 = arith.constant dense<0.000000e+00> : vector<8x8xf32>
    %153 = tpu.matmul %150, %151, %cst_80 {dimension_numbers = #tpu.dot_dimension_numbers<[1], [1], [0], [0], [0, 0, 1, 0], [], []>} : vector<8x16xf32>, vector<8x16xf32>, vector<8x8xf32> -> vector<8x8xf32>
    %cst_81 = arith.constant -1.000000e+20 : f32
    %154 = vector.broadcast %cst_81 : f32 to vector<8x8xf32>
    %155 = arith.select %128, %153, %154 : vector<8x8xi1>, vector<8x8xf32>
    %cst_82 = arith.constant dense<0xFF800000> : vector<8xf32>
    %156 = vector.multi_reduction <maximumf>, %155, %cst_82 [1] : vector<8x8xf32> to vector<8xf32>
    %157 = vector.shape_cast %156 : vector<8xf32> to vector<8x1xf32>
    %158 = vector.broadcast %157 : vector<8x1xf32> to vector<8x8xf32>
    %159 = arith.subf %155, %158 : vector<8x8xf32>
    %160 = math.exp %159 : vector<8x8xf32>
    %cst_83 = arith.constant dense<0.000000e+00> : vector<8xf32>
    %161 = vector.multi_reduction <add>, %160, %cst_83 [1] : vector<8x8xf32> to vector<8xf32>
    %162 = vector.shape_cast %161 : vector<8xf32> to vector<8x1xf32>
    %163 = tpu.reciprocal %162 {approx = true} : vector<8x1xf32> -> vector<8x1xf32>
    %164 = arith.mulf %162, %163 : vector<8x1xf32>
    %cst_84 = arith.constant 2.000000e+00 : f32
    %165 = vector.broadcast %cst_84 : f32 to vector<8x1xf32>
    %166 = arith.subf %165, %164 : vector<8x1xf32>
    %167 = arith.mulf %163, %166 : vector<8x1xf32>
    %168 = vector.broadcast %167 : vector<8x1xf32> to vector<8x8xf32>
    %169 = arith.mulf %160, %168 : vector<8x8xf32>
    %cst_85 = arith.constant dense<0.000000e+00> : vector<8x16xf32>
    %170 = tpu.matmul %169, %152, %cst_85 {dimension_numbers = #tpu.dot_dimension_numbers<[1], [0], [0], [1], [0, 0, 1, 1], [], []>} : vector<8x8xf32>, vector<8x16xf32>, vector<8x16xf32> -> vector<8x16xf32>
    %171 = tpu.concatenate %149, %170 in 1 : vector<8x16xf32>, vector<8x16xf32> -> vector<8x32xf32>
    %cst_86 = arith.constant dense<0.000000e+00> : vector<8x32xf32>
    %172 = tpu.matmul %171, %10, %cst_86 {dimension_numbers = #tpu.dot_dimension_numbers<[1], [0], [0], [1], [0, 0, 1, 1], [], []>} : vector<8x32xf32>, vector<32x32xf32>, vector<8x32xf32> -> vector<8x32xf32>
    %173 = vector.broadcast %11 : vector<1x32xf32> to vector<8x32xf32>
    %174 = arith.addf %172, %173 : vector<8x32xf32>
    %175 = arith.addf %174, %120 : vector<8x32xf32>
    %cst_87 = arith.constant dense<0.000000e+00> : vector<8xf32>
    %176 = vector.multi_reduction <add>, %175, %cst_87 [1] : vector<8x32xf32> to vector<8xf32>
    %177 = vector.shape_cast %176 : vector<8xf32> to vector<8x1xf32>
    %cst_88 = arith.constant 3.200000e+01 : f32
    %178 = vector.broadcast %cst_88 : f32 to vector<8x1xf32>
    %179 = arith.divf %177, %178 : vector<8x1xf32>
    %180 = vector.broadcast %179 : vector<8x1xf32> to vector<8x32xf32>
    %181 = arith.subf %175, %180 : vector<8x32xf32>
    %182 = arith.mulf %181, %181 : vector<8x32xf32>
    %cst_89 = arith.constant dense<0.000000e+00> : vector<8xf32>
    %183 = vector.multi_reduction <add>, %182, %cst_89 [1] : vector<8x32xf32> to vector<8xf32>
    %184 = vector.shape_cast %183 : vector<8xf32> to vector<8x1xf32>
    %cst_90 = arith.constant 3.200000e+01 : f32
    %185 = vector.broadcast %cst_90 : f32 to vector<8x1xf32>
    %186 = arith.divf %184, %185 : vector<8x1xf32>
    %187 = vector.broadcast %179 : vector<8x1xf32> to vector<8x32xf32>
    %188 = arith.subf %175, %187 : vector<8x32xf32>
    %cst_91 = arith.constant 9.99999997E-7 : f32
    %189 = vector.broadcast %cst_91 : f32 to vector<8x1xf32>
    %190 = arith.addf %186, %189 : vector<8x1xf32>
    %191 = math.rsqrt %190 : vector<8x1xf32>
    %192 = vector.broadcast %191 : vector<8x1xf32> to vector<8x32xf32>
    %193 = arith.mulf %188, %192 : vector<8x32xf32>
    %194 = vector.broadcast %12 : vector<1x32xf32> to vector<8x32xf32>
    %195 = arith.mulf %193, %194 : vector<8x32xf32>
    %196 = vector.broadcast %13 : vector<1x32xf32> to vector<8x32xf32>
    %197 = arith.addf %195, %196 : vector<8x32xf32>
    %cst_92 = arith.constant dense<0.000000e+00> : vector<8x128xf32>
    %198 = tpu.matmul %197, %14, %cst_92 {dimension_numbers = #tpu.dot_dimension_numbers<[1], [0], [0], [1], [0, 0, 1, 1], [], []>} : vector<8x32xf32>, vector<32x128xf32>, vector<8x128xf32> -> vector<8x128xf32>
    %199 = vector.broadcast %15 : vector<1x128xf32> to vector<8x128xf32>
    %200 = arith.addf %198, %199 : vector<8x128xf32>
    %cst_93 = arith.constant 0.000000e+00 : f32
    %201 = vector.broadcast %cst_93 : f32 to vector<8x128xf32>
    %202 = arith.maximumf %200, %201 : vector<8x128xf32>
    %cst_94 = arith.constant dense<0.000000e+00> : vector<8x32xf32>
    %203 = tpu.matmul %202, %16, %cst_94 {dimension_numbers = #tpu.dot_dimension_numbers<[1], [0], [0], [1], [0, 0, 1, 1], [], []>} : vector<8x128xf32>, vector<128x32xf32>, vector<8x32xf32> -> vector<8x32xf32>
    %204 = vector.broadcast %17 : vector<1x32xf32> to vector<8x32xf32>
    %205 = arith.addf %203, %204 : vector<8x32xf32>
    %206 = arith.addf %205, %197 : vector<8x32xf32>
    %cst_95 = arith.constant dense<0.000000e+00> : vector<8xf32>
    %207 = vector.multi_reduction <add>, %206, %cst_95 [1] : vector<8x32xf32> to vector<8xf32>
    %208 = vector.shape_cast %207 : vector<8xf32> to vector<8x1xf32>
    %cst_96 = arith.constant 3.200000e+01 : f32
    %209 = vector.broadcast %cst_96 : f32 to vector<8x1xf32>
    %210 = arith.divf %208, %209 : vector<8x1xf32>
    %211 = vector.broadcast %210 : vector<8x1xf32> to vector<8x32xf32>
    %212 = arith.subf %206, %211 : vector<8x32xf32>
    %213 = arith.mulf %212, %212 : vector<8x32xf32>
    %cst_97 = arith.constant dense<0.000000e+00> : vector<8xf32>
    %214 = vector.multi_reduction <add>, %213, %cst_97 [1] : vector<8x32xf32> to vector<8xf32>
    %215 = vector.shape_cast %214 : vector<8xf32> to vector<8x1xf32>
    %cst_98 = arith.constant 3.200000e+01 : f32
    %216 = vector.broadcast %cst_98 : f32 to vector<8x1xf32>
    %217 = arith.divf %215, %216 : vector<8x1xf32>
    %218 = vector.broadcast %210 : vector<8x1xf32> to vector<8x32xf32>
    %219 = arith.subf %206, %218 : vector<8x32xf32>
    %cst_99 = arith.constant 9.99999997E-7 : f32
    %220 = vector.broadcast %cst_99 : f32 to vector<8x1xf32>
    %221 = arith.addf %217, %220 : vector<8x1xf32>
    %222 = math.rsqrt %221 : vector<8x1xf32>
    %223 = vector.broadcast %222 : vector<8x1xf32> to vector<8x32xf32>
    %224 = arith.mulf %219, %223 : vector<8x32xf32>
    %225 = vector.broadcast %18 : vector<1x32xf32> to vector<8x32xf32>
    %226 = arith.mulf %224, %225 : vector<8x32xf32>
    %227 = vector.broadcast %19 : vector<1x32xf32> to vector<8x32xf32>
    %228 = arith.addf %226, %227 : vector<8x32xf32>
    %c0_100 = arith.constant 0 : index
    %c0_101 = arith.constant 0 : index
    %c0_102 = arith.constant 0 : index
    %229 = vector.load %arg26[%c0_100, %c0_101, %c0_102] : memref<1x8x32xf32, #tpu.memory_space<vmem>>, vector<1x8x32xf32>
    %230 = vector.shape_cast %229 : vector<1x8x32xf32> to vector<8x32xf32>
    %231 = vector.shape_cast %228 : vector<8x32xf32> to vector<1x8x32xf32>
    tpu.vector_store %arg26[%c0_100, %c0_101, %c0_102], %231 {strides = array<i32>} : memref<1x8x32xf32, #tpu.memory_space<vmem>>, vector<1x8x32xf32>,
    return
  }
  func.func @transform_0(%arg0: i32, %arg1: i32, %arg2: memref<2xi32, #tpu.memory_space<smem>>, %arg3: memref<2xi32, #tpu.memory_space<smem>>) -> (i32, i32, i32) {
    %c0_i32 = arith.constant 0 : i32
    %c0_i32_0 = arith.constant 0 : i32
    %c0_i32_1 = arith.constant 0 : i32
    return %arg0, %c0_i32, %c0_i32_0 : i32, i32, i32
  }
  func.func @transform_1(%arg0: i32, %arg1: i32, %arg2: memref<2xi32, #tpu.memory_space<smem>>, %arg3: memref<2xi32, #tpu.memory_space<smem>>) -> (i32, i32, i32) {
    %c0_i32 = arith.constant 0 : i32
    %c0_i32_0 = arith.constant 0 : i32
    %c0_i32_1 = arith.constant 0 : i32
    return %arg0, %c0_i32, %c0_i32_0 : i32, i32, i32
  }
  func.func @transform_2(%arg0: i32, %arg1: i32, %arg2: memref<2xi32, #tpu.memory_space<smem>>, %arg3: memref<2xi32, #tpu.memory_space<smem>>) -> (i32, i32) {
    %c0_i32 = arith.constant 0 : i32
    %c0_i32_0 = arith.constant 0 : i32
    %c0_i32_1 = arith.constant 0 : i32
    return %c0_i32, %c0_i32_0 : i32, i32
  }
  func.func @transform_3(%arg0: i32, %arg1: i32, %arg2: memref<2xi32, #tpu.memory_space<smem>>, %arg3: memref<2xi32, #tpu.memory_space<smem>>) -> (i32, i32) {
    %c0_i32 = arith.constant 0 : i32
    %c0_i32_0 = arith.constant 0 : i32
    %c0_i32_1 = arith.constant 0 : i32
    return %c0_i32, %c0_i32_0 : i32, i32
  }
  func.func @transform_4(%arg0: i32, %arg1: i32, %arg2: memref<2xi32, #tpu.memory_space<smem>>, %arg3: memref<2xi32, #tpu.memory_space<smem>>) -> (i32, i32) {
    %c0_i32 = arith.constant 0 : i32
    %c0_i32_0 = arith.constant 0 : i32
    %c0_i32_1 = arith.constant 0 : i32
    return %c0_i32, %c0_i32_0 : i32, i32
  }
  func.func @transform_5(%arg0: i32, %arg1: i32, %arg2: memref<2xi32, #tpu.memory_space<smem>>, %arg3: memref<2xi32, #tpu.memory_space<smem>>) -> (i32, i32) {
    %c0_i32 = arith.constant 0 : i32
    %c0_i32_0 = arith.constant 0 : i32
    %c0_i32_1 = arith.constant 0 : i32
    return %c0_i32, %c0_i32_0 : i32, i32
  }
  func.func @transform_6(%arg0: i32, %arg1: i32, %arg2: memref<2xi32, #tpu.memory_space<smem>>, %arg3: memref<2xi32, #tpu.memory_space<smem>>) -> (i32, i32) {
    %c0_i32 = arith.constant 0 : i32
    %c0_i32_0 = arith.constant 0 : i32
    %c0_i32_1 = arith.constant 0 : i32
    return %c0_i32, %c0_i32_0 : i32, i32
  }
  func.func @transform_7(%arg0: i32, %arg1: i32, %arg2: memref<2xi32, #tpu.memory_space<smem>>, %arg3: memref<2xi32, #tpu.memory_space<smem>>) -> (i32, i32) {
    %c0_i32 = arith.constant 0 : i32
    %c0_i32_0 = arith.constant 0 : i32
    %c0_i32_1 = arith.constant 0 : i32
    return %c0_i32, %c0_i32_0 : i32, i32
  }
  func.func @transform_8(%arg0: i32, %arg1: i32, %arg2: memref<2xi32, #tpu.memory_space<smem>>, %arg3: memref<2xi32, #tpu.memory_space<smem>>) -> (i32, i32) {
    %c0_i32 = arith.constant 0 : i32
    %c0_i32_0 = arith.constant 0 : i32
    %c0_i32_1 = arith.constant 0 : i32
    return %c0_i32, %c0_i32_0 : i32, i32
  }
  func.func @transform_9(%arg0: i32, %arg1: i32, %arg2: memref<2xi32, #tpu.memory_space<smem>>, %arg3: memref<2xi32, #tpu.memory_space<smem>>) -> (i32, i32) {
    %c0_i32 = arith.constant 0 : i32
    %c0_i32_0 = arith.constant 0 : i32
    %c0_i32_1 = arith.constant 0 : i32
    return %c0_i32, %c0_i32_0 : i32, i32
  }
  func.func @transform_10(%arg0: i32, %arg1: i32, %arg2: memref<2xi32, #tpu.memory_space<smem>>, %arg3: memref<2xi32, #tpu.memory_space<smem>>) -> (i32, i32) {
    %c0_i32 = arith.constant 0 : i32
    %c0_i32_0 = arith.constant 0 : i32
    %c0_i32_1 = arith.constant 0 : i32
    return %c0_i32, %c0_i32_0 : i32, i32
  }
  func.func @transform_11(%arg0: i32, %arg1: i32, %arg2: memref<2xi32, #tpu.memory_space<smem>>, %arg3: memref<2xi32, #tpu.memory_space<smem>>) -> (i32, i32) {
    %c0_i32 = arith.constant 0 : i32
    %c0_i32_0 = arith.constant 0 : i32
    %c0_i32_1 = arith.constant 0 : i32
    return %c0_i32, %c0_i32_0 : i32, i32
  }
  func.func @transform_12(%arg0: i32, %arg1: i32, %arg2: memref<2xi32, #tpu.memory_space<smem>>, %arg3: memref<2xi32, #tpu.memory_space<smem>>) -> (i32, i32) {
    %c0_i32 = arith.constant 0 : i32
    %c0_i32_0 = arith.constant 0 : i32
    %c0_i32_1 = arith.constant 0 : i32
    return %c0_i32, %c0_i32_0 : i32, i32
  }
  func.func @transform_13(%arg0: i32, %arg1: i32, %arg2: memref<2xi32, #tpu.memory_space<smem>>, %arg3: memref<2xi32, #tpu.memory_space<smem>>) -> (i32, i32) {
    %c0_i32 = arith.constant 0 : i32
    %c0_i32_0 = arith.constant 0 : i32
    %c0_i32_1 = arith.constant 0 : i32
    return %c0_i32, %c0_i32_0 : i32, i32
  }
  func.func @transform_14(%arg0: i32, %arg1: i32, %arg2: memref<2xi32, #tpu.memory_space<smem>>, %arg3: memref<2xi32, #tpu.memory_space<smem>>) -> (i32, i32) {
    %c0_i32 = arith.constant 0 : i32
    %c0_i32_0 = arith.constant 0 : i32
    %c0_i32_1 = arith.constant 0 : i32
    return %c0_i32, %c0_i32_0 : i32, i32
  }
  func.func @transform_15(%arg0: i32, %arg1: i32, %arg2: memref<2xi32, #tpu.memory_space<smem>>, %arg3: memref<2xi32, #tpu.memory_space<smem>>) -> (i32, i32) {
    %c0_i32 = arith.constant 0 : i32
    %c0_i32_0 = arith.constant 0 : i32
    %c0_i32_1 = arith.constant 0 : i32
    return %c0_i32, %c0_i32_0 : i32, i32
  }
  func.func @transform_16(%arg0: i32, %arg1: i32, %arg2: memref<2xi32, #tpu.memory_space<smem>>, %arg3: memref<2xi32, #tpu.memory_space<smem>>) -> (i32, i32) {
    %c0_i32 = arith.constant 0 : i32
    %c0_i32_0 = arith.constant 0 : i32
    %c0_i32_1 = arith.constant 0 : i32
    return %c0_i32, %c0_i32_0 : i32, i32
  }
  func.func @transform_17(%arg0: i32, %arg1: i32, %arg2: memref<2xi32, #tpu.memory_space<smem>>, %arg3: memref<2xi32, #tpu.memory_space<smem>>) -> (i32, i32) {
    %c0_i32 = arith.constant 0 : i32
    %c0_i32_0 = arith.constant 0 : i32
    %c0_i32_1 = arith.constant 0 : i32
    return %c0_i32, %c0_i32_0 : i32, i32
  }
  func.func @transform_18(%arg0: i32, %arg1: i32, %arg2: memref<2xi32, #tpu.memory_space<smem>>, %arg3: memref<2xi32, #tpu.memory_space<smem>>) -> (i32, i32) {
    %c0_i32 = arith.constant 0 : i32
    %c0_i32_0 = arith.constant 0 : i32
    %c0_i32_1 = arith.constant 0 : i32
    return %c0_i32, %c0_i32_0 : i32, i32
  }
  func.func @transform_19(%arg0: i32, %arg1: i32, %arg2: memref<2xi32, #tpu.memory_space<smem>>, %arg3: memref<2xi32, #tpu.memory_space<smem>>) -> (i32, i32) {
    %c0_i32 = arith.constant 0 : i32
    %c0_i32_0 = arith.constant 0 : i32
    %c0_i32_1 = arith.constant 0 : i32
    return %c0_i32, %c0_i32_0 : i32, i32
  }
  func.func @transform_20(%arg0: i32, %arg1: i32, %arg2: memref<2xi32, #tpu.memory_space<smem>>, %arg3: memref<2xi32, #tpu.memory_space<smem>>) -> (i32, i32) {
    %c0_i32 = arith.constant 0 : i32
    %c0_i32_0 = arith.constant 0 : i32
    %c0_i32_1 = arith.constant 0 : i32
    return %c0_i32, %c0_i32_0 : i32, i32
  }
  func.func @transform_21(%arg0: i32, %arg1: i32, %arg2: memref<2xi32, #tpu.memory_space<smem>>, %arg3: memref<2xi32, #tpu.memory_space<smem>>) -> (i32, i32) {
    %c0_i32 = arith.constant 0 : i32
    %c0_i32_0 = arith.constant 0 : i32
    %c0_i32_1 = arith.constant 0 : i32
    return %c0_i32, %c0_i32_0 : i32, i32
  }
  func.func @transform_22(%arg0: i32, %arg1: i32, %arg2: memref<2xi32, #tpu.memory_space<smem>>, %arg3: memref<2xi32, #tpu.memory_space<smem>>) -> (i32, i32, i32) {
    %c0_i32 = arith.constant 0 : i32
    %c0_i32_0 = arith.constant 0 : i32
    return %arg0, %arg1, %c0_i32 : i32, i32, i32
  }
}

module attributes {stable_mosaic.version = 11 : i64} {
  func.func @_decoder_layer_kernel(%arg0: i32, %arg1: i32, %arg2: memref<2xi32, #tpu.memory_space<smem>>, %arg3: memref<2xi32, #tpu.memory_space<smem>>, %arg4: memref<1x8x32xf32, #tpu.memory_space<vmem>>, %arg5: memref<1x8x32xf32, #tpu.memory_space<vmem>>, %arg6: memref<32x32xf32, #tpu.memory_space<vmem>>, %arg7: memref<32x32xf32, #tpu.memory_space<vmem>>, %arg8: memref<32x32xf32, #tpu.memory_space<vmem>>, %arg9: memref<32x32xf32, #tpu.memory_space<vmem>>, %arg10: memref<1x32xf32, #tpu.memory_space<vmem>>, %arg11: memref<1x32xf32, #tpu.memory_space<vmem>>, %arg12: memref<1x32xf32, #tpu.memory_space<vmem>>, %arg13: memref<32x32xf32, #tpu.memory_space<vmem>>, %arg14: memref<32x32xf32, #tpu.memory_space<vmem>>, %arg15: memref<32x32xf32, #tpu.memory_space<vmem>>, %arg16: memref<32x32xf32, #tpu.memory_space<vmem>>, %arg17: memref<1x32xf32, #tpu.memory_space<vmem>>, %arg18: memref<1x32xf32, #tpu.memory_space<vmem>>, %arg19: memref<1x32xf32, #tpu.memory_space<vmem>>, %arg20: memref<32x128xf32, #tpu.memory_space<vmem>>, %arg21: memref<1x128xf32, #tpu.memory_space<vmem>>, %arg22: memref<128x32xf32, #tpu.memory_space<vmem>>, %arg23: memref<1x32xf32, #tpu.memory_space<vmem>>, %arg24: memref<1x32xf32, #tpu.memory_space<vmem>>, %arg25: memref<1x32xf32, #tpu.memory_space<vmem>>, %arg26: memref<1x8x32xf32, #tpu.memory_space<vmem>>) attributes {dimension_semantics = [#tpu.dimension_semantics<parallel>, #tpu.dimension_semantics<parallel>], iteration_bounds = array<i64: 2, 1>, scalar_prefetch = 2 : i64, scratch_operands = 0 : i64, tpu.core_type = #tpu.core_type<tc>, window_params = [{transform_indices = @transform_0, window_bounds = array<i64: 1, 8, 32>}, {transform_indices = @transform_1, window_bounds = array<i64: 1, 8, 32>}, {pipeline_mode = #tpu.pipeline_mode<synchronous>, transform_indices = @transform_2, window_bounds = array<i64: 32, 32>}, {pipeline_mode = #tpu.pipeline_mode<synchronous>, transform_indices = @transform_3, window_bounds = array<i64: 32, 32>}, {pipeline_mode = #tpu.pipeline_mode<synchronous>, transform_indices = @transform_4, window_bounds = array<i64: 32, 32>}, {pipeline_mode = #tpu.pipeline_mode<synchronous>, transform_indices = @transform_5, window_bounds = array<i64: 32, 32>}, {pipeline_mode = #tpu.pipeline_mode<synchronous>, transform_indices = @transform_6, window_bounds = array<i64: 1, 32>}, {pipeline_mode = #tpu.pipeline_mode<synchronous>, transform_indices = @transform_7, window_bounds = array<i64: 1, 32>}, {pipeline_mode = #tpu.pipeline_mode<synchronous>, transform_indices = @transform_8, window_bounds = array<i64: 1, 32>}, {pipeline_mode = #tpu.pipeline_mode<synchronous>, transform_indices = @transform_9, window_bounds = array<i64: 32, 32>}, {pipeline_mode = #tpu.pipeline_mode<synchronous>, transform_indices = @transform_10, window_bounds = array<i64: 32, 32>}, {pipeline_mode = #tpu.pipeline_mode<synchronous>, transform_indices = @transform_11, window_bounds = array<i64: 32, 32>}, {pipeline_mode = #tpu.pipeline_mode<synchronous>, transform_indices = @transform_12, window_bounds = array<i64: 32, 32>}, {pipeline_mode = #tpu.pipeline_mode<synchronous>, transform_indices = @transform_13, window_bounds = array<i64: 1, 32>}, {pipeline_mode = #tpu.pipeline_mode<synchronous>, transform_indices = @transform_14, window_bounds = array<i64: 1, 32>}, {pipeline_mode = #tpu.pipeline_mode<synchronous>, transform_indices = @transform_15, window_bounds = array<i64: 1, 32>}, {pipeline_mode = #tpu.pipeline_mode<synchronous>, transform_indices = @transform_16, window_bounds = array<i64: 32, 128>}, {pipeline_mode = #tpu.pipeline_mode<synchronous>, transform_indices = @transform_17, window_bounds = array<i64: 1, 128>}, {pipeline_mode = #tpu.pipeline_mode<synchronous>, transform_indices = @transform_18, window_bounds = array<i64: 128, 32>}, {pipeline_mode = #tpu.pipeline_mode<synchronous>, transform_indices = @transform_19, window_bounds = array<i64: 1, 32>}, {pipeline_mode = #tpu.pipeline_mode<synchronous>, transform_indices = @transform_20, window_bounds = array<i64: 1, 32>}, {pipeline_mode = #tpu.pipeline_mode<synchronous>, transform_indices = @transform_21, window_bounds = array<i64: 1, 32>}, {transform_indices = @transform_22, window_bounds = array<i64: 1, 8, 32>}]} {
    %c0 = arith.constant 0 : index
    %c0_0 = arith.constant 0 : index
    %0 = vector.load %arg6[%c0, %c0_0] : memref<32x32xf32, #tpu.memory_space<vmem>>, vector<32x32xf32>
    %c0_1 = arith.constant 0 : index
    %c0_2 = arith.constant 0 : index
    %1 = vector.load %arg7[%c0_1, %c0_2] : memref<32x32xf32, #tpu.memory_space<vmem>>, vector<32x32xf32>
    %c0_3 = arith.constant 0 : index
    %c0_4 = arith.constant 0 : index
    %2 = vector.load %arg8[%c0_3, %c0_4] : memref<32x32xf32, #tpu.memory_space<vmem>>, vector<32x32xf32>
    %c0_5 = arith.constant 0 : index
    %c0_6 = arith.constant 0 : index
    %3 = vector.load %arg9[%c0_5, %c0_6] : memref<32x32xf32, #tpu.memory_space<vmem>>, vector<32x32xf32>
    %c0_7 = arith.constant 0 : index
    %c0_8 = arith.constant 0 : index
    %4 = vector.load %arg10[%c0_7, %c0_8] : memref<1x32xf32, #tpu.memory_space<vmem>>, vector<1x32xf32>
    %c0_9 = arith.constant 0 : index
    %c0_10 = arith.constant 0 : index
    %5 = vector.load %arg11[%c0_9, %c0_10] : memref<1x32xf32, #tpu.memory_space<vmem>>, vector<1x32xf32>
    %c0_11 = arith.constant 0 : index
    %c0_12 = arith.constant 0 : index
    %6 = vector.load %arg12[%c0_11, %c0_12] : memref<1x32xf32, #tpu.memory_space<vmem>>, vector<1x32xf32>
    %c0_13 = arith.constant 0 : index
    %c0_14 = arith.constant 0 : index
    %7 = vector.load %arg13[%c0_13, %c0_14] : memref<32x32xf32, #tpu.memory_space<vmem>>, vector<32x32xf32>
    %c0_15 = arith.constant 0 : index
    %c0_16 = arith.constant 0 : index
    %8 = vector.load %arg14[%c0_15, %c0_16] : memref<32x32xf32, #tpu.memory_space<vmem>>, vector<32x32xf32>
    %c0_17 = arith.constant 0 : index
    %c0_18 = arith.constant 0 : index
    %9 = vector.load %arg15[%c0_17, %c0_18] : memref<32x32xf32, #tpu.memory_space<vmem>>, vector<32x32xf32>
    %c0_19 = arith.constant 0 : index
    %c0_20 = arith.constant 0 : index
    %10 = vector.load %arg16[%c0_19, %c0_20] : memref<32x32xf32, #tpu.memory_space<vmem>>, vector<32x32xf32>
    %c0_21 = arith.constant 0 : index
    %c0_22 = arith.constant 0 : index
    %11 = vector.load %arg17[%c0_21, %c0_22] : memref<1x32xf32, #tpu.memory_space<vmem>>, vector<1x32xf32>
    %c0_23 = arith.constant 0 : index
    %c0_24 = arith.constant 0 : index
    %12 = vector.load %arg18[%c0_23, %c0_24] : memref<1x32xf32, #tpu.memory_space<vmem>>, vector<1x32xf32>
    %c0_25 = arith.constant 0 : index
    %c0_26 = arith.constant 0 : index
    %13 = vector.load %arg19[%c0_25, %c0_26] : memref<1x32xf32, #tpu.memory_space<vmem>>, vector<1x32xf32>
    %c0_27 = arith.constant 0 : index
    %c0_28 = arith.constant 0 : index
    %14 = vector.load %arg20[%c0_27, %c0_28] : memref<32x128xf32, #tpu.memory_space<vmem>>, vector<32x128xf32>
    %c0_29 = arith.constant 0 : index
    %c0_30 = arith.constant 0 : index
    %15 = vector.load %arg21[%c0_29, %c0_30] : memref<1x128xf32, #tpu.memory_space<vmem>>, vector<1x128xf32>
    %c0_31 = arith.constant 0 : index
    %c0_32 = arith.constant 0 : index
    %16 = vector.load %arg22[%c0_31, %c0_32] : memref<128x32xf32, #tpu.memory_space<vmem>>, vector<128x32xf32>
    %c0_33 = arith.constant 0 : index
    %c0_34 = arith.constant 0 : index
    %17 = vector.load %arg23[%c0_33, %c0_34] : memref<1x32xf32, #tpu.memory_space<vmem>>, vector<1x32xf32>
    %c0_35 = arith.constant 0 : index
    %c0_36 = arith.constant 0 : index
    %18 = vector.load %arg24[%c0_35, %c0_36] : memref<1x32xf32, #tpu.memory_space<vmem>>, vector<1x32xf32>
    %c0_37 = arith.constant 0 : index
    %c0_38 = arith.constant 0 : index
    %19 = vector.load %arg25[%c0_37, %c0_38] : memref<1x32xf32, #tpu.memory_space<vmem>>, vector<1x32xf32>
    %c8_i32 = arith.constant 8 : i32
    %20 = arith.muli %arg1, %c8_i32 : i32
    %21 = tpu.assume_multiple %20, 8 : i32
    %22 = arith.index_cast %arg0 : i32 to index
    %23 = memref.load %arg2[%22] : memref<2xi32, #tpu.memory_space<smem>>
    %24 = arith.index_cast %arg0 : i32 to index
    %25 = memref.load %arg3[%24] : memref<2xi32, #tpu.memory_space<smem>>
    %c0_39 = arith.constant 0 : index
    %c0_40 = arith.constant 0 : index
    %c0_41 = arith.constant 0 : index
    %26 = vector.load %arg4[%c0_39, %c0_40, %c0_41] : memref<1x8x32xf32, #tpu.memory_space<vmem>>, vector<1x8x32xf32>
    %27 = vector.shape_cast %26 : vector<1x8x32xf32> to vector<8x32xf32>
    %c0_42 = arith.constant 0 : index
    %28 = arith.index_cast %21 : i32 to index
    %c0_43 = arith.constant 0 : index
    %29 = vector.load %arg4[%c0_42, %28, %c0_43] : memref<1x8x32xf32, #tpu.memory_space<vmem>>, vector<1x8x32xf32>
    %30 = vector.shape_cast %29 : vector<1x8x32xf32> to vector<8x32xf32>
    %c0_44 = arith.constant 0 : index
    %c0_45 = arith.constant 0 : index
    %c0_46 = arith.constant 0 : index
    %31 = vector.load %arg5[%c0_44, %c0_45, %c0_46] : memref<1x8x32xf32, #tpu.memory_space<vmem>>, vector<1x8x32xf32>
    %32 = vector.shape_cast %31 : vector<1x8x32xf32> to vector<8x32xf32>
    %cst = arith.constant dense<0.000000e+00> : vector<8x32xf32>
    %33 = tpu.matmul %30, %0, %cst {dimension_numbers = #tpu.dot_dimension_numbers<[1], [0], [0], [1], [0, 0, 1, 1], [], []>} : vector<8x32xf32>, vector<32x32xf32>, vector<8x32xf32> -> vector<8x32xf32>
    %cst_47 = arith.constant 2.500000e-01 : f32
    %34 = vector.broadcast %cst_47 : f32 to vector<8x32xf32>
    %35 = arith.mulf %33, %34 : vector<8x32xf32>
    %cst_48 = arith.constant dense<0.000000e+00> : vector<8x32xf32>
    %36 = tpu.matmul %27, %1, %cst_48 {dimension_numbers = #tpu.dot_dimension_numbers<[1], [0], [0], [1], [0, 0, 1, 1], [], []>} : vector<8x32xf32>, vector<32x32xf32>, vector<8x32xf32> -> vector<8x32xf32>
    %cst_49 = arith.constant dense<0.000000e+00> : vector<8x32xf32>
    %37 = tpu.matmul %27, %2, %cst_49 {dimension_numbers = #tpu.dot_dimension_numbers<[1], [0], [0], [1], [0, 0, 1, 1], [], []>} : vector<8x32xf32>, vector<32x32xf32>, vector<8x32xf32> -> vector<8x32xf32>
    %38 = tpu.iota {dimensions = array<i32: 1>} : vector<8x8xi32>
    %39 = vector.broadcast %23 : i32 to vector<8x8xi32>
    %40 = arith.cmpi slt, %38, %39 : vector<8x8xi32>
    %41 = tpu.iota {dimensions = array<i32: 0>} : vector<8x8xi32>
    %42 = vector.broadcast %21 : i32 to vector<8x8xi32>
    %43 = arith.addi %41, %42 : vector<8x8xi32>
    %44 = arith.cmpi sge, %43, %38 : vector<8x8xi32>
    %45 = arith.andi %40, %44 : vector<8x8xi1>
    %46 = vector.extract_strided_slice %35 {offsets = [0, 0], sizes = [8, 16], strides = [1, 1]} : vector<8x32xf32> to vector<8x16xf32>
    %47 = vector.extract_strided_slice %36 {offsets = [0, 0], sizes = [8, 16], strides = [1, 1]} : vector<8x32xf32> to vector<8x16xf32>
    %48 = vector.extract_strided_slice %37 {offsets = [0, 0], sizes = [8, 16], strides = [1, 1]} : vector<8x32xf32> to vector<8x16xf32>
    %cst_50 = arith.constant dense<0.000000e+00> : vector<8x8xf32>
    %49 = tpu.matmul %46, %47, %cst_50 {dimension_numbers = #tpu.dot_dimension_numbers<[1], [1], [0], [0], [0, 0, 1, 0], [], []>} : vector<8x16xf32>, vector<8x16xf32>, vector<8x8xf32> -> vector<8x8xf32>
    %cst_51 = arith.constant 0.000000e+00 : f32
    %50 = vector.broadcast %cst_51 : f32 to vector<8x8xf32>
    %51 = arith.cmpf one, %49, %50 : vector<8x8xf32>
    %52 = arith.andi %45, %51 : vector<8x8xi1>
    %cst_52 = arith.constant -1.000000e+20 : f32
    %53 = vector.broadcast %cst_52 : f32 to vector<8x8xf32>
    %54 = arith.select %52, %49, %53 : vector<8x8xi1>, vector<8x8xf32>
    %cst_53 = arith.constant dense<0xFF800000> : vector<8xf32>
    %55 = vector.multi_reduction <maximumf>, %54, %cst_53 [1] : vector<8x8xf32> to vector<8xf32>
    %56 = vector.shape_cast %55 : vector<8xf32> to vector<8x1xf32>
    %57 = vector.broadcast %56 : vector<8x1xf32> to vector<8x8xf32>
    %58 = arith.subf %54, %57 : vector<8x8xf32>
    %59 = math.exp %58 : vector<8x8xf32>
    %cst_54 = arith.constant dense<0.000000e+00> : vector<8xf32>
    %60 = vector.multi_reduction <add>, %59, %cst_54 [1] : vector<8x8xf32> to vector<8xf32>
    %61 = vector.shape_cast %60 : vector<8xf32> to vector<8x1xf32>
    %62 = tpu.reciprocal %61 {approx = true} : vector<8x1xf32> -> vector<8x1xf32>
    %63 = arith.mulf %61, %62 : vector<8x1xf32>
    %cst_55 = arith.constant 2.000000e+00 : f32
    %64 = vector.broadcast %cst_55 : f32 to vector<8x1xf32>
    %65 = arith.subf %64, %63 : vector<8x1xf32>
    %66 = arith.mulf %62, %65 : vector<8x1xf32>
    %67 = vector.broadcast %66 : vector<8x1xf32> to vector<8x8xf32>
    %68 = arith.mulf %59, %67 : vector<8x8xf32>
    %cst_56 = arith.constant dense<0.000000e+00> : vector<8x16xf32>
    %69 = tpu.matmul %68, %48, %cst_56 {dimension_numbers = #tpu.dot_dimension_numbers<[1], [0], [0], [1], [0, 0, 1, 1], [], []>} : vector<8x8xf32>, vector<8x16xf32>, vector<8x16xf32> -> vector<8x16xf32>
    %70 = vector.extract_strided_slice %35 {offsets = [0, 16], sizes = [8, 16], strides = [1, 1]} : vector<8x32xf32> to vector<8x16xf32>
    %71 = vector.extract_strided_slice %36 {offsets = [0, 16], sizes = [8, 16], strides = [1, 1]} : vector<8x32xf32> to vector<8x16xf32>
    %72 = vector.extract_strided_slice %37 {offsets = [0, 16], sizes = [8, 16], strides = [1, 1]} : vector<8x32xf32> to vector<8x16xf32>
    %cst_57 = arith.constant dense<0.000000e+00> : vector<8x8xf32>
    %73 = tpu.matmul %70, %71, %cst_57 {dimension_numbers = #tpu.dot_dimension_numbers<[1], [1], [0], [0], [0, 0, 1, 0], [], []>} : vector<8x16xf32>, vector<8x16xf32>, vector<8x8xf32> -> vector<8x8xf32>
    %cst_58 = arith.constant 0.000000e+00 : f32
    %74 = vector.broadcast %cst_58 : f32 to vector<8x8xf32>
    %75 = arith.cmpf one, %73, %74 : vector<8x8xf32>
    %76 = arith.andi %45, %75 : vector<8x8xi1>
    %cst_59 = arith.constant -1.000000e+20 : f32
    %77 = vector.broadcast %cst_59 : f32 to vector<8x8xf32>
    %78 = arith.select %76, %73, %77 : vector<8x8xi1>, vector<8x8xf32>
    %cst_60 = arith.constant dense<0xFF800000> : vector<8xf32>
    %79 = vector.multi_reduction <maximumf>, %78, %cst_60 [1] : vector<8x8xf32> to vector<8xf32>
    %80 = vector.shape_cast %79 : vector<8xf32> to vector<8x1xf32>
    %81 = vector.broadcast %80 : vector<8x1xf32> to vector<8x8xf32>
    %82 = arith.subf %78, %81 : vector<8x8xf32>
    %83 = math.exp %82 : vector<8x8xf32>
    %cst_61 = arith.constant dense<0.000000e+00> : vector<8xf32>
    %84 = vector.multi_reduction <add>, %83, %cst_61 [1] : vector<8x8xf32> to vector<8xf32>
    %85 = vector.shape_cast %84 : vector<8xf32> to vector<8x1xf32>
    %86 = tpu.reciprocal %85 {approx = true} : vector<8x1xf32> -> vector<8x1xf32>
    %87 = arith.mulf %85, %86 : vector<8x1xf32>
    %cst_62 = arith.constant 2.000000e+00 : f32
    %88 = vector.broadcast %cst_62 : f32 to vector<8x1xf32>
    %89 = arith.subf %88, %87 : vector<8x1xf32>
    %90 = arith.mulf %86, %89 : vector<8x1xf32>
    %91 = vector.broadcast %90 : vector<8x1xf32> to vector<8x8xf32>
    %92 = arith.mulf %83, %91 : vector<8x8xf32>
    %cst_63 = arith.constant dense<0.000000e+00> : vector<8x16xf32>
    %93 = tpu.matmul %92, %72, %cst_63 {dimension_numbers = #tpu.dot_dimension_numbers<[1], [0], [0], [1], [0, 0, 1, 1], [], []>} : vector<8x8xf32>, vector<8x16xf32>, vector<8x16xf32> -> vector<8x16xf32>
    %94 = tpu.concatenate %69, %93 in 1 : vector<8x16xf32>, vector<8x16xf32> -> vector<8x32xf32>
    %cst_64 = arith.constant dense<0.000000e+00> : vector<8x32xf32>
    %95 = tpu.matmul %94, %3, %cst_64 {dimension_numbers = #tpu.dot_dimension_numbers<[1], [0], [0], [1], [0, 0, 1, 1], [], []>} : vector<8x32xf32>, vector<32x32xf32>, vector<8x32xf32> -> vector<8x32xf32>
    %96 = vector.broadcast %4 : vector<1x32xf32> to vector<8x32xf32>
    %97 = arith.addf %95, %96 : vector<8x32xf32>
    %98 = arith.addf %97, %30 : vector<8x32xf32>
    %cst_65 = arith.constant dense<0.000000e+00> : vector<8xf32>
    %99 = vector.multi_reduction <add>, %98, %cst_65 [1] : vector<8x32xf32> to vector<8xf32>
    %100 = vector.shape_cast %99 : vector<8xf32> to vector<8x1xf32>
    %cst_66 = arith.constant 3.200000e+01 : f32
    %101 = vector.broadcast %cst_66 : f32 to vector<8x1xf32>
    %102 = arith.divf %100, %101 : vector<8x1xf32>
    %103 = vector.broadcast %102 : vector<8x1xf32> to vector<8x32xf32>
    %104 = arith.subf %98, %103 : vector<8x32xf32>
    %105 = arith.mulf %104, %104 : vector<8x32xf32>
    %cst_67 = arith.constant dense<0.000000e+00> : vector<8xf32>
    %106 = vector.multi_reduction <add>, %105, %cst_67 [1] : vector<8x32xf32> to vector<8xf32>
    %107 = vector.shape_cast %106 : vector<8xf32> to vector<8x1xf32>
    %cst_68 = arith.constant 3.200000e+01 : f32
    %108 = vector.broadcast %cst_68 : f32 to vector<8x1xf32>
    %109 = arith.divf %107, %108 : vector<8x1xf32>
    %110 = vector.broadcast %102 : vector<8x1xf32> to vector<8x32xf32>
    %111 = arith.subf %98, %110 : vector<8x32xf32>
    %cst_69 = arith.constant 9.99999997E-7 : f32
    %112 = vector.broadcast %cst_69 : f32 to vector<8x1xf32>
    %113 = arith.addf %109, %112 : vector<8x1xf32>
    %114 = math.rsqrt %113 : vector<8x1xf32>
    %115 = vector.broadcast %114 : vector<8x1xf32> to vector<8x32xf32>
    %116 = arith.mulf %111, %115 : vector<8x32xf32>
    %117 = vector.broadcast %5 : vector<1x32xf32> to vector<8x32xf32>
    %118 = arith.mulf %116, %117 : vector<8x32xf32>
    %119 = vector.broadcast %6 : vector<1x32xf32> to vector<8x32xf32>
    %120 = arith.addf %118, %119 : vector<8x32xf32>
    %cst_70 = arith.constant dense<0.000000e+00> : vector<8x32xf32>
    %121 = tpu.matmul %120, %7, %cst_70 {dimension_numbers = #tpu.dot_dimension_numbers<[1], [0], [0], [1], [0, 0, 1, 1], [], []>} : vector<8x32xf32>, vector<32x32xf32>, vector<8x32xf32> -> vector<8x32xf32>
    %cst_71 = arith.constant 2.500000e-01 : f32
    %122 = vector.broadcast %cst_71 : f32 to vector<8x32xf32>
    %123 = arith.mulf %121, %122 : vector<8x32xf32>
    %cst_72 = arith.constant dense<0.000000e+00> : vector<8x32xf32>
    %124 = tpu.matmul %32, %8, %cst_72 {dimension_numbers = #tpu.dot_dimension_numbers<[1], [0], [0], [1], [0, 0, 1, 1], [], []>} : vector<8x32xf32>, vector<32x32xf32>, vector<8x32xf32> -> vector<8x32xf32>
    %cst_73 = arith.constant dense<0.000000e+00> : vector<8x32xf32>
    %125 = tpu.matmul %32, %9, %cst_73 {dimension_numbers = #tpu.dot_dimension_numbers<[1], [0], [0], [1], [0, 0, 1, 1], [], []>} : vector<8x32xf32>, vector<32x32xf32>, vector<8x32xf32> -> vector<8x32xf32>
    %126 = tpu.iota {dimensions = array<i32: 1>} : vector<8x8xi32>
    %127 = vector.broadcast %25 : i32 to vector<8x8xi32>
    %128 = arith.cmpi slt, %126, %127 : vector<8x8xi32>
    %129 = vector.extract_strided_slice %123 {offsets = [0, 0], sizes = [8, 16], strides = [1, 1]} : vector<8x32xf32> to vector<8x16xf32>
    %130 = vector.extract_strided_slice %124 {offsets = [0, 0], sizes = [8, 16], strides = [1, 1]} : vector<8x32xf32> to vector<8x16xf32>
    %131 = vector.extract_strided_slice %125 {offsets = [0, 0], sizes = [8, 16], strides = [1, 1]} : vector<8x32xf32> to vector<8x16xf32>
    %cst_74 = arith.constant dense<0.000000e+00> : vector<8x8xf32>
    %132 = tpu.matmul %129, %130, %cst_74 {dimension_numbers = #tpu.dot_dimension_numbers<[1], [1], [0], [0], [0, 0, 1, 0], [], []>} : vector<8x16xf32>, vector<8x16xf32>, vector<8x8xf32> -> vector<8x8xf32>
    %cst_75 = arith.constant -1.000000e+20 : f32
    %133 = vector.broadcast %cst_75 : f32 to vector<8x8xf32>
    %134 = arith.select %128, %132, %133 : vector<8x8xi1>, vector<8x8xf32>
    %cst_76 = arith.constant dense<0xFF800000> : vector<8xf32>
    %135 = vector.multi_reduction <maximumf>, %134, %cst_76 [1] : vector<8x8xf32> to vector<8xf32>
    %136 = vector.shape_cast %135 : vector<8xf32> to vector<8x1xf32>
    %137 = vector.broadcast %136 : vector<8x1xf32> to vector<8x8xf32>
    %138 = arith.subf %134, %137 : vector<8x8xf32>
    %139 = math.exp %138 : vector<8x8xf32>
    %cst_77 = arith.constant dense<0.000000e+00> : vector<8xf32>
    %140 = vector.multi_reduction <add>, %139, %cst_77 [1] : vector<8x8xf32> to vector<8xf32>
    %141 = vector.shape_cast %140 : vector<8xf32> to vector<8x1xf32>
    %142 = tpu.reciprocal %141 {approx = true} : vector<8x1xf32> -> vector<8x1xf32>
    %143 = arith.mulf %141, %142 : vector<8x1xf32>
    %cst_78 = arith.constant 2.000000e+00 : f32
    %144 = vector.broadcast %cst_78 : f32 to vector<8x1xf32>
    %145 = arith.subf %144, %143 : vector<8x1xf32>
    %146 = arith.mulf %142, %145 : vector<8x1xf32>
    %147 = vector.broadcast %146 : vector<8x1xf32> to vector<8x8xf32>
    %148 = arith.mulf %139, %147 : vector<8x8xf32>
    %cst_79 = arith.constant dense<0.000000e+00> : vector<8x16xf32>
    %149 = tpu.matmul %148, %131, %cst_79 {dimension_numbers = #tpu.dot_dimension_numbers<[1], [0], [0], [1], [0, 0, 1, 1], [], []>} : vector<8x8xf32>, vector<8x16xf32>, vector<8x16xf32> -> vector<8x16xf32>
    %150 = vector.extract_strided_slice %123 {offsets = [0, 16], sizes = [8, 16], strides = [1, 1]} : vector<8x32xf32> to vector<8x16xf32>
    %151 = vector.extract_strided_slice %124 {offsets = [0, 16], sizes = [8, 16], strides = [1, 1]} : vector<8x32xf32> to vector<8x16xf32>
    %152 = vector.extract_strided_slice %125 {offsets = [0, 16], sizes = [8, 16], strides = [1, 1]} : vector<8x32xf32> to vector<8x16xf32>
    %cst_80 = arith.constant dense<0.000000e+00> : vector<8x8xf32>
    %153 = tpu.matmul %150, %151, %cst_80 {dimension_numbers = #tpu.dot_dimension_numbers<[1], [1], [0], [0], [0, 0, 1, 0], [], []>} : vector<8x16xf32>, vector<8x16xf32>, vector<8x8xf32> -> vector<8x8xf32>
    %cst_81 = arith.constant -1.000000e+20 : f32
    %154 = vector.broadcast %cst_81 : f32 to vector<8x8xf32>
    %155 = arith.select %128, %153, %154 : vector<8x8xi1>, vector<8x8xf32>
    %cst_82 = arith.constant dense<0xFF800000> : vector<8xf32>
    %156 = vector.multi_reduction <maximumf>, %155, %cst_82 [1] : vector<8x8xf32> to vector<8xf32>
    %157 = vector.shape_cast %156 : vector<8xf32> to vector<8x1xf32>
    %158 = vector.broadcast %157 : vector<8x1xf32> to vector<8x8xf32>
    %159 = arith.subf %155, %158 : vector<8x8xf32>
    %160 = math.exp %159 : vector<8x8xf32>
    %cst_83 = arith.constant dense<0.000000e+00> : vector<8xf32>
    %161 = vector.multi_reduction <add>, %160, %cst_83 [1] : vector<8x8xf32> to vector<8xf32>
    %162 = vector.shape_cast %161 : vector<8xf32> to vector<8x1xf32>
    %163 = tpu.reciprocal %162 {approx = true} : vector<8x1xf32> -> vector<8x1xf32>
    %164 = arith.mulf %162, %163 : vector<8x1xf32>
    %cst_84 = arith.constant 2.000000e+00 : f32
    %165 = vector.broadcast %cst_84 : f32 to vector<8x1xf32>
    %166 = arith.subf %165, %164 : vector<8x1xf32>
    %167 = arith.mulf %163, %166 : vector<8x1xf32>
    %168 = vector.broadcast %167 : vector<8x1xf32> to vector<8x8xf32>
    %169 = arith.mulf %160, %168 : vector<8x8xf32>
    %cst_85 = arith.constant dense<0.000000e+00> : vector<8x16xf32>
    %170 = tpu.matmul %169, %152, %cst_85 {dimension_numbers = #tpu.dot_dimension_numbers<[1], [0], [0], [1], [0, 0, 1, 1], [], []>} : vector<8x8xf32>, vector<8x16xf32>, vector<8x16xf32> -> vector<8x16xf32>
    %171 = tpu.concatenate %149, %170 in 1 : vector<8x16xf32>, vector<8x16xf32> -> vector<8x32xf32>
    %cst_86 = arith.constant dense<0.000000e+00> : vector<8x32xf32>
    %172 = tpu.matmul %171, %10, %cst_86 {dimension_numbers = #tpu.dot_dimension_numbers<[1], [0], [0], [1], [0, 0, 1, 1], [], []>} : vector<8x32xf32>, vector<32x32xf32>, vector<8x32xf32> -> vector<8x32xf32>
    %173 = vector.broadcast %11 : vector<1x32xf32> to vector<8x32xf32>
    %174 = arith.addf %172, %173 : vector<8x32xf32>
    %175 = arith.addf %174, %120 : vector<8x32xf32>
    %cst_87 = arith.constant dense<0.000000e+00> : vector<8xf32>
    %176 = vector.multi_reduction <add>, %175, %cst_87 [1] : vector<8x32xf32> to vector<8xf32>
    %177 = vector.shape_cast %176 : vector<8xf32> to vector<8x1xf32>
    %cst_88 = arith.constant 3.200000e+01 : f32
    %178 = vector.broadcast %cst_88 : f32 to vector<8x1xf32>
    %179 = arith.divf %177, %178 : vector<8x1xf32>
    %180 = vector.broadcast %179 : vector<8x1xf32> to vector<8x32xf32>
    %181 = arith.subf %175, %180 : vector<8x32xf32>
    %182 = arith.mulf %181, %181 : vector<8x32xf32>
    %cst_89 = arith.constant dense<0.000000e+00> : vector<8xf32>
    %183 = vector.multi_reduction <add>, %182, %cst_89 [1] : vector<8x32xf32> to vector<8xf32>
    %184 = vector.shape_cast %183 : vector<8xf32> to vector<8x1xf32>
    %cst_90 = arith.constant 3.200000e+01 : f32
    %185 = vector.broadcast %cst_90 : f32 to vector<8x1xf32>
    %186 = arith.divf %184, %185 : vector<8x1xf32>
    %187 = vector.broadcast %179 : vector<8x1xf32> to vector<8x32xf32>
    %188 = arith.subf %175, %187 : vector<8x32xf32>
    %cst_91 = arith.constant 9.99999997E-7 : f32
    %189 = vector.broadcast %cst_91 : f32 to vector<8x1xf32>
    %190 = arith.addf %186, %189 : vector<8x1xf32>
    %191 = math.rsqrt %190 : vector<8x1xf32>
    %192 = vector.broadcast %191 : vector<8x1xf32> to vector<8x32xf32>
    %193 = arith.mulf %188, %192 : vector<8x32xf32>
    %194 = vector.broadcast %12 : vector<1x32xf32> to vector<8x32xf32>
    %195 = arith.mulf %193, %194 : vector<8x32xf32>
    %196 = vector.broadcast %13 : vector<1x32xf32> to vector<8x32xf32>
    %197 = arith.addf %195, %196 : vector<8x32xf32>
    %cst_92 = arith.constant dense<0.000000e+00> : vector<8x128xf32>
    %198 = tpu.matmul %197, %14, %cst_92 {dimension_numbers = #tpu.dot_dimension_numbers<[1], [0], [0], [1], [0, 0, 1, 1], [], []>} : vector<8x32xf32>, vector<32x128xf32>, vector<8x128xf32> -> vector<8x128xf32>
    %199 = vector.broadcast %15 : vector<1x128xf32> to vector<8x128xf32>
    %200 = arith.addf %198, %199 : vector<8x128xf32>
    %cst_93 = arith.constant 0.000000e+00 : f32
    %201 = vector.broadcast %cst_93 : f32 to vector<8x128xf32>
    %202 = arith.maximumf %200, %201 : vector<8x128xf32>
    %cst_94 = arith.constant dense<0.000000e+00> : vector<8x32xf32>
    %203 = tpu.matmul %202, %16, %cst_94 {dimension_numbers = #tpu.dot_dimension_numbers<[1], [0], [0], [1], [0, 0, 1, 1], [], []>} : vector<8x128xf32>, vector<128x32xf32>, vector<8x32xf32> -> vector<8x32xf32>
    %204 = vector.broadcast %17 : vector<1x32xf32> to vector<8x32xf32>
    %205 = arith.addf %203, %204 : vector<8x32xf32>
    %206 = arith.addf %205, %197 : vector<8x32xf32>
    %cst_95 = arith.constant dense<0.000000e+00> : vector<8xf32>
    %207 = vector.multi_reduction <add>, %206, %cst_95 [1] : vector<8x32xf32> to vector<8xf32>
    %208 = vector.shape_cast %207 : vector<8xf32> to vector<8x1xf32>
    %cst_96 = arith.constant 3.200000e+01 : f32
    %209 = vector.broadcast %cst_96 : f32 to vector<8x1xf32>
    %210 = arith.divf %208, %209 : vector<8x1xf32>
    %211 = vector.broadcast %210 : vector<8x1xf32> to vector<8x32xf32>
    %212 = arith.subf %206, %211 : vector<8x32xf32>
    %213 = arith.mulf %212, %212 : vector<8x32xf32>
    %cst_97 = arith.constant dense<0.000000e+00> : vector<8xf32>
    %214 = vector.multi_reduction <add>, %213, %cst_97 [1] : vector<8x32xf32> to vector<8xf32>
    %215 = vector.shape_cast %214 : vector<8xf32> to vector<8x1xf32>
    %cst_98 = arith.constant 3.200000e+01 : f32
    %216 = vector.broadcast %cst_98 : f32 to vector<8x1xf32>
    %217 = arith.divf %215, %216 : vector<8x1xf32>
    %218 = vector.broadcast %210 : vector<8x1xf32> to vector<8x32xf32>
    %219 = arith.subf %206, %218 : vector<8x32xf32>
    %cst_99 = arith.constant 9.99999997E-7 : f32
    %220 = vector.broadcast %cst_99 : f32 to vector<8x1xf32>
    %221 = arith.addf %217, %220 : vector<8x1xf32>
    %222 = math.rsqrt %221 : vector<8x1xf32>
    %223 = vector.broadcast %222 : vector<8x1xf32> to vector<8x32xf32>
    %224 = arith.mulf %219, %223 : vector<8x32xf32>
    %225 = vector.broadcast %18 : vector<1x32xf32> to vector<8x32xf32>
    %226 = arith.mulf %224, %225 : vector<8x32xf32>
    %227 = vector.broadcast %19 : vector<1x32xf32> to vector<8x32xf32>
    %228 = arith.addf %226, %227 : vector<8x32xf32>
    %c0_100 = arith.constant 0 : index
    %c0_101 = arith.constant 0 : index
    %c0_102 = arith.constant 0 : index
    %229 = vector.load %arg26[%c0_100, %c0_101, %c0_102] : memref<1x8x32xf32, #tpu.memory_space<vmem>>, vector<1x8x32xf32>
    %230 = vector.shape_cast %229 : vector<1x8x32xf32> to vector<8x32xf32>
    %231 = vector.shape_cast %228 : vector<8x32xf32> to vector<1x8x32xf32>
    tpu.vector_store %arg26[%c0_100, %c0_101, %c0_102], %231 {strides = array<i32>} : memref<1x8x32xf32, #tpu.memory_space<vmem>>, vector<1x8x32xf32>,
    return
  }
  func.func @transform_0(%arg0: i32, %arg1: i32, %arg2: memref<2xi32, #tpu.memory_space<smem>>, %arg3: memref<2xi32, #tpu.memory_space<smem>>) -> (i32, i32, i32) {
    %c0_i32 = arith.constant 0 : i32
    %c0_i32_0 = arith.constant 0 : i32
    %c0_i32_1 = arith.constant 0 : i32
    return %arg0, %c0_i32, %c0_i32_0 : i32, i32, i32
  }
  func.func @transform_1(%arg0: i32, %arg1: i32, %arg2: memref<2xi32, #tpu.memory_space<smem>>, %arg3: memref<2xi32, #tpu.memory_space<smem>>) -> (i32, i32, i32) {
    %c0_i32 = arith.constant 0 : i32
    %c0_i32_0 = arith.constant 0 : i32
    %c0_i32_1 = arith.constant 0 : i32
    return %arg0, %c0_i32, %c0_i32_0 : i32, i32, i32
  }
  func.func @transform_2(%arg0: i32, %arg1: i32, %arg2: memref<2xi32, #tpu.memory_space<smem>>, %arg3: memref<2xi32, #tpu.memory_space<smem>>) -> (i32, i32) {
    %c0_i32 = arith.constant 0 : i32
    %c0_i32_0 = arith.constant 0 : i32
    %c0_i32_1 = arith.constant 0 : i32
    return %c0_i32, %c0_i32_0 : i32, i32
  }
  func.func @transform_3(%arg0: i32, %arg1: i32, %arg2: memref<2xi32, #tpu.memory_space<smem>>, %arg3: memref<2xi32, #tpu.memory_space<smem>>) -> (i32, i32) {
    %c0_i32 = arith.constant 0 : i32
    %c0_i32_0 = arith.constant 0 : i32
    %c0_i32_1 = arith.constant 0 : i32
    return %c0_i32, %c0_i32_0 : i32, i32
  }
  func.func @transform_4(%arg0: i32, %arg1: i32, %arg2: memref<2xi32, #tpu.memory_space<smem>>, %arg3: memref<2xi32, #tpu.memory_space<smem>>) -> (i32, i32) {
    %c0_i32 = arith.constant 0 : i32
    %c0_i32_0 = arith.constant 0 : i32
    %c0_i32_1 = arith.constant 0 : i32
    return %c0_i32, %c0_i32_0 : i32, i32
  }
  func.func @transform_5(%arg0: i32, %arg1: i32, %arg2: memref<2xi32, #tpu.memory_space<smem>>, %arg3: memref<2xi32, #tpu.memory_space<smem>>) -> (i32, i32) {
    %c0_i32 = arith.constant 0 : i32
    %c0_i32_0 = arith.constant 0 : i32
    %c0_i32_1 = arith.constant 0 : i32
    return %c0_i32, %c0_i32_0 : i32, i32
  }
  func.func @transform_6(%arg0: i32, %arg1: i32, %arg2: memref<2xi32, #tpu.memory_space<smem>>, %arg3: memref<2xi32, #tpu.memory_space<smem>>) -> (i32, i32) {
    %c0_i32 = arith.constant 0 : i32
    %c0_i32_0 = arith.constant 0 : i32
    %c0_i32_1 = arith.constant 0 : i32
    return %c0_i32, %c0_i32_0 : i32, i32
  }
  func.func @transform_7(%arg0: i32, %arg1: i32, %arg2: memref<2xi32, #tpu.memory_space<smem>>, %arg3: memref<2xi32, #tpu.memory_space<smem>>) -> (i32, i32) {
    %c0_i32 = arith.constant 0 : i32
    %c0_i32_0 = arith.constant 0 : i32
    %c0_i32_1 = arith.constant 0 : i32
    return %c0_i32, %c0_i32_0 : i32, i32
  }
  func.func @transform_8(%arg0: i32, %arg1: i32, %arg2: memref<2xi32, #tpu.memory_space<smem>>, %arg3: memref<2xi32, #tpu.memory_space<smem>>) -> (i32, i32) {
    %c0_i32 = arith.constant 0 : i32
    %c0_i32_0 = arith.constant 0 : i32
    %c0_i32_1 = arith.constant 0 : i32
    return %c0_i32, %c0_i32_0 : i32, i32
  }
  func.func @transform_9(%arg0: i32, %arg1: i32, %arg2: memref<2xi32, #tpu.memory_space<smem>>, %arg3: memref<2xi32, #tpu.memory_space<smem>>) -> (i32, i32) {
    %c0_i32 = arith.constant 0 : i32
    %c0_i32_0 = arith.constant 0 : i32
    %c0_i32_1 = arith.constant 0 : i32
    return %c0_i32, %c0_i32_0 : i32, i32
  }
  func.func @transform_10(%arg0: i32, %arg1: i32, %arg2: memref<2xi32, #tpu.memory_space<smem>>, %arg3: memref<2xi32, #tpu.memory_space<smem>>) -> (i32, i32) {
    %c0_i32 = arith.constant 0 : i32
    %c0_i32_0 = arith.constant 0 : i32
    %c0_i32_1 = arith.constant 0 : i32
    return %c0_i32, %c0_i32_0 : i32, i32
  }
  func.func @transform_11(%arg0: i32, %arg1: i32, %arg2: memref<2xi32, #tpu.memory_space<smem>>, %arg3: memref<2xi32, #tpu.memory_space<smem>>) -> (i32, i32) {
    %c0_i32 = arith.constant 0 : i32
    %c0_i32_0 = arith.constant 0 : i32
    %c0_i32_1 = arith.constant 0 : i32
    return %c0_i32, %c0_i32_0 : i32, i32
  }
  func.func @transform_12(%arg0: i32, %arg1: i32, %arg2: memref<2xi32, #tpu.memory_space<smem>>, %arg3: memref<2xi32, #tpu.memory_space<smem>>) -> (i32, i32) {
    %c0_i32 = arith.constant 0 : i32
    %c0_i32_0 = arith.constant 0 : i32
    %c0_i32_1 = arith.constant 0 : i32
    return %c0_i32, %c0_i32_0 : i32, i32
  }
  func.func @transform_13(%arg0: i32, %arg1: i32, %arg2: memref<2xi32, #tpu.memory_space<smem>>, %arg3: memref<2xi32, #tpu.memory_space<smem>>) -> (i32, i32) {
    %c0_i32 = arith.constant 0 : i32
    %c0_i32_0 = arith.constant 0 : i32
    %c0_i32_1 = arith.constant 0 : i32
    return %c0_i32, %c0_i32_0 : i32, i32
  }
  func.func @transform_14(%arg0: i32, %arg1: i32, %arg2: memref<2xi32, #tpu.memory_space<smem>>, %arg3: memref<2xi32, #tpu.memory_space<smem>>) -> (i32, i32) {
    %c0_i32 = arith.constant 0 : i32
    %c0_i32_0 = arith.constant 0 : i32
    %c0_i32_1 = arith.constant 0 : i32
    return %c0_i32, %c0_i32_0 : i32, i32
  }
  func.func @transform_15(%arg0: i32, %arg1: i32, %arg2: memref<2xi32, #tpu.memory_space<smem>>, %arg3: memref<2xi32, #tpu.memory_space<smem>>) -> (i32, i32) {
    %c0_i32 = arith.constant 0 : i32
    %c0_i32_0 = arith.constant 0 : i32
    %c0_i32_1 = arith.constant 0 : i32
    return %c0_i32, %c0_i32_0 : i32, i32
  }
  func.func @transform_16(%arg0: i32, %arg1: i32, %arg2: memref<2xi32, #tpu.memory_space<smem>>, %arg3: memref<2xi32, #tpu.memory_space<smem>>) -> (i32, i32) {
    %c0_i32 = arith.constant 0 : i32
    %c0_i32_0 = arith.constant 0 : i32
    %c0_i32_1 = arith.constant 0 : i32
    return %c0_i32, %c0_i32_0 : i32, i32
  }
  func.func @transform_17(%arg0: i32, %arg1: i32, %arg2: memref<2xi32, #tpu.memory_space<smem>>, %arg3: memref<2xi32, #tpu.memory_space<smem>>) -> (i32, i32) {
    %c0_i32 = arith.constant 0 : i32
    %c0_i32_0 = arith.constant 0 : i32
    %c0_i32_1 = arith.constant 0 : i32
    return %c0_i32, %c0_i32_0 : i32, i32
  }
  func.func @transform_18(%arg0: i32, %arg1: i32, %arg2: memref<2xi32, #tpu.memory_space<smem>>, %arg3: memref<2xi32, #tpu.memory_space<smem>>) -> (i32, i32) {
    %c0_i32 = arith.constant 0 : i32
    %c0_i32_0 = arith.constant 0 : i32
    %c0_i32_1 = arith.constant 0 : i32
    return %c0_i32, %c0_i32_0 : i32, i32
  }
  func.func @transform_19(%arg0: i32, %arg1: i32, %arg2: memref<2xi32, #tpu.memory_space<smem>>, %arg3: memref<2xi32, #tpu.memory_space<smem>>) -> (i32, i32) {
    %c0_i32 = arith.constant 0 : i32
    %c0_i32_0 = arith.constant 0 : i32
    %c0_i32_1 = arith.constant 0 : i32
    return %c0_i32, %c0_i32_0 : i32, i32
  }
  func.func @transform_20(%arg0: i32, %arg1: i32, %arg2: memref<2xi32, #tpu.memory_space<smem>>, %arg3: memref<2xi32, #tpu.memory_space<smem>>) -> (i32, i32) {
    %c0_i32 = arith.constant 0 : i32
    %c0_i32_0 = arith.constant 0 : i32
    %c0_i32_1 = arith.constant 0 : i32
    return %c0_i32, %c0_i32_0 : i32, i32
  }
  func.func @transform_21(%arg0: i32, %arg1: i32, %arg2: memref<2xi32, #tpu.memory_space<smem>>, %arg3: memref<2xi32, #tpu.memory_space<smem>>) -> (i32, i32) {
    %c0_i32 = arith.constant 0 : i32
    %c0_i32_0 = arith.constant 0 : i32
    %c0_i32_1 = arith.constant 0 : i32
    return %c0_i32, %c0_i32_0 : i32, i32
  }
  func.func @transform_22(%arg0: i32, %arg1: i32, %arg2: memref<2xi32, #tpu.memory_space<smem>>, %arg3: memref<2xi32, #tpu.memory_space<smem>>) -> (i32, i32, i32) {
    %c0_i32 = arith.constant 0 : i32
    %c0_i32_0 = arith.constant 0 : i32
    return %arg0, %arg1, %c0_i32 : i32, i32, i32
  }
}

</mosaic_0001>

<llo_original>
// kernel: tpu_custom_call.1
$region0: #{tpu_custom_call.1}
  #allocation0 [shape = 'u32[]', space=smem, size = 0x4, offset = 0x4, fixed_abs, tag = 'smem constant byte address 0x4 - core index']
  #allocation1 [shape = 'u32[72,128]{1,0:T(1,128)}', space=vmem, size = 0x9000, scoped, tag = 'internal scratch']
  #allocation2 [shape = 's32[1]{0}', space=sflag, size = 0x4, scoped, tag = 'scoped memory for tpu_custom_call.1']
  #allocation3 [shape = 'u8[512]{0}', space=smem, size = 0x200, scoped, tag = 'prefetched SMEM operand 0']
  #allocation4 [shape = 'u8[512]{0}', space=smem, size = 0x200, scoped, tag = 'prefetched SMEM operand 1']
  %s0 = inlined_call_operand.hbm [shape: s32[2], index: 0, kind: input, shape index: {}]
  %s1 = inlined_call_operand.hbm [shape: s32[2], index: 1, kind: input, shape index: {}]
  %s2 = inlined_call_operand.hbm [shape: f32[2,8,32], index: 2, kind: input, shape index: {}]
  %s3 = inlined_call_operand.hbm [shape: f32[2,8,32], index: 3, kind: input, shape index: {}]
  %s4 = inlined_call_operand.vmem [shape: f32[32,32], index: 4, kind: input, shape index: {}]
  %s5 = inlined_call_operand.vmem [shape: f32[32,32], index: 5, kind: input, shape index: {}]
  %s6 = inlined_call_operand.vmem [shape: f32[32,32], index: 6, kind: input, shape index: {}]
  %s7 = inlined_call_operand.vmem [shape: f32[32,32], index: 7, kind: input, shape index: {}]
  %s8 = inlined_call_operand.vmem [shape: f32[1,32], index: 8, kind: input, shape index: {}]
  %s9 = inlined_call_operand.vmem [shape: f32[1,32], index: 9, kind: input, shape index: {}]
  %s10 = inlined_call_operand.vmem [shape: f32[1,32], index: 10, kind: input, shape index: {}]
  %s11 = inlined_call_operand.vmem [shape: f32[32,32], index: 11, kind: input, shape index: {}]
  %s12 = inlined_call_operand.hbm [shape: f32[32,32], index: 12, kind: input, shape index: {}]
  %s13 = inlined_call_operand.hbm [shape: f32[32,32], index: 13, kind: input, shape index: {}]
  %s14 = inlined_call_operand.hbm [shape: f32[32,32], index: 14, kind: input, shape index: {}]
  %s15 = inlined_call_operand.vmem [shape: f32[1,32], index: 15, kind: input, shape index: {}]
  %s16 = inlined_call_operand.vmem [shape: f32[1,32], index: 16, kind: input, shape index: {}]
  %s17 = inlined_call_operand.vmem [shape: f32[1,32], index: 17, kind: input, shape index: {}]
  %s18 = inlined_call_operand.hbm [shape: f32[32,128], index: 18, kind: input, shape index: {}]
  %s19 = inlined_call_operand.vmem [shape: f32[1,128], index: 19, kind: input, shape index: {}]
  %s20 = inlined_call_operand.vmem [shape: f32[128,32], index: 20, kind: input, shape index: {}]
  %s21 = inlined_call_operand.vmem [shape: f32[1,32], index: 21, kind: input, shape index: {}]
  %s22 = inlined_call_operand.vmem [shape: f32[1,32], index: 22, kind: input, shape index: {}]
  %s23 = inlined_call_operand.vmem [shape: f32[1,32], index: 23, kind: input, shape index: {}]
  %s24 = inlined_call_operand.hbm [shape: f32[2,8,32], index: 24, kind: output, shape index: {}]
  %s25 = sld [smem:[#allocation0]]
  $region145: #{tpu_custom_call.1} parent=0
    _
  %s27 = ssub.s32 1, %s25
  %s28 = scalar_select 0, %s27, %s25
  %s30 = sshll.u32 %s0, 4
  %s31 = int_to_ptr.hbm [resolvable:$true] %s30
  %33 = dma.hbm_to_smem %s31, 16, [#allocation3], [#allocation2]
  %s35 = sshll.u32 %s1, 4
  %s36 = int_to_ptr.hbm [resolvable:$true] %s35
  %38 = dma.hbm_to_smem %s36, 16, [#allocation4], [#allocation2]
  %40 = dma.done [#allocation2], 32
  %41 = sfence
  $region1: #{tpu_custom_call.1} parent=0
    #allocation5 [shape = 'u8[8192]{0}', space=vmem, size = 0x2000, scoped, tag = 'input window, operand 2']
    #allocation6 [shape = 's32[2]{0}', space=sflag, size = 0x8, scoped, tag = 'scoped memory for tpu_custom_call.1']
    #allocation7 [shape = 's32[2]{0}', space=sflag, size = 0x8, scoped, tag = 'scoped memory for tpu_custom_call.1']
    #allocation8 [shape = 'u8[8192]{0}', space=vmem, size = 0x2000, scoped, tag = 'input window, operand 3']
    #allocation9 [shape = 's32[2]{0}', space=sflag, size = 0x8, scoped, tag = 'scoped memory for tpu_custom_call.1']
    #allocation10 [shape = 'u8[16384]{0}', space=vmem, size = 0x4000, scoped, tag = 'input window, operand 12, single buffered']
    #allocation11 [shape = 'u8[16384]{0}', space=vmem, size = 0x4000, scoped, tag = 'input window, operand 13, single buffered']
    #allocation12 [shape = 's32[1]{0}', space=sflag, size = 0x4, scoped, tag = 'scoped memory for tpu_custom_call.1']
    #allocation13 [shape = 'u8[16384]{0}', space=vmem, size = 0x4000, scoped, tag = 'input window, operand 14, single buffered']
    #allocation14 [shape = 'u8[16384]{0}', space=vmem, size = 0x4000, scoped, tag = 'input window, operand 18, single buffered']
    #allocation15 [shape = 's32[1]{0}', space=sflag, size = 0x4, scoped, tag = 'scoped memory for tpu_custom_call.1']
    #allocation16 [shape = 'u8[8192]{0}', space=vmem, size = 0x2000, scoped, tag = 'output window, operand 0']
    %42 = vsyncpa [#allocation6], 0
    %s43 = scalar_lea.sflag [#allocation6], 1
    %44 = vsyncpa %s43, 0
    %45 = vsyncpa [#allocation9], 0
    %s46 = scalar_lea.sflag [#allocation9], 1
    %47 = vsyncpa %s46, 0
    %48 = vsyncpa [#allocation12], 0
    %49 = vsyncpa [#allocation15], 0
    %50 = vsyncpa [#allocation7], 0
    %s51 = scalar_lea.sflag [#allocation7], 1
    %52 = vsyncpa %s51, 0
    loop: start=0, step=1, limit=4
    $region2: #{tpu_custom_call.1} parent=1 // loop_pre_header
      _
    $region3: #{tpu_custom_call.1} parent=1 // loop_header
      %s54 = sphi 0, %s58
      %p55 = scmp.ge.s32.totalorder %s54, 4
      %s61 = sphi 0, %s73
      %s62 = sphi 0, %s69
      %s63 = sphi 0, %s61
      %s64 = sphi 0, %s62
      %s65 = sphi 0, %s63
      %s66 = sphi 0, %s64
      %s76 = sphi 0, %s78
      %s79 = sphi 0, %s76
      %s80 = sphi 0, %s79
      %s96 = sphi 0, %s80
      %s102 = sphi 0, %s104
      %s105 = sphi 0, %s102
      %s106 = sphi 0, %s105
      %s122 = sphi 0, %s106
      %s126 = sphi 0, %s126
      %s128 = sphi 0, %s126
      %s129 = sphi 0, %s128
      %s143 = sphi 0, %s129
      %s147 = sphi 0, %s147
      %s149 = sphi 0, %s147
      %s150 = sphi 0, %s149
      %s164 = sphi 0, %s150
      %s168 = sphi 0, %s168
      %s170 = sphi 0, %s168
      %s171 = sphi 0, %s170
      %s185 = sphi 0, %s171
      %s189 = sphi 0, %s189
      %s191 = sphi 0, %s189
      %s192 = sphi 0, %s191
      %s206 = sphi 0, %s192
      %s210 = sphi 0, %s210
      %s212 = sphi 0, %s210
      %s213 = sphi 0, %s212
      %s227 = sphi 0, %s213
      %s231 = sphi 0, %s231
      %s233 = sphi 0, %s231
      %s234 = sphi 0, %s233
      %s248 = sphi 0, %s234
      %s252 = sphi 0, %s252
      %s254 = sphi 0, %s252
      %s255 = sphi 0, %s254
      %s269 = sphi 0, %s255
      %s273 = sphi 0, %s273
      %s275 = sphi 0, %s273
      %s276 = sphi 0, %s275
      %s290 = sphi 0, %s276
      %s294 = sphi 0, %s294
      %s296 = sphi 0, %s294
      %s297 = sphi 0, %s296
      %s311 = sphi 0, %s297
      %s315 = sphi 0, %s315
      %s317 = sphi 0, %s315
      %s318 = sphi 0, %s317
      %s332 = sphi 0, %s318
      %s336 = sphi 0, %s336
      %s338 = sphi 0, %s336
      %s339 = sphi 0, %s338
      %s353 = sphi 0, %s339
      %s357 = sphi 0, %s357
      %s359 = sphi 0, %s357
      %s360 = sphi 0, %s359
      %s374 = sphi 0, %s360
      %s378 = sphi 0, %s378
      %s380 = sphi 0, %s378
      %s381 = sphi 0, %s380
      %s395 = sphi 0, %s381
      %s399 = sphi 0, %s399
      %s401 = sphi 0, %s399
      %s402 = sphi 0, %s401
      %s416 = sphi 0, %s402
      %s420 = sphi 0, %s420
      %s422 = sphi 0, %s420
      %s423 = sphi 0, %s422
      %s437 = sphi 0, %s423
      %s441 = sphi 0, %s441
      %s443 = sphi 0, %s441
      %s444 = sphi 0, %s443
      %s458 = sphi 0, %s444
      %s462 = sphi 0, %s462
      %s464 = sphi 0, %s462
      %s465 = sphi 0, %s464
      %s479 = sphi 0, %s465
      %s483 = sphi 0, %s483
      %s485 = sphi 0, %s483
      %s486 = sphi 0, %s485
      %s500 = sphi 0, %s486
      %s504 = sphi 0, %s504
      %s506 = sphi 0, %s504
      %s507 = sphi 0, %s506
      %s521 = sphi 0, %s507
      %s525 = sphi 0, %s525
      %s527 = sphi 0, %s525
      %s528 = sphi 0, %s527
      %s542 = sphi 0, %s528
      %s550 = sphi 0, %s552
      %s553 = sphi 0, %s550
      %s554 = sphi 0, %s553
      %s570 = sphi 0, %s554
    $region4: #{tpu_custom_call.1} parent=1 // loop_header_branch
      %57 = sbr.rel (%p55) target = $region8
    $region5: #{tpu_custom_call.1} parent=1 // loop_body
      %s59 = ssub.s32 %s54, 1
      %s60 = ssub.s32 %s54, 2
      %s67 = sadd.s32 1, %s62
      %p68 = scmp.ge.s32.totalorder %s67, 1
      %s69 = scalar_select %p68, 0, %s67
      %s70 = sadd.s32 1, %s61
      %s71 = scalar_select %p68, %s70, %s61
      %p72 = scmp.ge.s32.totalorder %s71, 2
      %s73 = scalar_select %p72, 0, %s71
      %s74 = ssub.s32 %s61, %s73
      %p75 = scmp.eq.s32.totalorder %s74, 0
      %s77 = sadd.s32 %s76, 1
      %s78 = scalar_select %p75, %s76, %s77
      %p81 = pneg %p75
      %p82 = scmp.eq.s32.totalorder %s54, 1
      %p83 = por %p81, %p82
      %p84 = scmp.ne.s32.totalorder %s76, %s79
      %p85 = scmp.eq.s32.totalorder %s54, 0
      %p86 = por %p84, %p85
      %p87 = scmp.ne.s32.totalorder %s76, %s79
      %p88 = scmp.eq.s32.totalorder %s59, 1
      %p89 = por %p87, %p88
      %p90 = scmp.ne.s32.totalorder %s79, %s80
      %p91 = scmp.eq.s32.totalorder %s59, 0
      %p92 = por %p90, %p91
      %p93 = scmp.ne.s32.totalorder %s79, %s80
      %p94 = scmp.eq.s32.totalorder %s60, 1
      %p95 = por %p93, %p94
      %p97 = scmp.ne.s32.totalorder %s80, %s96
      %p98 = scmp.eq.s32.totalorder %s60, 0
      %p99 = por %p97, %p98
      %s100 = ssub.s32 %s61, %s73
      %p101 = scmp.eq.s32.totalorder %s100, 0
      %s103 = sadd.s32 %s102, 1
      %s104 = scalar_select %p101, %s102, %s103
      %p107 = pneg %p101
      %p108 = scmp.eq.s32.totalorder %s54, 1
      %p109 = por %p107, %p108
      %p110 = scmp.ne.s32.totalorder %s102, %s105
      %p111 = scmp.eq.s32.totalorder %s54, 0
      %p112 = por %p110, %p111
      %p113 = scmp.ne.s32.totalorder %s102, %s105
      %p114 = scmp.eq.s32.totalorder %s59, 1
      %p115 = por %p113, %p114
      %p116 = scmp.ne.s32.totalorder %s105, %s106
      %p117 = scmp.eq.s32.totalorder %s59, 0
      %p118 = por %p116, %p117
      %p119 = scmp.ne.s32.totalorder %s105, %s106
      %p120 = scmp.eq.s32.totalorder %s60, 1
      %p121 = por %p119, %p120
      %p123 = scmp.ne.s32.totalorder %s106, %s122
      %p124 = scmp.eq.s32.totalorder %s60, 0
      %p125 = por %p123, %p124
      %s127 = sadd.s32 %s126, 1
      %p130 = scmp.eq.s32.totalorder %s54, 1
      %p131 = scmp.ne.s32.totalorder %s126, %s128
      %p132 = scmp.eq.s32.totalorder %s54, 0
      %p133 = por %p131, %p132
      %p134 = scmp.ne.s32.totalorder %s126, %s128
      %p135 = scmp.eq.s32.totalorder %s59, 1
      %p136 = por %p134, %p135
      %p137 = scmp.ne.s32.totalorder %s128, %s129
      %p138 = scmp.eq.s32.totalorder %s59, 0
      %p139 = por %p137, %p138
      %p140 = scmp.ne.s32.totalorder %s128, %s129
      %p141 = scmp.eq.s32.totalorder %s60, 1
      %p142 = por %p140, %p141
      %p144 = scmp.ne.s32.totalorder %s129, %s143
      %p145 = scmp.eq.s32.totalorder %s60, 0
      %p146 = por %p144, %p145
      %s148 = sadd.s32 %s147, 1
      %p151 = scmp.eq.s32.totalorder %s54, 1
      %p152 = scmp.ne.s32.totalorder %s147, %s149
      %p153 = scmp.eq.s32.totalorder %s54, 0
      %p154 = por %p152, %p153
      %p155 = scmp.ne.s32.totalorder %s147, %s149
      %p156 = scmp.eq.s32.totalorder %s59, 1
      %p157 = por %p155, %p156
      %p158 = scmp.ne.s32.totalorder %s149, %s150
      %p159 = scmp.eq.s32.totalorder %s59, 0
      %p160 = por %p158, %p159
      %p161 = scmp.ne.s32.totalorder %s149, %s150
      %p162 = scmp.eq.s32.totalorder %s60, 1
      %p163 = por %p161, %p162
      %p165 = scmp.ne.s32.totalorder %s150, %s164
      %p166 = scmp.eq.s32.totalorder %s60, 0
      %p167 = por %p165, %p166
      %s169 = sadd.s32 %s168, 1
      %p172 = scmp.eq.s32.totalorder %s54, 1
      %p173 = scmp.ne.s32.totalorder %s168, %s170
      %p174 = scmp.eq.s32.totalorder %s54, 0
      %p175 = por %p173, %p174
      %p176 = scmp.ne.s32.totalorder %s168, %s170
      %p177 = scmp.eq.s32.totalorder %s59, 1
      %p178 = por %p176, %p177
      %p179 = scmp.ne.s32.totalorder %s170, %s171
      %p180 = scmp.eq.s32.totalorder %s59, 0
      %p181 = por %p179, %p180
      %p182 = scmp.ne.s32.totalorder %s170, %s171
      %p183 = scmp.eq.s32.totalorder %s60, 1
      %p184 = por %p182, %p183
      %p186 = scmp.ne.s32.totalorder %s171, %s185
      %p187 = scmp.eq.s32.totalorder %s60, 0
      %p188 = por %p186, %p187
      %s190 = sadd.s32 %s189, 1
      %p193 = scmp.eq.s32.totalorder %s54, 1
      %p194 = scmp.ne.s32.totalorder %s189, %s191
      %p195 = scmp.eq.s32.totalorder %s54, 0
      %p196 = por %p194, %p195
      %p197 = scmp.ne.s32.totalorder %s189, %s191
      %p198 = scmp.eq.s32.totalorder %s59, 1
      %p199 = por %p197, %p198
      %p200 = scmp.ne.s32.totalorder %s191, %s192
      %p201 = scmp.eq.s32.totalorder %s59, 0
      %p202 = por %p200, %p201
      %p203 = scmp.ne.s32.totalorder %s191, %s192
      %p204 = scmp.eq.s32.totalorder %s60, 1
      %p205 = por %p203, %p204
      %p207 = scmp.ne.s32.totalorder %s192, %s206
      %p208 = scmp.eq.s32.totalorder %s60, 0
      %p209 = por %p207, %p208
      %s211 = sadd.s32 %s210, 1
      %p214 = scmp.eq.s32.totalorder %s54, 1
      %p215 = scmp.ne.s32.totalorder %s210, %s212
      %p216 = scmp.eq.s32.totalorder %s54, 0
      %p217 = por %p215, %p216
      %p218 = scmp.ne.s32.totalorder %s210, %s212
      %p219 = scmp.eq.s32.totalorder %s59, 1
      %p220 = por %p218, %p219
      %p221 = scmp.ne.s32.totalorder %s212, %s213
      %p222 = scmp.eq.s32.totalorder %s59, 0
      %p223 = por %p221, %p222
      %p224 = scmp.ne.s32.totalorder %s212, %s213
      %p225 = scmp.eq.s32.totalorder %s60, 1
      %p226 = por %p224, %p225
      %p228 = scmp.ne.s32.totalorder %s213, %s227
      %p229 = scmp.eq.s32.totalorder %s60, 0
      %p230 = por %p228, %p229
      %s232 = sadd.s32 %s231, 1
      %p235 = scmp.eq.s32.totalorder %s54, 1
      %p236 = scmp.ne.s32.totalorder %s231, %s233
      %p237 = scmp.eq.s32.totalorder %s54, 0
      %p238 = por %p236, %p237
      %p239 = scmp.ne.s32.totalorder %s231, %s233
      %p240 = scmp.eq.s32.totalorder %s59, 1
      %p241 = por %p239, %p240
      %p242 = scmp.ne.s32.totalorder %s233, %s234
      %p243 = scmp.eq.s32.totalorder %s59, 0
      %p244 = por %p242, %p243
      %p245 = scmp.ne.s32.totalorder %s233, %s234
      %p246 = scmp.eq.s32.totalorder %s60, 1
      %p247 = por %p245, %p246
      %p249 = scmp.ne.s32.totalorder %s234, %s248
      %p250 = scmp.eq.s32.totalorder %s60, 0
      %p251 = por %p249, %p250
      %s253 = sadd.s32 %s252, 1
      %p256 = scmp.eq.s32.totalorder %s54, 1
      %p257 = scmp.ne.s32.totalorder %s252, %s254
      %p258 = scmp.eq.s32.totalorder %s54, 0
      %p259 = por %p257, %p258
      %p260 = scmp.ne.s32.totalorder %s252, %s254
      %p261 = scmp.eq.s32.totalorder %s59, 1
      %p262 = por %p260, %p261
      %p263 = scmp.ne.s32.totalorder %s254, %s255
      %p264 = scmp.eq.s32.totalorder %s59, 0
      %p265 = por %p263, %p264
      %p266 = scmp.ne.s32.totalorder %s254, %s255
      %p267 = scmp.eq.s32.totalorder %s60, 1
      %p268 = por %p266, %p267
      %p270 = scmp.ne.s32.totalorder %s255, %s269
      %p271 = scmp.eq.s32.totalorder %s60, 0
      %p272 = por %p270, %p271
      %s274 = sadd.s32 %s273, 1
      %p277 = scmp.eq.s32.totalorder %s54, 1
      %p278 = scmp.ne.s32.totalorder %s273, %s275
      %p279 = scmp.eq.s32.totalorder %s54, 0
      %p280 = por %p278, %p279
      %p281 = scmp.ne.s32.totalorder %s273, %s275
      %p282 = scmp.eq.s32.totalorder %s59, 1
      %p283 = por %p281, %p282
      %p284 = scmp.ne.s32.totalorder %s275, %s276
      %p285 = scmp.eq.s32.totalorder %s59, 0
      %p286 = por %p284, %p285
      %p287 = scmp.ne.s32.totalorder %s275, %s276
      %p288 = scmp.eq.s32.totalorder %s60, 1
      %p289 = por %p287, %p288
      %p291 = scmp.ne.s32.totalorder %s276, %s290
      %p292 = scmp.eq.s32.totalorder %s60, 0
      %p293 = por %p291, %p292
      %s295 = sadd.s32 %s294, 1
      %p298 = scmp.eq.s32.totalorder %s54, 1
      %p299 = scmp.ne.s32.totalorder %s294, %s296
      %p300 = scmp.eq.s32.totalorder %s54, 0
      %p301 = por %p299, %p300
      %p302 = scmp.ne.s32.totalorder %s294, %s296
      %p303 = scmp.eq.s32.totalorder %s59, 1
      %p304 = por %p302, %p303
      %p305 = scmp.ne.s32.totalorder %s296, %s297
      %p306 = scmp.eq.s32.totalorder %s59, 0
      %p307 = por %p305, %p306
      %p308 = scmp.ne.s32.totalorder %s296, %s297
      %p309 = scmp.eq.s32.totalorder %s60, 1
      %p310 = por %p308, %p309
      %p312 = scmp.ne.s32.totalorder %s297, %s311
      %p313 = scmp.eq.s32.totalorder %s60, 0
      %p314 = por %p312, %p313
      %s316 = sadd.s32 %s315, 1
      %p319 = scmp.eq.s32.totalorder %s54, 1
      %p320 = scmp.ne.s32.totalorder %s315, %s317
      %p321 = scmp.eq.s32.totalorder %s54, 0
      %p322 = por %p320, %p321
      %p323 = scmp.ne.s32.totalorder %s315, %s317
      %p324 = scmp.eq.s32.totalorder %s59, 1
      %p325 = por %p323, %p324
      %p326 = scmp.ne.s32.totalorder %s317, %s318
      %p327 = scmp.eq.s32.totalorder %s59, 0
      %p328 = por %p326, %p327
      %p329 = scmp.ne.s32.totalorder %s317, %s318
      %p330 = scmp.eq.s32.totalorder %s60, 1
      %p331 = por %p329, %p330
      %p333 = scmp.ne.s32.totalorder %s318, %s332
      %p334 = scmp.eq.s32.totalorder %s60, 0
      %p335 = por %p333, %p334
      %s337 = sadd.s32 %s336, 1
      %p340 = scmp.eq.s32.totalorder %s54, 1
      %p341 = scmp.ne.s32.totalorder %s336, %s338
      %p342 = scmp.eq.s32.totalorder %s54, 0
      %p343 = por %p341, %p342
      %p344 = scmp.ne.s32.totalorder %s336, %s338
      %p345 = scmp.eq.s32.totalorder %s59, 1
      %p346 = por %p344, %p345
      %p347 = scmp.ne.s32.totalorder %s338, %s339
      %p348 = scmp.eq.s32.totalorder %s59, 0
      %p349 = por %p347, %p348
      %p350 = scmp.ne.s32.totalorder %s338, %s339
      %p351 = scmp.eq.s32.totalorder %s60, 1
      %p352 = por %p350, %p351
      %p354 = scmp.ne.s32.totalorder %s339, %s353
      %p355 = scmp.eq.s32.totalorder %s60, 0
      %p356 = por %p354, %p355
      %s358 = sadd.s32 %s357, 1
      %p361 = scmp.eq.s32.totalorder %s54, 1
      %p362 = scmp.ne.s32.totalorder %s357, %s359
      %p363 = scmp.eq.s32.totalorder %s54, 0
      %p364 = por %p362, %p363
      %p365 = scmp.ne.s32.totalorder %s357, %s359
      %p366 = scmp.eq.s32.totalorder %s59, 1
      %p367 = por %p365, %p366
      %p368 = scmp.ne.s32.totalorder %s359, %s360
      %p369 = scmp.eq.s32.totalorder %s59, 0
      %p370 = por %p368, %p369
      %p371 = scmp.ne.s32.totalorder %s359, %s360
      %p372 = scmp.eq.s32.totalorder %s60, 1
      %p373 = por %p371, %p372
      %p375 = scmp.ne.s32.totalorder %s360, %s374
      %p376 = scmp.eq.s32.totalorder %s60, 0
      %p377 = por %p375, %p376
      %s379 = sadd.s32 %s378, 1
      %p382 = scmp.eq.s32.totalorder %s54, 1
      %p383 = scmp.ne.s32.totalorder %s378, %s380
      %p384 = scmp.eq.s32.totalorder %s54, 0
      %p385 = por %p383, %p384
      %p386 = scmp.ne.s32.totalorder %s378, %s380
      %p387 = scmp.eq.s32.totalorder %s59, 1
      %p388 = por %p386, %p387
      %p389 = scmp.ne.s32.totalorder %s380, %s381
      %p390 = scmp.eq.s32.totalorder %s59, 0
      %p391 = por %p389, %p390
      %p392 = scmp.ne.s32.totalorder %s380, %s381
      %p393 = scmp.eq.s32.totalorder %s60, 1
      %p394 = por %p392, %p393
      %p396 = scmp.ne.s32.totalorder %s381, %s395
      %p397 = scmp.eq.s32.totalorder %s60, 0
      %p398 = por %p396, %p397
      %s400 = sadd.s32 %s399, 1
      %p403 = scmp.eq.s32.totalorder %s54, 1
      %p404 = scmp.ne.s32.totalorder %s399, %s401
      %p405 = scmp.eq.s32.totalorder %s54, 0
      %p406 = por %p404, %p405
      %p407 = scmp.ne.s32.totalorder %s399, %s401
      %p408 = scmp.eq.s32.totalorder %s59, 1
      %p409 = por %p407, %p408
      %p410 = scmp.ne.s32.totalorder %s401, %s402
      %p411 = scmp.eq.s32.totalorder %s59, 0
      %p412 = por %p410, %p411
      %p413 = scmp.ne.s32.totalorder %s401, %s402
      %p414 = scmp.eq.s32.totalorder %s60, 1
      %p415 = por %p413, %p414
      %p417 = scmp.ne.s32.totalorder %s402, %s416
      %p418 = scmp.eq.s32.totalorder %s60, 0
      %p419 = por %p417, %p418
      %s421 = sadd.s32 %s420, 1
      %p424 = scmp.eq.s32.totalorder %s54, 1
      %p425 = scmp.ne.s32.totalorder %s420, %s422
      %p426 = scmp.eq.s32.totalorder %s54, 0
      %p427 = por %p425, %p426
      %p428 = scmp.ne.s32.totalorder %s420, %s422
      %p429 = scmp.eq.s32.totalorder %s59, 1
      %p430 = por %p428, %p429
      %p431 = scmp.ne.s32.totalorder %s422, %s423
      %p432 = scmp.eq.s32.totalorder %s59, 0
      %p433 = por %p431, %p432
      %p434 = scmp.ne.s32.totalorder %s422, %s423
      %p435 = scmp.eq.s32.totalorder %s60, 1
      %p436 = por %p434, %p435
      %p438 = scmp.ne.s32.totalorder %s423, %s437
      %p439 = scmp.eq.s32.totalorder %s60, 0
      %p440 = por %p438, %p439
      %s442 = sadd.s32 %s441, 1
      %p445 = scmp.eq.s32.totalorder %s54, 1
      %p446 = scmp.ne.s32.totalorder %s441, %s443
      %p447 = scmp.eq.s32.totalorder %s54, 0
      %p448 = por %p446, %p447
      %p449 = scmp.ne.s32.totalorder %s441, %s443
      %p450 = scmp.eq.s32.totalorder %s59, 1
      %p451 = por %p449, %p450
      %p452 = scmp.ne.s32.totalorder %s443, %s444
      %p453 = scmp.eq.s32.totalorder %s59, 0
      %p454 = por %p452, %p453
      %p455 = scmp.ne.s32.totalorder %s443, %s444
      %p456 = scmp.eq.s32.totalorder %s60, 1
      %p457 = por %p455, %p456
      %p459 = scmp.ne.s32.totalorder %s444, %s458
      %p460 = scmp.eq.s32.totalorder %s60, 0
      %p461 = por %p459, %p460
      %s463 = sadd.s32 %s462, 1
      %p466 = scmp.eq.s32.totalorder %s54, 1
      %p467 = scmp.ne.s32.totalorder %s462, %s464
      %p468 = scmp.eq.s32.totalorder %s54, 0
      %p469 = por %p467, %p468
      %p470 = scmp.ne.s32.totalorder %s462, %s464
      %p471 = scmp.eq.s32.totalorder %s59, 1
      %p472 = por %p470, %p471
      %p473 = scmp.ne.s32.totalorder %s464, %s465
      %p474 = scmp.eq.s32.totalorder %s59, 0
      %p475 = por %p473, %p474
      %p476 = scmp.ne.s32.totalorder %s464, %s465
      %p477 = scmp.eq.s32.totalorder %s60, 1
      %p478 = por %p476, %p477
      %p480 = scmp.ne.s32.totalorder %s465, %s479
      %p481 = scmp.eq.s32.totalorder %s60, 0
      %p482 = por %p480, %p481
      %s484 = sadd.s32 %s483, 1
      %p487 = scmp.eq.s32.totalorder %s54, 1
      %p488 = scmp.ne.s32.totalorder %s483, %s485
      %p489 = scmp.eq.s32.totalorder %s54, 0
      %p490 = por %p488, %p489
      %p491 = scmp.ne.s32.totalorder %s483, %s485
      %p492 = scmp.eq.s32.totalorder %s59, 1
      %p493 = por %p491, %p492
      %p494 = scmp.ne.s32.totalorder %s485, %s486
      %p495 = scmp.eq.s32.totalorder %s59, 0
      %p496 = por %p494, %p495
      %p497 = scmp.ne.s32.totalorder %s485, %s486
      %p498 = scmp.eq.s32.totalorder %s60, 1
      %p499 = por %p497, %p498
      %p501 = scmp.ne.s32.totalorder %s486, %s500
      %p502 = scmp.eq.s32.totalorder %s60, 0
      %p503 = por %p501, %p502
      %s505 = sadd.s32 %s504, 1
      %p508 = scmp.eq.s32.totalorder %s54, 1
      %p509 = scmp.ne.s32.totalorder %s504, %s506
      %p510 = scmp.eq.s32.totalorder %s54, 0
      %p511 = por %p509, %p510
      %p512 = scmp.ne.s32.totalorder %s504, %s506
      %p513 = scmp.eq.s32.totalorder %s59, 1
      %p514 = por %p512, %p513
      %p515 = scmp.ne.s32.totalorder %s506, %s507
      %p516 = scmp.eq.s32.totalorder %s59, 0
      %p517 = por %p515, %p516
      %p518 = scmp.ne.s32.totalorder %s506, %s507
      %p519 = scmp.eq.s32.totalorder %s60, 1
      %p520 = por %p518, %p519
      %p522 = scmp.ne.s32.totalorder %s507, %s521
      %p523 = scmp.eq.s32.totalorder %s60, 0
      %p524 = por %p522, %p523
      %s526 = sadd.s32 %s525, 1
      %p529 = scmp.eq.s32.totalorder %s54, 1
      %p530 = scmp.ne.s32.totalorder %s525, %s527
      %p531 = scmp.eq.s32.totalorder %s54, 0
      %p532 = por %p530, %p531
      %p533 = scmp.ne.s32.totalorder %s525, %s527
      %p534 = scmp.eq.s32.totalorder %s59, 1
      %p535 = por %p533, %p534
      %p536 = scmp.ne.s32.totalorder %s527, %s528
      %p537 = scmp.eq.s32.totalorder %s59, 0
      %p538 = por %p536, %p537
      %p539 = scmp.ne.s32.totalorder %s527, %s528
      %p540 = scmp.eq.s32.totalorder %s60, 1
      %p541 = por %p539, %p540
      %p543 = scmp.ne.s32.totalorder %s528, %s542
      %p544 = scmp.eq.s32.totalorder %s60, 0
      %p545 = por %p543, %p544
      %s546 = ssub.s32 %s61, %s73
      %s547 = ssub.s32 %s62, %s69
      %s548 = sor.u32 %s546, %s547
      %p549 = scmp.eq.s32.totalorder %s548, 0
      %s551 = sadd.s32 %s550, 1
      %s552 = scalar_select %p549, %s550, %s551
      %p555 = pneg %p549
      %p556 = scmp.eq.s32.totalorder %s54, 1
      %p557 = por %p555, %p556
      %p558 = scmp.ne.s32.totalorder %s550, %s553
      %p559 = scmp.eq.s32.totalorder %s54, 0
      %p560 = por %p558, %p559
      %p561 = scmp.ne.s32.totalorder %s550, %s553
      %p562 = scmp.eq.s32.totalorder %s59, 1
      %p563 = por %p561, %p562
      %p564 = scmp.ne.s32.totalorder %s553, %s554
      %p565 = scmp.eq.s32.totalorder %s59, 0
      %p566 = por %p564, %p565
      %p567 = scmp.ne.s32.totalorder %s553, %s554
      %p568 = scmp.eq.s32.totalorder %s60, 1
      %p569 = por %p567, %p568
      %p571 = scmp.ne.s32.totalorder %s554, %s570
      %p572 = scmp.eq.s32.totalorder %s60, 0
      %p573 = por %p571, %p572
      %p574 = scmp.le.s32.totalorder 1, %s54
      %p575 = scmp.lt.s32.totalorder %s54, 3
      %p576 = pnand %p574, %p575
      %p577 = pneg %p576
      // Predicated region
      $region9: #{tpu_custom_call.1} parent=5 // pred_check
        _
      $region10: #{tpu_custom_call.1} parent=5 // pred_check_branch
        %579 = sbr.rel (%p576) target = $region12
      $region11: #{tpu_custom_call.1} parent=5 // pred_region
        %s580 = ssub.s32 %s54, 1
        // Predicated region
        $region13: #{tpu_custom_call.1} parent=11 // pred_check
          %p581 = pneg %p139
        $region14: #{tpu_custom_call.1} parent=11 // pred_check_branch
          %583 = sbr.rel (%p581) target = $region16
        $region15: #{tpu_custom_call.1} parent=11 // pred_region
          _
        $region16: #{tpu_custom_call.1} parent=11 // pred_fallthru
          _
        // Predicated region
        $region17: #{tpu_custom_call.1} parent=11 // pred_check
          %p584 = pneg %p160
        $region18: #{tpu_custom_call.1} parent=11 // pred_check_branch
          %586 = sbr.rel (%p584) target = $region20
        $region19: #{tpu_custom_call.1} parent=11 // pred_region
          _
        $region20: #{tpu_custom_call.1} parent=11 // pred_fallthru
          _
        // Predicated region
        $region21: #{tpu_custom_call.1} parent=11 // pred_check
          %p587 = pneg %p181
        $region22: #{tpu_custom_call.1} parent=11 // pred_check_branch
          %589 = sbr.rel (%p587) target = $region24
        $region23: #{tpu_custom_call.1} parent=11 // pred_region
          _
        $region24: #{tpu_custom_call.1} parent=11 // pred_fallthru
          _
        // Predicated region
        $region25: #{tpu_custom_call.1} parent=11 // pred_check
          %p590 = pneg %p202
        $region26: #{tpu_custom_call.1} parent=11 // pred_check_branch
          %592 = sbr.rel (%p590) target = $region28
        $region27: #{tpu_custom_call.1} parent=11 // pred_region
          _
        $region28: #{tpu_custom_call.1} parent=11 // pred_fallthru
          _
        // Predicated region
        $region29: #{tpu_custom_call.1} parent=11 // pred_check
          %p593 = pneg %p223
        $region30: #{tpu_custom_call.1} parent=11 // pred_check_branch
          %595 = sbr.rel (%p593) target = $region32
        $region31: #{tpu_custom_call.1} parent=11 // pred_region
          _
        $region32: #{tpu_custom_call.1} parent=11 // pred_fallthru
          _
        // Predicated region
        $region33: #{tpu_custom_call.1} parent=11 // pred_check
          %p596 = pneg %p244
        $region34: #{tpu_custom_call.1} parent=11 // pred_check_branch
          %598 = sbr.rel (%p596) target = $region36
        $region35: #{tpu_custom_call.1} parent=11 // pred_region
          _
        $region36: #{tpu_custom_call.1} parent=11 // pred_fallthru
          _
        // Predicated region
        $region37: #{tpu_custom_call.1} parent=11 // pred_check
          %p599 = pneg %p265
        $region38: #{tpu_custom_call.1} parent=11 // pred_check_branch
          %601 = sbr.rel (%p599) target = $region40
        $region39: #{tpu_custom_call.1} parent=11 // pred_region
          _
        $region40: #{tpu_custom_call.1} parent=11 // pred_fallthru
          _
        // Predicated region
        $region41: #{tpu_custom_call.1} parent=11 // pred_check
          %p602 = pneg %p286
        $region42: #{tpu_custom_call.1} parent=11 // pred_check_branch
          %604 = sbr.rel (%p602) target = $region44
        $region43: #{tpu_custom_call.1} parent=11 // pred_region
          _
        $region44: #{tpu_custom_call.1} parent=11 // pred_fallthru
          _
        // Predicated region
        $region45: #{tpu_custom_call.1} parent=11 // pred_check
          %p605 = pneg %p307
        $region46: #{tpu_custom_call.1} parent=11 // pred_check_branch
          %607 = sbr.rel (%p605) target = $region48
        $region47: #{tpu_custom_call.1} parent=11 // pred_region
          %609 = vsyncadd [#allocation9], 0
          %s610 = sshll.u32 %s12, 4
          %s611 = int_to_ptr.hbm [resolvable:$true] %s610
          %s612 = sshll.u32 [#allocation10], 4
          %s613 = int_to_ptr.vmem [resolvable:$true] %s612
          %618 = dma.hbm_to_vmem [thread:$0]  %s611, 512, %s613, [#allocation9], 128, 128, 8
        $region48: #{tpu_custom_call.1} parent=11 // pred_fallthru
          _
        // Predicated region
        $region49: #{tpu_custom_call.1} parent=11 // pred_check
          %p619 = pneg %p328
        $region50: #{tpu_custom_call.1} parent=11 // pred_check_branch
          %621 = sbr.rel (%p619) target = $region52
        $region51: #{tpu_custom_call.1} parent=11 // pred_region
          %623 = vsyncadd [#allocation12], 0
          %s624 = sshll.u32 %s13, 4
          %s625 = int_to_ptr.hbm [resolvable:$true] %s624
          %s626 = sshll.u32 [#allocation11], 4
          %s627 = int_to_ptr.vmem [resolvable:$true] %s626
          %632 = dma.hbm_to_vmem [thread:$0]  %s625, 512, %s627, [#allocation12], 128, 128, 8
        $region52: #{tpu_custom_call.1} parent=11 // pred_fallthru
          _
        // Predicated region
        $region53: #{tpu_custom_call.1} parent=11 // pred_check
          %p633 = pneg %p349
        $region54: #{tpu_custom_call.1} parent=11 // pred_check_branch
          %635 = sbr.rel (%p633) target = $region56
        $region55: #{tpu_custom_call.1} parent=11 // pred_region
          %637 = vsyncadd [#allocation12], 0
          %s638 = sshll.u32 %s14, 4
          %s639 = int_to_ptr.hbm [resolvable:$true] %s638
          %s640 = sshll.u32 [#allocation13], 4
          %s641 = int_to_ptr.vmem [resolvable:$true] %s640
          %646 = dma.hbm_to_vmem [thread:$0]  %s639, 512, %s641, [#allocation12], 128, 128, 8
        $region56: #{tpu_custom_call.1} parent=11 // pred_fallthru
          _
        // Predicated region
        $region57: #{tpu_custom_call.1} parent=11 // pred_check
          %p647 = pneg %p370
        $region58: #{tpu_custom_call.1} parent=11 // pred_check_branch
          %649 = sbr.rel (%p647) target = $region60
        $region59: #{tpu_custom_call.1} parent=11 // pred_region
          _
        $region60: #{tpu_custom_call.1} parent=11 // pred_fallthru
          _
        // Predicated region
        $region61: #{tpu_custom_call.1} parent=11 // pred_check
          %p650 = pneg %p391
        $region62: #{tpu_custom_call.1} parent=11 // pred_check_branch
          %652 = sbr.rel (%p650) target = $region64
        $region63: #{tpu_custom_call.1} parent=11 // pred_region
          _
        $region64: #{tpu_custom_call.1} parent=11 // pred_fallthru
          _
        // Predicated region
        $region65: #{tpu_custom_call.1} parent=11 // pred_check
          %p653 = pneg %p412
        $region66: #{tpu_custom_call.1} parent=11 // pred_check_branch
          %655 = sbr.rel (%p653) target = $region68
        $region67: #{tpu_custom_call.1} parent=11 // pred_region
          _
        $region68: #{tpu_custom_call.1} parent=11 // pred_fallthru
          _
        // Predicated region
        $region69: #{tpu_custom_call.1} parent=11 // pred_check
          %p656 = pneg %p433
        $region70: #{tpu_custom_call.1} parent=11 // pred_check_branch
          %658 = sbr.rel (%p656) target = $region72
        $region71: #{tpu_custom_call.1} parent=11 // pred_region
          %660 = vsyncadd [#allocation15], 0
          %s661 = sshll.u32 %s18, 4
          %s662 = int_to_ptr.hbm [resolvable:$true] %s661
          %s663 = sshll.u32 [#allocation14], 4
          %s664 = int_to_ptr.vmem [resolvable:$true] %s663
          %669 = dma.hbm_to_vmem [thread:$0]  %s662, 512, %s664, [#allocation15], 128, 128, 8
        $region72: #{tpu_custom_call.1} parent=11 // pred_fallthru
          _
        // Predicated region
        $region73: #{tpu_custom_call.1} parent=11 // pred_check
          %p670 = pneg %p454
        $region74: #{tpu_custom_call.1} parent=11 // pred_check_branch
          %672 = sbr.rel (%p670) target = $region76
        $region75: #{tpu_custom_call.1} parent=11 // pred_region
          _
        $region76: #{tpu_custom_call.1} parent=11 // pred_fallthru
          _
        // Predicated region
        $region77: #{tpu_custom_call.1} parent=11 // pred_check
          %p673 = pneg %p475
        $region78: #{tpu_custom_call.1} parent=11 // pred_check_branch
          %675 = sbr.rel (%p673) target = $region80
        $region79: #{tpu_custom_call.1} parent=11 // pred_region
          _
        $region80: #{tpu_custom_call.1} parent=11 // pred_fallthru
          _
        // Predicated region
        $region81: #{tpu_custom_call.1} parent=11 // pred_check
          %p676 = pneg %p496
        $region82: #{tpu_custom_call.1} parent=11 // pred_check_branch
          %678 = sbr.rel (%p676) target = $region84
        $region83: #{tpu_custom_call.1} parent=11 // pred_region
          _
        $region84: #{tpu_custom_call.1} parent=11 // pred_fallthru
          _
        // Predicated region
        $region85: #{tpu_custom_call.1} parent=11 // pred_check
          %p679 = pneg %p517
        $region86: #{tpu_custom_call.1} parent=11 // pred_check_branch
          %681 = sbr.rel (%p679) target = $region88
        $region87: #{tpu_custom_call.1} parent=11 // pred_region
          _
        $region88: #{tpu_custom_call.1} parent=11 // pred_fallthru
          _
        // Predicated region
        $region89: #{tpu_custom_call.1} parent=11 // pred_check
          %p682 = pneg %p538
        $region90: #{tpu_custom_call.1} parent=11 // pred_check_branch
          %684 = sbr.rel (%p682) target = $region92
        $region91: #{tpu_custom_call.1} parent=11 // pred_region
          _
        $region92: #{tpu_custom_call.1} parent=11 // pred_fallthru
          _
      $region12: #{tpu_custom_call.1} parent=5 // pred_fallthru
        _
      %p685 = scmp.lt.s32.totalorder %s54, 2
      // Predicated region
      $region93: #{tpu_custom_call.1} parent=5 // pred_check
        %p686 = pneg %p685
      $region94: #{tpu_custom_call.1} parent=5 // pred_check_branch
        %688 = sbr.rel (%p686) target = $region96
      $region95: #{tpu_custom_call.1} parent=5 // pred_region
        // Predicated region
        $region97: #{tpu_custom_call.1} parent=95 // pred_check
          %p689 = pneg %p86
        $region98: #{tpu_custom_call.1} parent=95 // pred_check_branch
          %691 = sbr.rel (%p689) target = $region100
        $region99: #{tpu_custom_call.1} parent=95 // pred_region
          %s692 = sand.u32 %s76, 1
          %s693 = scalar_lea.sflag [#allocation6], %s692
          %s694 = sand.u32 %s76, 1
          %s695 = smul.addr %s694, 8
          %s696 = scalar_lea.vmem [#allocation5], %s695
          %698 = vsyncadd %s693, 0
          %s699 = smul.addr %s61, 8
          %s700 = scalar_lea.hbm %s2, %s699
          %s702 = sshll.u32 %s700, 4
          %s703 = int_to_ptr.hbm [resolvable:$true] %s702
          %s704 = sshll.u32 %s696, 4
          %s705 = int_to_ptr.vmem [resolvable:$true] %s704
          %707 = dma.hbm_to_vmem [thread:$0]  %s703, 128, %s705, %s693
        $region100: #{tpu_custom_call.1} parent=95 // pred_fallthru
          _
        // Predicated region
        $region101: #{tpu_custom_call.1} parent=95 // pred_check
          %p708 = pneg %p112
        $region102: #{tpu_custom_call.1} parent=95 // pred_check_branch
          %710 = sbr.rel (%p708) target = $region104
        $region103: #{tpu_custom_call.1} parent=95 // pred_region
          %s711 = sand.u32 %s54, 1
          %s712 = scalar_lea.sflag [#allocation9], %s711
          %s713 = sand.u32 %s102, 1
          %s714 = smul.addr %s713, 8
          %s715 = scalar_lea.vmem [#allocation8], %s714
          %717 = vsyncadd %s712, 0
          %s718 = smul.addr %s61, 8
          %s719 = scalar_lea.hbm %s3, %s718
          %s721 = sshll.u32 %s719, 4
          %s722 = int_to_ptr.hbm [resolvable:$true] %s721
          %s723 = sshll.u32 %s715, 4
          %s724 = int_to_ptr.vmem [resolvable:$true] %s723
          %726 = dma.hbm_to_vmem [thread:$0]  %s722, 128, %s724, %s712
        $region104: #{tpu_custom_call.1} parent=95 // pred_fallthru
          _
      $region96: #{tpu_custom_call.1} parent=5 // pred_fallthru
        _
      %p727 = scmp.le.s32.totalorder 1, %s54
      %p728 = scmp.lt.s32.totalorder %s54, 3
      %p729 = pnand %p727, %p728
      %p730 = pneg %p729
      // Predicated region
      $region105: #{tpu_custom_call.1} parent=5 // pred_check
        _
      $region106: #{tpu_custom_call.1} parent=5 // pred_check_branch
        %732 = sbr.rel (%p729) target = $region108
      $region107: #{tpu_custom_call.1} parent=5 // pred_region
        %s733 = ssub.s32 %s54, 1
        %s734 = sand.u32 %s79, 1
        %s735 = scalar_lea.sflag [#allocation6], %s734
        %s736 = sand.u32 %s79, 1
        %s737 = smul.addr %s736, 8
        %s738 = scalar_lea.vmem [#allocation5], %s737
        // Predicated region
        $region109: #{tpu_custom_call.1} parent=107 // pred_check
          %p739 = pneg %p92
        $region110: #{tpu_custom_call.1} parent=107 // pred_check_branch
          %741 = sbr.rel (%p739) target = $region112
        $region111: #{tpu_custom_call.1} parent=107 // pred_region
          %743 = dma.done %s735, 128
        $region112: #{tpu_custom_call.1} parent=107 // pred_fallthru
          _
        %s744 = sand.u32 %s59, 1
        %s745 = scalar_lea.sflag [#allocation9], %s744
        %s746 = sand.u32 %s105, 1
        %s747 = smul.addr %s746, 8
        %s748 = scalar_lea.vmem [#allocation8], %s747
        // Predicated region
        $region113: #{tpu_custom_call.1} parent=107 // pred_check
          %p749 = pneg %p118
        $region114: #{tpu_custom_call.1} parent=107 // pred_check_branch
          %751 = sbr.rel (%p749) target = $region116
        $region115: #{tpu_custom_call.1} parent=107 // pred_region
          %753 = dma.done %s745, 128
        $region116: #{tpu_custom_call.1} parent=107 // pred_fallthru
          _
        // Predicated region
        $region117: #{tpu_custom_call.1} parent=107 // pred_check
          %p754 = pneg %p307
        $region118: #{tpu_custom_call.1} parent=107 // pred_check_branch
          %756 = sbr.rel (%p754) target = $region120
        $region119: #{tpu_custom_call.1} parent=107 // pred_region
          %758 = dma.done [#allocation9], 512
        $region120: #{tpu_custom_call.1} parent=107 // pred_fallthru
          _
        // Predicated region
        $region121: #{tpu_custom_call.1} parent=107 // pred_check
          %p759 = pneg %p328
        $region122: #{tpu_custom_call.1} parent=107 // pred_check_branch
          %761 = sbr.rel (%p759) target = $region124
        $region123: #{tpu_custom_call.1} parent=107 // pred_region
          %763 = dma.done [#allocation12], 512
        $region124: #{tpu_custom_call.1} parent=107 // pred_fallthru
          _
        // Predicated region
        $region125: #{tpu_custom_call.1} parent=107 // pred_check
          %p764 = pneg %p349
        $region126: #{tpu_custom_call.1} parent=107 // pred_check_branch
          %766 = sbr.rel (%p764) target = $region128
        $region127: #{tpu_custom_call.1} parent=107 // pred_region
          %768 = dma.done [#allocation12], 512
        $region128: #{tpu_custom_call.1} parent=107 // pred_fallthru
          _
        // Predicated region
        $region129: #{tpu_custom_call.1} parent=107 // pred_check
          %p769 = pneg %p433
        $region130: #{tpu_custom_call.1} parent=107 // pred_check_branch
          %771 = sbr.rel (%p769) target = $region132
        $region131: #{tpu_custom_call.1} parent=107 // pred_region
          %773 = dma.done [#allocation15], 512
        $region132: #{tpu_custom_call.1} parent=107 // pred_fallthru
          _
        %s774 = sand.u32 %s79, 1
        %s775 = scalar_lea.sflag [#allocation6], %s774
        %s776 = sand.u32 %s79, 1
        %s777 = smul.addr %s776, 8
        %s778 = scalar_lea.vmem [#allocation5], %s777
        %p779 = pneg %p92
        %p780 = pneg %p89
        %s781 = sand.u32 %s59, 1
        %s782 = scalar_lea.sflag [#allocation9], %s781
        %s783 = sand.u32 %s105, 1
        %s784 = smul.addr %s783, 8
        %s785 = scalar_lea.vmem [#allocation8], %s784
        %p786 = pneg %p118
        %p787 = pneg %p115
        %p788 = pneg %p139
        %p789 = pneg %p136
        %p790 = pneg %p160
        %p791 = pneg %p157
        %p792 = pneg %p181
        %p793 = pneg %p178
        %p794 = pneg %p202
        %p795 = pneg %p199
        %p796 = pneg %p223
        %p797 = pneg %p220
        %p798 = pneg %p244
        %p799 = pneg %p241
        %p800 = pneg %p265
        %p801 = pneg %p262
        %p802 = pneg %p286
        %p803 = pneg %p283
        %p804 = pneg %p307
        %p805 = pneg %p304
        %p806 = pneg %p328
        %p807 = pneg %p325
        %p808 = pneg %p349
        %p809 = pneg %p346
        %p810 = pneg %p370
        %p811 = pneg %p367
        %p812 = pneg %p391
        %p813 = pneg %p388
        %p814 = pneg %p412
        %p815 = pneg %p409
        %p816 = pneg %p433
        %p817 = pneg %p430
        %p818 = pneg %p454
        %p819 = pneg %p451
        %p820 = pneg %p475
        %p821 = pneg %p472
        %p822 = pneg %p496
        %p823 = pneg %p493
        %p824 = pneg %p517
        %p825 = pneg %p514
        %p826 = pneg %p538
        %p827 = pneg %p535
        %p828 = pneg %p566
        %p829 = pneg %p563
        %s830 = sand.u32 %s553, 1
        %s831 = scalar_lea.sflag [#allocation7], %s830
        %s832 = sand.u32 %s553, 1
        %s833 = smul.addr %s832, 8
        %s834 = scalar_lea.vmem [#allocation16], %s833
        %v835 = vld [vmem:[%s4] sm:$0xff]
        %v836 = vld [vmem:[%s4 + $0x8] sm:$0xff]
        %v837 = vld [vmem:[%s4 + $0x10] sm:$0xff]
        %v838 = vld [vmem:[%s4 + $0x18] sm:$0xff]
        %v839 = vld [vmem:[%s5] sm:$0xff]
        %v840 = vld [vmem:[%s5 + $0x8] sm:$0xff]
        %v841 = vld [vmem:[%s5 + $0x10] sm:$0xff]
        %v842 = vld [vmem:[%s5 + $0x18] sm:$0xff]
        %v843 = vld [vmem:[%s6] sm:$0xff]
        %v844 = vld [vmem:[%s6 + $0x8] sm:$0xff]
        %v845 = vld [vmem:[%s6 + $0x10] sm:$0xff]
        %v846 = vld [vmem:[%s6 + $0x18] sm:$0xff]
        %v847 = vld [vmem:[%s7] sm:$0xff]
        %v848 = vld [vmem:[%s7 + $0x8] sm:$0xff]
        %v849 = vld [vmem:[%s7 + $0x10] sm:$0xff]
        %v850 = vld [vmem:[%s7 + $0x18] sm:$0xff]
        %v851 = vld [vmem:[%s8] sm:$0x1]
        %v852 = vld [vmem:[%s9] sm:$0x1]
        %v853 = vld [vmem:[%s10] sm:$0x1]
        %v854 = vld [vmem:[%s11] sm:$0xff]
        %v855 = vld [vmem:[%s11 + $0x8] sm:$0xff]
        %v856 = vld [vmem:[%s11 + $0x10] sm:$0xff]
        %v857 = vld [vmem:[%s11 + $0x18] sm:$0xff]
        %v858 = vld [vmem:[#allocation10] sm:$0xff]
        %v859 = vld [vmem:[#allocation10 + $0x8] sm:$0xff]
        %v860 = vld [vmem:[#allocation10 + $0x10] sm:$0xff]
        %v861 = vld [vmem:[#allocation10 + $0x18] sm:$0xff]
        %v862 = vld [vmem:[#allocation11] sm:$0xff]
        %v863 = vld [vmem:[#allocation11 + $0x8] sm:$0xff]
        %v864 = vld [vmem:[#allocation11 + $0x10] sm:$0xff]
        %v865 = vld [vmem:[#allocation11 + $0x18] sm:$0xff]
        %v866 = vld [vmem:[#allocation13] sm:$0xff]
        %v867 = vld [vmem:[#allocation13 + $0x8] sm:$0xff]
        %v868 = vld [vmem:[#allocation13 + $0x10] sm:$0xff]
        %v869 = vld [vmem:[#allocation13 + $0x18] sm:$0xff]
        %v870 = vld [vmem:[%s15] sm:$0x1]
        %v871 = vld [vmem:[%s16] sm:$0x1]
        %v872 = vld [vmem:[%s17] sm:$0x1]
        %v873 = vld [vmem:[#allocation14] sm:$0xff]
        %v874 = vld [vmem:[#allocation14 + $0x8] sm:$0xff]
        %v875 = vld [vmem:[#allocation14 + $0x10] sm:$0xff]
        %v876 = vld [vmem:[#allocation14 + $0x18] sm:$0xff]
        %v877 = vld [vmem:[%s19] sm:$0x1]
        %v878 = vld [vmem:[%s20] sm:$0xff]
        %v879 = vld [vmem:[%s20 + $0x8] sm:$0xff]
        %v880 = vld [vmem:[%s20 + $0x10] sm:$0xff]
        %v881 = vld [vmem:[%s20 + $0x18] sm:$0xff]
        %v882 = vld [vmem:[%s20 + $0x20] sm:$0xff]
        %v883 = vld [vmem:[%s20 + $0x28] sm:$0xff]
        %v884 = vld [vmem:[%s20 + $0x30] sm:$0xff]
        %v885 = vld [vmem:[%s20 + $0x38] sm:$0xff]
        %v886 = vld [vmem:[%s20 + $0x40] sm:$0xff]
        %v887 = vld [vmem:[%s20 + $0x48] sm:$0xff]
        %v888 = vld [vmem:[%s20 + $0x50] sm:$0xff]
        %v889 = vld [vmem:[%s20 + $0x58] sm:$0xff]
        %v890 = vld [vmem:[%s20 + $0x60] sm:$0xff]
        %v891 = vld [vmem:[%s20 + $0x68] sm:$0xff]
        %v892 = vld [vmem:[%s20 + $0x70] sm:$0xff]
        %v893 = vld [vmem:[%s20 + $0x78] sm:$0xff]
        %v894 = vld [vmem:[%s21] sm:$0x1]
        %v895 = vld [vmem:[%s22] sm:$0x1]
        %v896 = vld [vmem:[%s23] sm:$0x1]
        %s897 = smul.u32 %s64, 8
        %s898 = sld [smem:[#allocation3 + %s63]]
        %s899 = sld [smem:[#allocation4 + %s63]]
        %v900 = vld [vmem:[%s738] sm:$0xff]
        %s901 = scalar_lea.vmem %s738, %s897 [#allocation5]
        %v902 = vld [vmem:[%s901] sm:$0xff]
        %v903 = vld [vmem:[%s748] sm:$0xff]
        %vm904 = vcmask 261120
        %v906 = vsel %vm904, %v902, 0
        %908 = vmatpush.msra.mxu0 0.0
        %909 = vmatpush.msra.mxu0 0.0
        %910 = vmatpush.msra.mxu0 0.0
        %911 = vmatpush.msra.mxu0 0.0
        %912 = vmatpush.msra.mxu0 0.0
        %913 = vmatpush.msra.mxu0 0.0
        %914 = vmatpush.msra.mxu0 0.0
        %915 = vmatpush.msra.mxu0 0.0
        %916 = vmatpush.msra.mxu0 0.0
        %917 = vmatpush.msra.mxu0 0.0
        %918 = vmatpush.msra.mxu0 0.0
        %919 = vmatpush.msra.mxu0 0.0
        %920 = vmatpush.msra.mxu0 %v838
        %921 = vmatpush.msra.mxu0 %v837
        %922 = vmatpush.msra.mxu0 %v836
        %923 = vmatpush.msra.mxu0 %v835
        %924 = vmatmul.f32.gmra.mxu0 %v906
        %v925 = vpop.f32.mrf.mxu0
        %v926 = vadd.f32 0.0, %v925
        %927 = vdwg.mxu0
        %v928 = vmul.f32 %v926, 0.25
        %v930 = vsel %vm904, %v900, 0
        %932 = vmatpush.msra.mxu0 0.0
        %933 = vmatpush.msra.mxu0 0.0
        %934 = vmatpush.msra.mxu0 0.0
        %935 = vmatpush.msra.mxu0 0.0
        %936 = vmatpush.msra.mxu0 0.0
        %937 = vmatpush.msra.mxu0 0.0
        %938 = vmatpush.msra.mxu0 0.0
        %939 = vmatpush.msra.mxu0 0.0
        %940 = vmatpush.msra.mxu0 0.0
        %941 = vmatpush.msra.mxu0 0.0
        %942 = vmatpush.msra.mxu0 0.0
        %943 = vmatpush.msra.mxu0 0.0
        %944 = vmatpush.msra.mxu0 %v842
        %945 = vmatpush.msra.mxu0 %v841
        %946 = vmatpush.msra.mxu0 %v840
        %947 = vmatpush.msra.mxu0 %v839
        %948 = vmatmul.f32.gmra.mxu0 %v930
        %v949 = vpop.f32.mrf.mxu0
        %v950 = vadd.f32 0.0, %v949
        %951 = vdwg.mxu0
        %952 = vmatpush.msra.mxu0 0.0
        %953 = vmatpush.msra.mxu0 0.0
        %954 = vmatpush.msra.mxu0 0.0
        %955 = vmatpush.msra.mxu0 0.0
        %956 = vmatpush.msra.mxu0 0.0
        %957 = vmatpush.msra.mxu0 0.0
        %958 = vmatpush.msra.mxu0 0.0
        %959 = vmatpush.msra.mxu0 0.0
        %960 = vmatpush.msra.mxu0 0.0
        %961 = vmatpush.msra.mxu0 0.0
        %962 = vmatpush.msra.mxu0 0.0
        %963 = vmatpush.msra.mxu0 0.0
        %964 = vmatpush.msra.mxu0 %v846
        %965 = vmatpush.msra.mxu0 %v845
        %966 = vmatpush.msra.mxu0 %v844
        %967 = vmatpush.msra.mxu0 %v843
        %968 = vmatmul.f32.gmra.mxu0 %v930
        %v969 = vpop.f32.mrf.mxu0
        %v970 = vadd.f32 0.0, %v969
        %971 = vdwg.mxu0
        %v972 = vlaneseq
        %v973 = vand.u32 %v972, 127
        %v974 = vstv %s898
        %vm975 = vcmp.lt.s32.totalorder %v973, %v974
        %v976 = vlaneseq
        %v977 = vshrl.u32 %v976, 7
        %v978 = vstv %s897
        %v979 = vadd.s32 %v977, %v978
        %vm980 = vcmp.ge.s32.totalorder %v979, %v973
        %vm981 = vmand %vm975, %vm980
        %vm982 = vcmask 130048
        %v984 = vsel %vm982, %v928, 0
        %v987 = vsel %vm982, %v950, 0
        %989 = vmatpush.xpose.msra.mxu0 0.0
        %990 = vmatpush.xpose.msra.mxu0 0.0
        %991 = vmatpush.xpose.msra.mxu0 0.0
        %992 = vmatpush.xpose.msra.mxu0 0.0
        %993 = vmatpush.xpose.msra.mxu0 0.0
        %994 = vmatpush.xpose.msra.mxu0 0.0
        %995 = vmatpush.xpose.msra.mxu0 0.0
        %996 = vmatpush.xpose.msra.mxu0 0.0
        %997 = vmatpush.xpose.msra.mxu0 0.0
        %998 = vmatpush.xpose.msra.mxu0 0.0
        %999 = vmatpush.xpose.msra.mxu0 0.0
        %1000 = vmatpush.xpose.msra.mxu0 0.0
        %1001 = vmatpush.xpose.msra.mxu0 0.0
        %1002 = vmatpush.xpose.msra.mxu0 0.0
        %1003 = vmatpush.xpose.msra.mxu0 0.0
        %1004 = vmatpush.xpose.msra.mxu0 %v987
        %1005 = vmatmul.f32.gmra.mxu0 %v984
        %v1006 = vpop.f32.mrf.mxu0
        %v1007 = vadd.f32 0.0, %v1006
        %1008 = vdwg.mxu0
        %vm1009 = vcmp.ne.f32.partialorder %v1007, 0.0
        %vm1010 = vmand %vm981, %vm1009
        %v1011 = vsel %vm1010, %v1007, -1e+20
        %vm1012 = vcmask 64512
        %v1013 = vsel %vm1012, %v1011, -inf
        %1014 = vmax.xlane.f32.xlu0 %v1013
        %v1015 = vpop.xlane.xlu0 %1014
        %v1016 = vsub.f32 %v1011, %v1015
        %v1017 = vmul.f32 %v1016, 1.442695
        %v1018 = vpow.pop %v1017
        %v1019 = vsel %vm1012, %v1018, 0.0
        %1020 = vadd.xlane.f32.xlu0 %v1019
        %v1021 = vpop.xlane.xlu0 %1020
        %v1022 = vrcp.pop %v1021
        %v1023 = vmul.f32 %v1021, %v1022
        %v1024 = vsub.f32 2.0, %v1023
        %v1025 = vmul.f32 %v1022, %v1024
        %v1026 = vmul.f32 %v1018, %v1025
        %v1028 = vsel %vm1012, %v1026, 0
        %1030 = vmatpush.msra.mxu0 0.0
        %1031 = vmatpush.msra.mxu0 0.0
        %1032 = vmatpush.msra.mxu0 0.0
        %1033 = vmatpush.msra.mxu0 0.0
        %1034 = vmatpush.msra.mxu0 0.0
        %1035 = vmatpush.msra.mxu0 0.0
        %1036 = vmatpush.msra.mxu0 0.0
        %1037 = vmatpush.msra.mxu0 0.0
        %1038 = vmatpush.msra.mxu0 0.0
        %1039 = vmatpush.msra.mxu0 0.0
        %1040 = vmatpush.msra.mxu0 0.0
        %1041 = vmatpush.msra.mxu0 0.0
        %1042 = vmatpush.msra.mxu0 0.0
        %1043 = vmatpush.msra.mxu0 0.0
        %1044 = vmatpush.msra.mxu0 0.0
        %1045 = vmatpush.msra.mxu0 %v970
        %1046 = vmatmul.f32.gmra.mxu0 %v1028
        %v1047 = vpop.f32.mrf.mxu0
        %v1048 = vadd.f32 0.0, %v1047
        %1049 = vdwg.mxu0
        %1050 = vrot.lane.b32.xlu0 %v928, 112
        %v1051 = vpop.permute.xlu0 %1050
        %1052 = vrot.lane.b32.xlu0 %v950, 112
        %v1053 = vpop.permute.xlu0 %1052
        %v1054 = vsel %vm982, %v1051, 0
        %v1056 = vsel %vm982, %v1053, 0
        %1058 = vmatpush.xpose.msra.mxu0 0.0
        %1059 = vmatpush.xpose.msra.mxu0 0.0
        %1060 = vmatpush.xpose.msra.mxu0 0.0
        %1061 = vmatpush.xpose.msra.mxu0 0.0
        %1062 = vmatpush.xpose.msra.mxu0 0.0
        %1063 = vmatpush.xpose.msra.mxu0 0.0
        %1064 = vmatpush.xpose.msra.mxu0 0.0
        %1065 = vmatpush.xpose.msra.mxu0 0.0
        %1066 = vmatpush.xpose.msra.mxu0 0.0
        %1067 = vmatpush.xpose.msra.mxu0 0.0
        %1068 = vmatpush.xpose.msra.mxu0 0.0
        %1069 = vmatpush.xpose.msra.mxu0 0.0
        %1070 = vmatpush.xpose.msra.mxu0 0.0
        %1071 = vmatpush.xpose.msra.mxu0 0.0
        %1072 = vmatpush.xpose.msra.mxu0 0.0
        %1073 = vmatpush.xpose.msra.mxu0 %v1056
        %1074 = vmatmul.f32.gmra.mxu0 %v1054
        %v1075 = vpop.f32.mrf.mxu0
        %v1076 = vadd.f32 0.0, %v1075
        %1077 = vdwg.mxu0
        %vm1078 = vcmp.ne.f32.partialorder %v1076, 0.0
        %vm1079 = vmand %vm981, %vm1078
        %v1080 = vsel %vm1079, %v1076, -1e+20
        %v1081 = vsel %vm1012, %v1080, -inf
        %1082 = vmax.xlane.f32.xlu0 %v1081
        %v1083 = vpop.xlane.xlu0 %1082
        %v1084 = vsub.f32 %v1080, %v1083
        %v1085 = vmul.f32 %v1084, 1.442695
        %v1086 = vpow.pop %v1085
        %v1087 = vsel %vm1012, %v1086, 0.0
        %1088 = vadd.xlane.f32.xlu0 %v1087
        %v1089 = vpop.xlane.xlu0 %1088
        %v1090 = vrcp.pop %v1089
        %v1091 = vmul.f32 %v1089, %v1090
        %v1092 = vsub.f32 2.0, %v1091
        %v1093 = vmul.f32 %v1090, %v1092
        %v1094 = vmul.f32 %v1086, %v1093
        %1096 = vrot.lane.b32.xlu0 %v970, 112
        %v1097 = vpop.permute.xlu0 %1096
        %v1100 = vsel %vm1012, %v1094, 0
        %1102 = vmatpush.msra.mxu0 0.0
        %1103 = vmatpush.msra.mxu0 0.0
        %1104 = vmatpush.msra.mxu0 0.0
        %1105 = vmatpush.msra.mxu0 0.0
        %1106 = vmatpush.msra.mxu0 0.0
        %1107 = vmatpush.msra.mxu0 0.0
        %1108 = vmatpush.msra.mxu0 0.0
        %1109 = vmatpush.msra.mxu0 0.0
        %1110 = vmatpush.msra.mxu0 0.0
        %1111 = vmatpush.msra.mxu0 0.0
        %1112 = vmatpush.msra.mxu0 0.0
        %1113 = vmatpush.msra.mxu0 0.0
        %1114 = vmatpush.msra.mxu0 0.0
        %1115 = vmatpush.msra.mxu0 0.0
        %1116 = vmatpush.msra.mxu0 0.0
        %1117 = vmatpush.msra.mxu0 %v1097
        %1118 = vmatmul.f32.gmra.mxu0 %v1100
        %v1119 = vpop.f32.mrf.mxu0
        %v1120 = vadd.f32 0.0, %v1119
        %1121 = vdwg.mxu0
        %1123 = vrot.lane.b32.xlu0 %v1120, 16
        %v1124 = vpop.permute.xlu0 %1123
        %v1126 = vsel %vm982, %v1048, %v1124
        %v1128 = vperm.slane %v851, 0
        %v1131 = vsel %vm904, %v1126, 0
        %1133 = vmatpush.msra.mxu0 0.0
        %1134 = vmatpush.msra.mxu0 0.0
        %1135 = vmatpush.msra.mxu0 0.0
        %1136 = vmatpush.msra.mxu0 0.0
        %1137 = vmatpush.msra.mxu0 0.0
        %1138 = vmatpush.msra.mxu0 0.0
        %1139 = vmatpush.msra.mxu0 0.0
        %1140 = vmatpush.msra.mxu0 0.0
        %1141 = vmatpush.msra.mxu0 0.0
        %1142 = vmatpush.msra.mxu0 0.0
        %1143 = vmatpush.msra.mxu0 0.0
        %1144 = vmatpush.msra.mxu0 0.0
        %1145 = vmatpush.msra.mxu0 %v850
        %1146 = vmatpush.msra.mxu0 %v849
        %1147 = vmatpush.msra.mxu0 %v848
        %1148 = vmatpush.msra.mxu0 %v847
        %1149 = vmatmul.f32.gmra.mxu0 %v1131
        %v1150 = vpop.f32.mrf.mxu0
        %v1151 = vadd.f32 %v1128, %v1150
        %1152 = vdwg.mxu0
        %v1153 = vadd.f32 %v1151, %v902
        %v1154 = vsel %vm904, %v1153, 0.0
        %1155 = vadd.xlane.f32.xlu0 %v1154
        %v1156 = vpop.xlane.xlu0 %1155
        %v1157 = vrcp.pop 32.0
        %v1158 = vmul.f32 32.0, %v1157
        %v1159 = vsub.f32 1.0, %v1158
        %v1160 = vmul.f32 %v1157, %v1159
        %v1161 = vadd.f32 %v1157, %v1160
        %vm1162 = vweird.f32 %v1157
        %v1163 = vsel %vm1162, %v1157, %v1161
        %v1164 = vmul.f32 %v1156, %v1163
        %v1165 = vsub.f32 %v1153, %v1164
        %v1166 = vmul.f32 %v1165, %v1165
        %v1167 = vsel %vm904, %v1166, 0.0
        %1168 = vadd.xlane.f32.xlu0 %v1167
        %v1169 = vpop.xlane.xlu0 %1168
        %v1170 = vmul.f32 %v1169, %v1163
        %v1171 = vadd.f32 %v1170, 1e-06
        %v1172 = vrsqrt.pop %v1171
        %v1173 = vmul.f32 %v1172, %v1171
        %v1174 = vmul.f32 %v1173, %v1172
        %v1175 = vmul.f32 0.5, %v1174
        %v1176 = vsub.f32 1.5, %v1175
        %v1177 = vmul.f32 %v1172, %v1176
        %vm1178 = vweird.f32 %v1171
        %vm1179 = vweird.f32 %v1172
        %vm1180 = vmor %vm1178, %vm1179
        %v1181 = vsel %vm1180, %v1172, %v1177
        %v1182 = vmul.f32 %v1165, %v1181
        %v1184 = vperm.slane %v852, 0
        %v1186 = vmul.f32 %v1182, %v1184
        %v1188 = vperm.slane %v853, 0
        %v1190 = vadd.f32 %v1186, %v1188
        %v1192 = vsel %vm904, %v1190, 0
        %1194 = vmatpush.msra.mxu0 0.0
        %1195 = vmatpush.msra.mxu0 0.0
        %1196 = vmatpush.msra.mxu0 0.0
        %1197 = vmatpush.msra.mxu0 0.0
        %1198 = vmatpush.msra.mxu0 0.0
        %1199 = vmatpush.msra.mxu0 0.0
        %1200 = vmatpush.msra.mxu0 0.0
        %1201 = vmatpush.msra.mxu0 0.0
        %1202 = vmatpush.msra.mxu0 0.0
        %1203 = vmatpush.msra.mxu0 0.0
        %1204 = vmatpush.msra.mxu0 0.0
        %1205 = vmatpush.msra.mxu0 0.0
        %1206 = vmatpush.msra.mxu0 %v857
        %1207 = vmatpush.msra.mxu0 %v856
        %1208 = vmatpush.msra.mxu0 %v855
        %1209 = vmatpush.msra.mxu0 %v854
        %1210 = vmatmul.f32.gmra.mxu0 %v1192
        %v1211 = vpop.f32.mrf.mxu0
        %v1212 = vadd.f32 0.0, %v1211
        %1213 = vdwg.mxu0
        %v1214 = vmul.f32 %v1212, 0.25
        %v1216 = vsel %vm904, %v903, 0
        %1218 = vmatpush.msra.mxu0 0.0
        %1219 = vmatpush.msra.mxu0 0.0
        %1220 = vmatpush.msra.mxu0 0.0
        %1221 = vmatpush.msra.mxu0 0.0
        %1222 = vmatpush.msra.mxu0 0.0
        %1223 = vmatpush.msra.mxu0 0.0
        %1224 = vmatpush.msra.mxu0 0.0
        %1225 = vmatpush.msra.mxu0 0.0
        %1226 = vmatpush.msra.mxu0 0.0
        %1227 = vmatpush.msra.mxu0 0.0
        %1228 = vmatpush.msra.mxu0 0.0
        %1229 = vmatpush.msra.mxu0 0.0
        %1230 = vmatpush.msra.mxu0 %v861
        %1231 = vmatpush.msra.mxu0 %v860
        %1232 = vmatpush.msra.mxu0 %v859
        %1233 = vmatpush.msra.mxu0 %v858
        %1234 = vmatmul.f32.gmra.mxu0 %v1216
        %v1235 = vpop.f32.mrf.mxu0
        %v1236 = vadd.f32 0.0, %v1235
        %1237 = vdwg.mxu0
        %1238 = vmatpush.msra.mxu0 0.0
        %1239 = vmatpush.msra.mxu0 0.0
        %1240 = vmatpush.msra.mxu0 0.0
        %1241 = vmatpush.msra.mxu0 0.0
        %1242 = vmatpush.msra.mxu0 0.0
        %1243 = vmatpush.msra.mxu0 0.0
        %1244 = vmatpush.msra.mxu0 0.0
        %1245 = vmatpush.msra.mxu0 0.0
        %1246 = vmatpush.msra.mxu0 0.0
        %1247 = vmatpush.msra.mxu0 0.0
        %1248 = vmatpush.msra.mxu0 0.0
        %1249 = vmatpush.msra.mxu0 0.0
        %1250 = vmatpush.msra.mxu0 %v865
        %1251 = vmatpush.msra.mxu0 %v864
        %1252 = vmatpush.msra.mxu0 %v863
        %1253 = vmatpush.msra.mxu0 %v862
        %1254 = vmatmul.f32.gmra.mxu0 %v1216
        %v1255 = vpop.f32.mrf.mxu0
        %v1256 = vadd.f32 0.0, %v1255
        %1257 = vdwg.mxu0
        %v1258 = vstv %s899
        %vm1259 = vcmp.lt.s32.totalorder %v973, %v1258
        %v1261 = vsel %vm982, %v1214, 0
        %v1264 = vsel %vm982, %v1236, 0
        %1266 = vmatpush.xpose.msra.mxu0 0.0
        %1267 = vmatpush.xpose.msra.mxu0 0.0
        %1268 = vmatpush.xpose.msra.mxu0 0.0
        %1269 = vmatpush.xpose.msra.mxu0 0.0
        %1270 = vmatpush.xpose.msra.mxu0 0.0
        %1271 = vmatpush.xpose.msra.mxu0 0.0
        %1272 = vmatpush.xpose.msra.mxu0 0.0
        %1273 = vmatpush.xpose.msra.mxu0 0.0
        %1274 = vmatpush.xpose.msra.mxu0 0.0
        %1275 = vmatpush.xpose.msra.mxu0 0.0
        %1276 = vmatpush.xpose.msra.mxu0 0.0
        %1277 = vmatpush.xpose.msra.mxu0 0.0
        %1278 = vmatpush.xpose.msra.mxu0 0.0
        %1279 = vmatpush.xpose.msra.mxu0 0.0
        %1280 = vmatpush.xpose.msra.mxu0 0.0
        %1281 = vmatpush.xpose.msra.mxu0 %v1264
        %1282 = vmatmul.f32.gmra.mxu0 %v1261
        %v1283 = vpop.f32.mrf.mxu0
        %v1284 = vadd.f32 0.0, %v1283
        %1285 = vdwg.mxu0
        %v1286 = vsel %vm1259, %v1284, -1e+20
        %v1287 = vsel %vm1012, %v1286, -inf
        %1288 = vmax.xlane.f32.xlu0 %v1287
        %v1289 = vpop.xlane.xlu0 %1288
        %v1290 = vsub.f32 %v1286, %v1289
        %v1291 = vmul.f32 %v1290, 1.442695
        %v1292 = vpow.pop %v1291
        %v1293 = vsel %vm1012, %v1292, 0.0
        %1294 = vadd.xlane.f32.xlu0 %v1293
        %v1295 = vpop.xlane.xlu0 %1294
        %v1296 = vrcp.pop %v1295
        %v1297 = vmul.f32 %v1295, %v1296
        %v1298 = vsub.f32 2.0, %v1297
        %v1299 = vmul.f32 %v1296, %v1298
        %v1300 = vmul.f32 %v1292, %v1299
        %v1302 = vsel %vm1012, %v1300, 0
        %1304 = vmatpush.msra.mxu0 0.0
        %1305 = vmatpush.msra.mxu0 0.0
        %1306 = vmatpush.msra.mxu0 0.0
        %1307 = vmatpush.msra.mxu0 0.0
        %1308 = vmatpush.msra.mxu0 0.0
        %1309 = vmatpush.msra.mxu0 0.0
        %1310 = vmatpush.msra.mxu0 0.0
        %1311 = vmatpush.msra.mxu0 0.0
        %1312 = vmatpush.msra.mxu0 0.0
        %1313 = vmatpush.msra.mxu0 0.0
        %1314 = vmatpush.msra.mxu0 0.0
        %1315 = vmatpush.msra.mxu0 0.0
        %1316 = vmatpush.msra.mxu0 0.0
        %1317 = vmatpush.msra.mxu0 0.0
        %1318 = vmatpush.msra.mxu0 0.0
        %1319 = vmatpush.msra.mxu0 %v1256
        %1320 = vmatmul.f32.gmra.mxu0 %v1302
        %v1321 = vpop.f32.mrf.mxu0
        %v1322 = vadd.f32 0.0, %v1321
        %1323 = vdwg.mxu0
        %1324 = vrot.lane.b32.xlu0 %v1214, 112
        %v1325 = vpop.permute.xlu0 %1324
        %1326 = vrot.lane.b32.xlu0 %v1236, 112
        %v1327 = vpop.permute.xlu0 %1326
        %v1328 = vsel %vm982, %v1325, 0
        %v1330 = vsel %vm982, %v1327, 0
        %1332 = vmatpush.xpose.msra.mxu0 0.0
        %1333 = vmatpush.xpose.msra.mxu0 0.0
        %1334 = vmatpush.xpose.msra.mxu0 0.0
        %1335 = vmatpush.xpose.msra.mxu0 0.0
        %1336 = vmatpush.xpose.msra.mxu0 0.0
        %1337 = vmatpush.xpose.msra.mxu0 0.0
        %1338 = vmatpush.xpose.msra.mxu0 0.0
        %1339 = vmatpush.xpose.msra.mxu0 0.0
        %1340 = vmatpush.xpose.msra.mxu0 0.0
        %1341 = vmatpush.xpose.msra.mxu0 0.0
        %1342 = vmatpush.xpose.msra.mxu0 0.0
        %1343 = vmatpush.xpose.msra.mxu0 0.0
        %1344 = vmatpush.xpose.msra.mxu0 0.0
        %1345 = vmatpush.xpose.msra.mxu0 0.0
        %1346 = vmatpush.xpose.msra.mxu0 0.0
        %1347 = vmatpush.xpose.msra.mxu0 %v1330
        %1348 = vmatmul.f32.gmra.mxu0 %v1328
        %v1349 = vpop.f32.mrf.mxu0
        %v1350 = vadd.f32 0.0, %v1349
        %1351 = vdwg.mxu0
        %v1352 = vsel %vm1259, %v1350, -1e+20
        %v1353 = vsel %vm1012, %v1352, -inf
        %1354 = vmax.xlane.f32.xlu0 %v1353
        %v1355 = vpop.xlane.xlu0 %1354
        %v1356 = vsub.f32 %v1352, %v1355
        %v1357 = vmul.f32 %v1356, 1.442695
        %v1358 = vpow.pop %v1357
        %v1359 = vsel %vm1012, %v1358, 0.0
        %1360 = vadd.xlane.f32.xlu0 %v1359
        %v1361 = vpop.xlane.xlu0 %1360
        %v1362 = vrcp.pop %v1361
        %v1363 = vmul.f32 %v1361, %v1362
        %v1364 = vsub.f32 2.0, %v1363
        %v1365 = vmul.f32 %v1362, %v1364
        %v1366 = vmul.f32 %v1358, %v1365
        %1368 = vrot.lane.b32.xlu0 %v1256, 112
        %v1369 = vpop.permute.xlu0 %1368
        %v1372 = vsel %vm1012, %v1366, 0
        %1374 = vmatpush.msra.mxu0 0.0
        %1375 = vmatpush.msra.mxu0 0.0
        %1376 = vmatpush.msra.mxu0 0.0
        %1377 = vmatpush.msra.mxu0 0.0
        %1378 = vmatpush.msra.mxu0 0.0
        %1379 = vmatpush.msra.mxu0 0.0
        %1380 = vmatpush.msra.mxu0 0.0
        %1381 = vmatpush.msra.mxu0 0.0
        %1382 = vmatpush.msra.mxu0 0.0
        %1383 = vmatpush.msra.mxu0 0.0
        %1384 = vmatpush.msra.mxu0 0.0
        %1385 = vmatpush.msra.mxu0 0.0
        %1386 = vmatpush.msra.mxu0 0.0
        %1387 = vmatpush.msra.mxu0 0.0
        %1388 = vmatpush.msra.mxu0 0.0
        %1389 = vmatpush.msra.mxu0 %v1369
        %1390 = vmatmul.f32.gmra.mxu0 %v1372
        %v1391 = vpop.f32.mrf.mxu0
        %v1392 = vadd.f32 0.0, %v1391
        %1393 = vdwg.mxu0
        %1395 = vrot.lane.b32.xlu0 %v1392, 16
        %v1396 = vpop.permute.xlu0 %1395
        %v1398 = vsel %vm982, %v1322, %v1396
        %v1400 = vperm.slane %v870, 0
        %v1403 = vsel %vm904, %v1398, 0
        %1405 = vmatpush.msra.mxu0 0.0
        %1406 = vmatpush.msra.mxu0 0.0
        %1407 = vmatpush.msra.mxu0 0.0
        %1408 = vmatpush.msra.mxu0 0.0
        %1409 = vmatpush.msra.mxu0 0.0
        %1410 = vmatpush.msra.mxu0 0.0
        %1411 = vmatpush.msra.mxu0 0.0
        %1412 = vmatpush.msra.mxu0 0.0
        %1413 = vmatpush.msra.mxu0 0.0
        %1414 = vmatpush.msra.mxu0 0.0
        %1415 = vmatpush.msra.mxu0 0.0
        %1416 = vmatpush.msra.mxu0 0.0
        %1417 = vmatpush.msra.mxu0 %v869
        %1418 = vmatpush.msra.mxu0 %v868
        %1419 = vmatpush.msra.mxu0 %v867
        %1420 = vmatpush.msra.mxu0 %v866
        %1421 = vmatmul.f32.gmra.mxu0 %v1403
        %v1422 = vpop.f32.mrf.mxu0
        %v1423 = vadd.f32 %v1400, %v1422
        %1424 = vdwg.mxu0
        %v1425 = vadd.f32 %v1423, %v1190
        %v1426 = vsel %vm904, %v1425, 0.0
        %1427 = vadd.xlane.f32.xlu0 %v1426
        %v1428 = vpop.xlane.xlu0 %1427
        %v1429 = vmul.f32 %v1428, %v1163
        %v1430 = vsub.f32 %v1425, %v1429
        %v1431 = vmul.f32 %v1430, %v1430
        %v1432 = vsel %vm904, %v1431, 0.0
        %1433 = vadd.xlane.f32.xlu0 %v1432
        %v1434 = vpop.xlane.xlu0 %1433
        %v1435 = vmul.f32 %v1434, %v1163
        %v1436 = vadd.f32 %v1435, 1e-06
        %v1437 = vrsqrt.pop %v1436
        %v1438 = vmul.f32 %v1437, %v1436
        %v1439 = vmul.f32 %v1438, %v1437
        %v1440 = vmul.f32 0.5, %v1439
        %v1441 = vsub.f32 1.5, %v1440
        %v1442 = vmul.f32 %v1437, %v1441
        %vm1443 = vweird.f32 %v1436
        %vm1444 = vweird.f32 %v1437
        %vm1445 = vmor %vm1443, %vm1444
        %v1446 = vsel %vm1445, %v1437, %v1442
        %v1447 = vmul.f32 %v1430, %v1446
        %v1449 = vperm.slane %v871, 0
        %v1451 = vmul.f32 %v1447, %v1449
        %v1453 = vperm.slane %v872, 0
        %v1455 = vadd.f32 %v1451, %v1453
        %v1457 = vperm.slane %v877, 0
        %v1460 = vsel %vm904, %v1455, 0
        %1462 = vmatpush.msra.mxu0 0.0
        %1463 = vmatpush.msra.mxu0 0.0
        %1464 = vmatpush.msra.mxu0 0.0
        %1465 = vmatpush.msra.mxu0 0.0
        %1466 = vmatpush.msra.mxu0 0.0
        %1467 = vmatpush.msra.mxu0 0.0
        %1468 = vmatpush.msra.mxu0 0.0
        %1469 = vmatpush.msra.mxu0 0.0
        %1470 = vmatpush.msra.mxu0 0.0
        %1471 = vmatpush.msra.mxu0 0.0
        %1472 = vmatpush.msra.mxu0 0.0
        %1473 = vmatpush.msra.mxu0 0.0
        %1474 = vmatpush.msra.mxu0 %v876
        %1475 = vmatpush.msra.mxu0 %v875
        %1476 = vmatpush.msra.mxu0 %v874
        %1477 = vmatpush.msra.mxu0 %v873
        %1478 = vmatmul.f32.gmra.mxu0 %v1460
        %v1479 = vpop.f32.mrf.mxu0
        %v1480 = vadd.f32 %v1457, %v1479
        %1481 = vdwg.mxu0
        %v1482 = vmax.f32 %v1480, 0.0
        %v1484 = vperm.slane %v894, 0
        %1486 = vmatpush.msra.mxu0 %v893
        %1487 = vmatpush.msra.mxu0 %v892
        %1488 = vmatpush.msra.mxu0 %v891
        %1489 = vmatpush.msra.mxu0 %v890
        %1490 = vmatpush.msra.mxu0 %v889
        %1491 = vmatpush.msra.mxu0 %v888
        %1492 = vmatpush.msra.mxu0 %v887
        %1493 = vmatpush.msra.mxu0 %v886
        %1494 = vmatpush.msra.mxu0 %v885
        %1495 = vmatpush.msra.mxu0 %v884
        %1496 = vmatpush.msra.mxu0 %v883
        %1497 = vmatpush.msra.mxu0 %v882
        %1498 = vmatpush.msra.mxu0 %v881
        %1499 = vmatpush.msra.mxu0 %v880
        %1500 = vmatpush.msra.mxu0 %v879
        %1501 = vmatpush.msra.mxu0 %v878
        %1502 = vmatmul.f32.gmra.mxu0 %v1482
        %v1503 = vpop.f32.mrf.mxu0
        %v1504 = vadd.f32 %v1484, %v1503
        %1505 = vdwg.mxu0
        %v1506 = vadd.f32 %v1504, %v1455
        %v1507 = vsel %vm904, %v1506, 0.0
        %1508 = vadd.xlane.f32.xlu0 %v1507
        %v1509 = vpop.xlane.xlu0 %1508
        %v1510 = vmul.f32 %v1509, %v1163
        %v1511 = vsub.f32 %v1506, %v1510
        %v1512 = vmul.f32 %v1511, %v1511
        %v1513 = vsel %vm904, %v1512, 0.0
        %1514 = vadd.xlane.f32.xlu0 %v1513
        %v1515 = vpop.xlane.xlu0 %1514
        %v1516 = vmul.f32 %v1515, %v1163
        %v1517 = vadd.f32 %v1516, 1e-06
        %v1518 = vrsqrt.pop %v1517
        %v1519 = vmul.f32 %v1518, %v1517
        %v1520 = vmul.f32 %v1519, %v1518
        %v1521 = vmul.f32 0.5, %v1520
        %v1522 = vsub.f32 1.5, %v1521
        %v1523 = vmul.f32 %v1518, %v1522
        %vm1524 = vweird.f32 %v1517
        %vm1525 = vweird.f32 %v1518
        %vm1526 = vmor %vm1524, %vm1525
        %v1527 = vsel %vm1526, %v1518, %v1523
        %v1528 = vmul.f32 %v1511, %v1527
        %v1530 = vperm.slane %v895, 0
        %v1532 = vmul.f32 %v1528, %v1530
        %v1534 = vperm.slane %v896, 0
        %v1536 = vadd.f32 %v1532, %v1534
        %1537 = vst.msk [vmem:[%s834] sm:$0xff] %vm904, %v1536
        %s1538 = sand.u32 %s553, 1
        %s1539 = scalar_lea.sflag [#allocation7], %s1538
        %s1540 = sand.u32 %s553, 1
        %s1541 = smul.addr %s1540, 8
        %s1542 = scalar_lea.vmem [#allocation16], %s1541
        // Predicated region
        $region133: #{tpu_custom_call.1} parent=107 // pred_check
          %p1543 = pneg %p563
        $region134: #{tpu_custom_call.1} parent=107 // pred_check_branch
          %1545 = sbr.rel (%p1543) target = $region136
        $region135: #{tpu_custom_call.1} parent=107 // pred_region
          %1547 = vsyncadd %s1539, 0
          %s1548 = sadd.s32 %s64, %s63
          %s1549 = smul.addr %s1548, 8
          %s1550 = scalar_lea.hbm %s24, %s1549
          %s1552 = sshll.u32 %s1542, 4
          %s1553 = int_to_ptr.vmem [resolvable:$true] %s1552
          %s1554 = sshll.u32 %s1550, 4
          %s1555 = int_to_ptr.hbm [resolvable:$true] %s1554
          %1557 = dma.vmem_to_hbm [thread:$0]  %s1553, 128, %s1555, %s1539
        $region136: #{tpu_custom_call.1} parent=107 // pred_fallthru
          _
      $region108: #{tpu_custom_call.1} parent=5 // pred_fallthru
        _
      %p1558 = scmp.le.s32.totalorder 2, %s54
      // Predicated region
      $region137: #{tpu_custom_call.1} parent=5 // pred_check
        %p1559 = pneg %p1558
      $region138: #{tpu_custom_call.1} parent=5 // pred_check_branch
        %1561 = sbr.rel (%p1559) target = $region140
      $region139: #{tpu_custom_call.1} parent=5 // pred_region
        %s1562 = ssub.s32 %s54, 2
        // Predicated region
        $region141: #{tpu_custom_call.1} parent=139 // pred_check
          %p1563 = pneg %p569
        $region142: #{tpu_custom_call.1} parent=139 // pred_check_branch
          %1565 = sbr.rel (%p1563) target = $region144
        $region143: #{tpu_custom_call.1} parent=139 // pred_region
          %s1566 = sand.u32 %s554, 1
          %s1567 = scalar_lea.sflag [#allocation7], %s1566
          %s1568 = sand.u32 %s554, 1
          %s1569 = smul.addr %s1568, 8
          %s1570 = scalar_lea.vmem [#allocation16], %s1569
          %1572 = dma.done %s1567, 128
        $region144: #{tpu_custom_call.1} parent=139 // pred_fallthru
          _
      $region140: #{tpu_custom_call.1} parent=5 // pred_fallthru
        _
    $region6: #{tpu_custom_call.1} parent=1 // loop_footer
      %s58 = sadd.s32 1, %s54
    $region7: #{tpu_custom_call.1} parent=1 // loop_footer_branch
      %53 = sbr.rel target = $region3
    $region8: #{tpu_custom_call.1} parent=1 // loop_exit
      _
    %1573 = vsyncpa [#allocation6], 1
    %s1574 = scalar_lea.sflag [#allocation6], 1
    %1575 = vsyncpa %s1574, 1
    %1576 = vsyncpa [#allocation9], 1
    %s1577 = scalar_lea.sflag [#allocation9], 1
    %1578 = vsyncpa %s1577, 1
    %1579 = vsyncpa [#allocation12], 1
    %1580 = vsyncpa [#allocation15], 1
    %1581 = vsyncpa [#allocation7], 1
    %s1582 = scalar_lea.sflag [#allocation7], 1
    %1583 = vsyncpa %s1582, 1

// kernel: tpu_custom_call.1
$region0: #{tpu_custom_call.1}
  #allocation0 [shape = 'u32[]', space=smem, size = 0x4, offset = 0x4, fixed_abs, tag = 'smem constant byte address 0x4 - core index']
  #allocation1 [shape = 'u32[72,128]{1,0:T(1,128)}', space=vmem, size = 0x9000, scoped, tag = 'internal scratch']
  #allocation2 [shape = 's32[1]{0}', space=sflag, size = 0x4, scoped, tag = 'scoped memory for tpu_custom_call.1']
  #allocation3 [shape = 'u8[512]{0}', space=smem, size = 0x200, scoped, tag = 'prefetched SMEM operand 0']
  #allocation4 [shape = 'u8[512]{0}', space=smem, size = 0x200, scoped, tag = 'prefetched SMEM operand 1']
  %s0 = inlined_call_operand.hbm [shape: s32[2], index: 0, kind: input, shape index: {}]
  %s1 = inlined_call_operand.hbm [shape: s32[2], index: 1, kind: input, shape index: {}]
  %s2 = inlined_call_operand.hbm [shape: f32[2,8,32], index: 2, kind: input, shape index: {}]
  %s3 = inlined_call_operand.hbm [shape: f32[2,8,32], index: 3, kind: input, shape index: {}]
  %s4 = inlined_call_operand.vmem [shape: f32[32,32], index: 4, kind: input, shape index: {}]
  %s5 = inlined_call_operand.vmem [shape: f32[32,32], index: 5, kind: input, shape index: {}]
  %s6 = inlined_call_operand.vmem [shape: f32[32,32], index: 6, kind: input, shape index: {}]
  %s7 = inlined_call_operand.vmem [shape: f32[32,32], index: 7, kind: input, shape index: {}]
  %s8 = inlined_call_operand.vmem [shape: f32[1,32], index: 8, kind: input, shape index: {}]
  %s9 = inlined_call_operand.vmem [shape: f32[1,32], index: 9, kind: input, shape index: {}]
  %s10 = inlined_call_operand.vmem [shape: f32[1,32], index: 10, kind: input, shape index: {}]
  %s11 = inlined_call_operand.vmem [shape: f32[32,32], index: 11, kind: input, shape index: {}]
  %s12 = inlined_call_operand.hbm [shape: f32[32,32], index: 12, kind: input, shape index: {}]
  %s13 = inlined_call_operand.hbm [shape: f32[32,32], index: 13, kind: input, shape index: {}]
  %s14 = inlined_call_operand.hbm [shape: f32[32,32], index: 14, kind: input, shape index: {}]
  %s15 = inlined_call_operand.vmem [shape: f32[1,32], index: 15, kind: input, shape index: {}]
  %s16 = inlined_call_operand.vmem [shape: f32[1,32], index: 16, kind: input, shape index: {}]
  %s17 = inlined_call_operand.vmem [shape: f32[1,32], index: 17, kind: input, shape index: {}]
  %s18 = inlined_call_operand.hbm [shape: f32[32,128], index: 18, kind: input, shape index: {}]
  %s19 = inlined_call_operand.vmem [shape: f32[1,128], index: 19, kind: input, shape index: {}]
  %s20 = inlined_call_operand.vmem [shape: f32[128,32], index: 20, kind: input, shape index: {}]
  %s21 = inlined_call_operand.vmem [shape: f32[1,32], index: 21, kind: input, shape index: {}]
  %s22 = inlined_call_operand.vmem [shape: f32[1,32], index: 22, kind: input, shape index: {}]
  %s23 = inlined_call_operand.vmem [shape: f32[1,32], index: 23, kind: input, shape index: {}]
  %s24 = inlined_call_operand.hbm [shape: f32[2,8,32], index: 24, kind: output, shape index: {}]
  %s25 = sld [smem:[#allocation0]]
  $region145: #{tpu_custom_call.1} parent=0
    _
  %s27 = ssub.s32 1, %s25
  %s28 = scalar_select 0, %s27, %s25
  %s30 = sshll.u32 %s0, 4
  %s31 = int_to_ptr.hbm [resolvable:$true] %s30
  %33 = dma.hbm_to_smem %s31, 16, [#allocation3], [#allocation2]
  %s35 = sshll.u32 %s1, 4
  %s36 = int_to_ptr.hbm [resolvable:$true] %s35
  %38 = dma.hbm_to_smem %s36, 16, [#allocation4], [#allocation2]
  %40 = dma.done [#allocation2], 32
  %41 = sfence
  $region1: #{tpu_custom_call.1} parent=0
    #allocation5 [shape = 'u8[8192]{0}', space=vmem, size = 0x2000, scoped, tag = 'input window, operand 2']
    #allocation6 [shape = 's32[2]{0}', space=sflag, size = 0x8, scoped, tag = 'scoped memory for tpu_custom_call.1']
    #allocation7 [shape = 's32[2]{0}', space=sflag, size = 0x8, scoped, tag = 'scoped memory for tpu_custom_call.1']
    #allocation8 [shape = 'u8[8192]{0}', space=vmem, size = 0x2000, scoped, tag = 'input window, operand 3']
    #allocation9 [shape = 's32[2]{0}', space=sflag, size = 0x8, scoped, tag = 'scoped memory for tpu_custom_call.1']
    #allocation10 [shape = 'u8[16384]{0}', space=vmem, size = 0x4000, scoped, tag = 'input window, operand 12, single buffered']
    #allocation11 [shape = 'u8[16384]{0}', space=vmem, size = 0x4000, scoped, tag = 'input window, operand 13, single buffered']
    #allocation12 [shape = 's32[1]{0}', space=sflag, size = 0x4, scoped, tag = 'scoped memory for tpu_custom_call.1']
    #allocation13 [shape = 'u8[16384]{0}', space=vmem, size = 0x4000, scoped, tag = 'input window, operand 14, single buffered']
    #allocation14 [shape = 'u8[16384]{0}', space=vmem, size = 0x4000, scoped, tag = 'input window, operand 18, single buffered']
    #allocation15 [shape = 's32[1]{0}', space=sflag, size = 0x4, scoped, tag = 'scoped memory for tpu_custom_call.1']
    #allocation16 [shape = 'u8[8192]{0}', space=vmem, size = 0x2000, scoped, tag = 'output window, operand 0']
    %42 = vsyncpa [#allocation6], 0
    %s43 = scalar_lea.sflag [#allocation6], 1
    %44 = vsyncpa %s43, 0
    %45 = vsyncpa [#allocation9], 0
    %s46 = scalar_lea.sflag [#allocation9], 1
    %47 = vsyncpa %s46, 0
    %48 = vsyncpa [#allocation12], 0
    %49 = vsyncpa [#allocation15], 0
    %50 = vsyncpa [#allocation7], 0
    %s51 = scalar_lea.sflag [#allocation7], 1
    %52 = vsyncpa %s51, 0
    loop: start=0, step=1, limit=4
    $region2: #{tpu_custom_call.1} parent=1 // loop_pre_header
      _
    $region3: #{tpu_custom_call.1} parent=1 // loop_header
      %s54 = sphi 0, %s58
      %p55 = scmp.ge.s32.totalorder %s54, 4
      %s61 = sphi 0, %s73
      %s62 = sphi 0, %s69
      %s63 = sphi 0, %s61
      %s64 = sphi 0, %s62
      %s65 = sphi 0, %s63
      %s66 = sphi 0, %s64
      %s76 = sphi 0, %s78
      %s79 = sphi 0, %s76
      %s80 = sphi 0, %s79
      %s96 = sphi 0, %s80
      %s102 = sphi 0, %s104
      %s105 = sphi 0, %s102
      %s106 = sphi 0, %s105
      %s122 = sphi 0, %s106
      %s126 = sphi 0, %s126
      %s128 = sphi 0, %s126
      %s129 = sphi 0, %s128
      %s143 = sphi 0, %s129
      %s147 = sphi 0, %s147
      %s149 = sphi 0, %s147
      %s150 = sphi 0, %s149
      %s164 = sphi 0, %s150
      %s168 = sphi 0, %s168
      %s170 = sphi 0, %s168
      %s171 = sphi 0, %s170
      %s185 = sphi 0, %s171
      %s189 = sphi 0, %s189
      %s191 = sphi 0, %s189
      %s192 = sphi 0, %s191
      %s206 = sphi 0, %s192
      %s210 = sphi 0, %s210
      %s212 = sphi 0, %s210
      %s213 = sphi 0, %s212
      %s227 = sphi 0, %s213
      %s231 = sphi 0, %s231
      %s233 = sphi 0, %s231
      %s234 = sphi 0, %s233
      %s248 = sphi 0, %s234
      %s252 = sphi 0, %s252
      %s254 = sphi 0, %s252
      %s255 = sphi 0, %s254
      %s269 = sphi 0, %s255
      %s273 = sphi 0, %s273
      %s275 = sphi 0, %s273
      %s276 = sphi 0, %s275
      %s290 = sphi 0, %s276
      %s294 = sphi 0, %s294
      %s296 = sphi 0, %s294
      %s297 = sphi 0, %s296
      %s311 = sphi 0, %s297
      %s315 = sphi 0, %s315
      %s317 = sphi 0, %s315
      %s318 = sphi 0, %s317
      %s332 = sphi 0, %s318
      %s336 = sphi 0, %s336
      %s338 = sphi 0, %s336
      %s339 = sphi 0, %s338
      %s353 = sphi 0, %s339
      %s357 = sphi 0, %s357
      %s359 = sphi 0, %s357
      %s360 = sphi 0, %s359
      %s374 = sphi 0, %s360
      %s378 = sphi 0, %s378
      %s380 = sphi 0, %s378
      %s381 = sphi 0, %s380
      %s395 = sphi 0, %s381
      %s399 = sphi 0, %s399
      %s401 = sphi 0, %s399
      %s402 = sphi 0, %s401
      %s416 = sphi 0, %s402
      %s420 = sphi 0, %s420
      %s422 = sphi 0, %s420
      %s423 = sphi 0, %s422
      %s437 = sphi 0, %s423
      %s441 = sphi 0, %s441
      %s443 = sphi 0, %s441
      %s444 = sphi 0, %s443
      %s458 = sphi 0, %s444
      %s462 = sphi 0, %s462
      %s464 = sphi 0, %s462
      %s465 = sphi 0, %s464
      %s479 = sphi 0, %s465
      %s483 = sphi 0, %s483
      %s485 = sphi 0, %s483
      %s486 = sphi 0, %s485
      %s500 = sphi 0, %s486
      %s504 = sphi 0, %s504
      %s506 = sphi 0, %s504
      %s507 = sphi 0, %s506
      %s521 = sphi 0, %s507
      %s525 = sphi 0, %s525
      %s527 = sphi 0, %s525
      %s528 = sphi 0, %s527
      %s542 = sphi 0, %s528
      %s550 = sphi 0, %s552
      %s553 = sphi 0, %s550
      %s554 = sphi 0, %s553
      %s570 = sphi 0, %s554
    $region4: #{tpu_custom_call.1} parent=1 // loop_header_branch
      %57 = sbr.rel (%p55) target = $region8
    $region5: #{tpu_custom_call.1} parent=1 // loop_body
      %s59 = ssub.s32 %s54, 1
      %s60 = ssub.s32 %s54, 2
      %s67 = sadd.s32 1, %s62
      %p68 = scmp.ge.s32.totalorder %s67, 1
      %s69 = scalar_select %p68, 0, %s67
      %s70 = sadd.s32 1, %s61
      %s71 = scalar_select %p68, %s70, %s61
      %p72 = scmp.ge.s32.totalorder %s71, 2
      %s73 = scalar_select %p72, 0, %s71
      %s74 = ssub.s32 %s61, %s73
      %p75 = scmp.eq.s32.totalorder %s74, 0
      %s77 = sadd.s32 %s76, 1
      %s78 = scalar_select %p75, %s76, %s77
      %p81 = pneg %p75
      %p82 = scmp.eq.s32.totalorder %s54, 1
      %p83 = por %p81, %p82
      %p84 = scmp.ne.s32.totalorder %s76, %s79
      %p85 = scmp.eq.s32.totalorder %s54, 0
      %p86 = por %p84, %p85
      %p87 = scmp.ne.s32.totalorder %s76, %s79
      %p88 = scmp.eq.s32.totalorder %s59, 1
      %p89 = por %p87, %p88
      %p90 = scmp.ne.s32.totalorder %s79, %s80
      %p91 = scmp.eq.s32.totalorder %s59, 0
      %p92 = por %p90, %p91
      %p93 = scmp.ne.s32.totalorder %s79, %s80
      %p94 = scmp.eq.s32.totalorder %s60, 1
      %p95 = por %p93, %p94
      %p97 = scmp.ne.s32.totalorder %s80, %s96
      %p98 = scmp.eq.s32.totalorder %s60, 0
      %p99 = por %p97, %p98
      %s100 = ssub.s32 %s61, %s73
      %p101 = scmp.eq.s32.totalorder %s100, 0
      %s103 = sadd.s32 %s102, 1
      %s104 = scalar_select %p101, %s102, %s103
      %p107 = pneg %p101
      %p108 = scmp.eq.s32.totalorder %s54, 1
      %p109 = por %p107, %p108
      %p110 = scmp.ne.s32.totalorder %s102, %s105
      %p111 = scmp.eq.s32.totalorder %s54, 0
      %p112 = por %p110, %p111
      %p113 = scmp.ne.s32.totalorder %s102, %s105
      %p114 = scmp.eq.s32.totalorder %s59, 1
      %p115 = por %p113, %p114
      %p116 = scmp.ne.s32.totalorder %s105, %s106
      %p117 = scmp.eq.s32.totalorder %s59, 0
      %p118 = por %p116, %p117
      %p119 = scmp.ne.s32.totalorder %s105, %s106
      %p120 = scmp.eq.s32.totalorder %s60, 1
      %p121 = por %p119, %p120
      %p123 = scmp.ne.s32.totalorder %s106, %s122
      %p124 = scmp.eq.s32.totalorder %s60, 0
      %p125 = por %p123, %p124
      %s127 = sadd.s32 %s126, 1
      %p130 = scmp.eq.s32.totalorder %s54, 1
      %p131 = scmp.ne.s32.totalorder %s126, %s128
      %p132 = scmp.eq.s32.totalorder %s54, 0
      %p133 = por %p131, %p132
      %p134 = scmp.ne.s32.totalorder %s126, %s128
      %p135 = scmp.eq.s32.totalorder %s59, 1
      %p136 = por %p134, %p135
      %p137 = scmp.ne.s32.totalorder %s128, %s129
      %p138 = scmp.eq.s32.totalorder %s59, 0
      %p139 = por %p137, %p138
      %p140 = scmp.ne.s32.totalorder %s128, %s129
      %p141 = scmp.eq.s32.totalorder %s60, 1
      %p142 = por %p140, %p141
      %p144 = scmp.ne.s32.totalorder %s129, %s143
      %p145 = scmp.eq.s32.totalorder %s60, 0
      %p146 = por %p144, %p145
      %s148 = sadd.s32 %s147, 1
      %p151 = scmp.eq.s32.totalorder %s54, 1
      %p152 = scmp.ne.s32.totalorder %s147, %s149
      %p153 = scmp.eq.s32.totalorder %s54, 0
      %p154 = por %p152, %p153
      %p155 = scmp.ne.s32.totalorder %s147, %s149
      %p156 = scmp.eq.s32.totalorder %s59, 1
      %p157 = por %p155, %p156
      %p158 = scmp.ne.s32.totalorder %s149, %s150
      %p159 = scmp.eq.s32.totalorder %s59, 0
      %p160 = por %p158, %p159
      %p161 = scmp.ne.s32.totalorder %s149, %s150
      %p162 = scmp.eq.s32.totalorder %s60, 1
      %p163 = por %p161, %p162
      %p165 = scmp.ne.s32.totalorder %s150, %s164
      %p166 = scmp.eq.s32.totalorder %s60, 0
      %p167 = por %p165, %p166
      %s169 = sadd.s32 %s168, 1
      %p172 = scmp.eq.s32.totalorder %s54, 1
      %p173 = scmp.ne.s32.totalorder %s168, %s170
      %p174 = scmp.eq.s32.totalorder %s54, 0
      %p175 = por %p173, %p174
      %p176 = scmp.ne.s32.totalorder %s168, %s170
      %p177 = scmp.eq.s32.totalorder %s59, 1
      %p178 = por %p176, %p177
      %p179 = scmp.ne.s32.totalorder %s170, %s171
      %p180 = scmp.eq.s32.totalorder %s59, 0
      %p181 = por %p179, %p180
      %p182 = scmp.ne.s32.totalorder %s170, %s171
      %p183 = scmp.eq.s32.totalorder %s60, 1
      %p184 = por %p182, %p183
      %p186 = scmp.ne.s32.totalorder %s171, %s185
      %p187 = scmp.eq.s32.totalorder %s60, 0
      %p188 = por %p186, %p187
      %s190 = sadd.s32 %s189, 1
      %p193 = scmp.eq.s32.totalorder %s54, 1
      %p194 = scmp.ne.s32.totalorder %s189, %s191
      %p195 = scmp.eq.s32.totalorder %s54, 0
      %p196 = por %p194, %p195
      %p197 = scmp.ne.s32.totalorder %s189, %s191
      %p198 = scmp.eq.s32.totalorder %s59, 1
      %p199 = por %p197, %p198
      %p200 = scmp.ne.s32.totalorder %s191, %s192
      %p201 = scmp.eq.s32.totalorder %s59, 0
      %p202 = por %p200, %p201
      %p203 = scmp.ne.s32.totalorder %s191, %s192
      %p204 = scmp.eq.s32.totalorder %s60, 1
      %p205 = por %p203, %p204
      %p207 = scmp.ne.s32.totalorder %s192, %s206
      %p208 = scmp.eq.s32.totalorder %s60, 0
      %p209 = por %p207, %p208
      %s211 = sadd.s32 %s210, 1
      %p214 = scmp.eq.s32.totalorder %s54, 1
      %p215 = scmp.ne.s32.totalorder %s210, %s212
      %p216 = scmp.eq.s32.totalorder %s54, 0
      %p217 = por %p215, %p216
      %p218 = scmp.ne.s32.totalorder %s210, %s212
      %p219 = scmp.eq.s32.totalorder %s59, 1
      %p220 = por %p218, %p219
      %p221 = scmp.ne.s32.totalorder %s212, %s213
      %p222 = scmp.eq.s32.totalorder %s59, 0
      %p223 = por %p221, %p222
      %p224 = scmp.ne.s32.totalorder %s212, %s213
      %p225 = scmp.eq.s32.totalorder %s60, 1
      %p226 = por %p224, %p225
      %p228 = scmp.ne.s32.totalorder %s213, %s227
      %p229 = scmp.eq.s32.totalorder %s60, 0
      %p230 = por %p228, %p229
      %s232 = sadd.s32 %s231, 1
      %p235 = scmp.eq.s32.totalorder %s54, 1
      %p236 = scmp.ne.s32.totalorder %s231, %s233
      %p237 = scmp.eq.s32.totalorder %s54, 0
      %p238 = por %p236, %p237
      %p239 = scmp.ne.s32.totalorder %s231, %s233
      %p240 = scmp.eq.s32.totalorder %s59, 1
      %p241 = por %p239, %p240
      %p242 = scmp.ne.s32.totalorder %s233, %s234
      %p243 = scmp.eq.s32.totalorder %s59, 0
      %p244 = por %p242, %p243
      %p245 = scmp.ne.s32.totalorder %s233, %s234
      %p246 = scmp.eq.s32.totalorder %s60, 1
      %p247 = por %p245, %p246
      %p249 = scmp.ne.s32.totalorder %s234, %s248
      %p250 = scmp.eq.s32.totalorder %s60, 0
      %p251 = por %p249, %p250
      %s253 = sadd.s32 %s252, 1
      %p256 = scmp.eq.s32.totalorder %s54, 1
      %p257 = scmp.ne.s32.totalorder %s252, %s254
      %p258 = scmp.eq.s32.totalorder %s54, 0
      %p259 = por %p257, %p258
      %p260 = scmp.ne.s32.totalorder %s252, %s254
      %p261 = scmp.eq.s32.totalorder %s59, 1
      %p262 = por %p260, %p261
      %p263 = scmp.ne.s32.totalorder %s254, %s255
      %p264 = scmp.eq.s32.totalorder %s59, 0
      %p265 = por %p263, %p264
      %p266 = scmp.ne.s32.totalorder %s254, %s255
      %p267 = scmp.eq.s32.totalorder %s60, 1
      %p268 = por %p266, %p267
      %p270 = scmp.ne.s32.totalorder %s255, %s269
      %p271 = scmp.eq.s32.totalorder %s60, 0
      %p272 = por %p270, %p271
      %s274 = sadd.s32 %s273, 1
      %p277 = scmp.eq.s32.totalorder %s54, 1
      %p278 = scmp.ne.s32.totalorder %s273, %s275
      %p279 = scmp.eq.s32.totalorder %s54, 0
      %p280 = por %p278, %p279
      %p281 = scmp.ne.s32.totalorder %s273, %s275
      %p282 = scmp.eq.s32.totalorder %s59, 1
      %p283 = por %p281, %p282
      %p284 = scmp.ne.s32.totalorder %s275, %s276
      %p285 = scmp.eq.s32.totalorder %s59, 0
      %p286 = por %p284, %p285
      %p287 = scmp.ne.s32.totalorder %s275, %s276
      %p288 = scmp.eq.s32.totalorder %s60, 1
      %p289 = por %p287, %p288
      %p291 = scmp.ne.s32.totalorder %s276, %s290
      %p292 = scmp.eq.s32.totalorder %s60, 0
      %p293 = por %p291, %p292
      %s295 = sadd.s32 %s294, 1
      %p298 = scmp.eq.s32.totalorder %s54, 1
      %p299 = scmp.ne.s32.totalorder %s294, %s296
      %p300 = scmp.eq.s32.totalorder %s54, 0
      %p301 = por %p299, %p300
      %p302 = scmp.ne.s32.totalorder %s294, %s296
      %p303 = scmp.eq.s32.totalorder %s59, 1
      %p304 = por %p302, %p303
      %p305 = scmp.ne.s32.totalorder %s296, %s297
      %p306 = scmp.eq.s32.totalorder %s59, 0
      %p307 = por %p305, %p306
      %p308 = scmp.ne.s32.totalorder %s296, %s297
      %p309 = scmp.eq.s32.totalorder %s60, 1
      %p310 = por %p308, %p309
      %p312 = scmp.ne.s32.totalorder %s297, %s311
      %p313 = scmp.eq.s32.totalorder %s60, 0
      %p314 = por %p312, %p313
      %s316 = sadd.s32 %s315, 1
      %p319 = scmp.eq.s32.totalorder %s54, 1
      %p320 = scmp.ne.s32.totalorder %s315, %s317
      %p321 = scmp.eq.s32.totalorder %s54, 0
      %p322 = por %p320, %p321
      %p323 = scmp.ne.s32.totalorder %s315, %s317
      %p324 = scmp.eq.s32.totalorder %s59, 1
      %p325 = por %p323, %p324
      %p326 = scmp.ne.s32.totalorder %s317, %s318
      %p327 = scmp.eq.s32.totalorder %s59, 0
      %p328 = por %p326, %p327
      %p329 = scmp.ne.s32.totalorder %s317, %s318
      %p330 = scmp.eq.s32.totalorder %s60, 1
      %p331 = por %p329, %p330
      %p333 = scmp.ne.s32.totalorder %s318, %s332
      %p334 = scmp.eq.s32.totalorder %s60, 0
      %p335 = por %p333, %p334
      %s337 = sadd.s32 %s336, 1
      %p340 = scmp.eq.s32.totalorder %s54, 1
      %p341 = scmp.ne.s32.totalorder %s336, %s338
      %p342 = scmp.eq.s32.totalorder %s54, 0
      %p343 = por %p341, %p342
      %p344 = scmp.ne.s32.totalorder %s336, %s338
      %p345 = scmp.eq.s32.totalorder %s59, 1
      %p346 = por %p344, %p345
      %p347 = scmp.ne.s32.totalorder %s338, %s339
      %p348 = scmp.eq.s32.totalorder %s59, 0
      %p349 = por %p347, %p348
      %p350 = scmp.ne.s32.totalorder %s338, %s339
      %p351 = scmp.eq.s32.totalorder %s60, 1
      %p352 = por %p350, %p351
      %p354 = scmp.ne.s32.totalorder %s339, %s353
      %p355 = scmp.eq.s32.totalorder %s60, 0
      %p356 = por %p354, %p355
      %s358 = sadd.s32 %s357, 1
      %p361 = scmp.eq.s32.totalorder %s54, 1
      %p362 = scmp.ne.s32.totalorder %s357, %s359
      %p363 = scmp.eq.s32.totalorder %s54, 0
      %p364 = por %p362, %p363
      %p365 = scmp.ne.s32.totalorder %s357, %s359
      %p366 = scmp.eq.s32.totalorder %s59, 1
      %p367 = por %p365, %p366
      %p368 = scmp.ne.s32.totalorder %s359, %s360
      %p369 = scmp.eq.s32.totalorder %s59, 0
      %p370 = por %p368, %p369
      %p371 = scmp.ne.s32.totalorder %s359, %s360
      %p372 = scmp.eq.s32.totalorder %s60, 1
      %p373 = por %p371, %p372
      %p375 = scmp.ne.s32.totalorder %s360, %s374
      %p376 = scmp.eq.s32.totalorder %s60, 0
      %p377 = por %p375, %p376
      %s379 = sadd.s32 %s378, 1
      %p382 = scmp.eq.s32.totalorder %s54, 1
      %p383 = scmp.ne.s32.totalorder %s378, %s380
      %p384 = scmp.eq.s32.totalorder %s54, 0
      %p385 = por %p383, %p384
      %p386 = scmp.ne.s32.totalorder %s378, %s380
      %p387 = scmp.eq.s32.totalorder %s59, 1
      %p388 = por %p386, %p387
      %p389 = scmp.ne.s32.totalorder %s380, %s381
      %p390 = scmp.eq.s32.totalorder %s59, 0
      %p391 = por %p389, %p390
      %p392 = scmp.ne.s32.totalorder %s380, %s381
      %p393 = scmp.eq.s32.totalorder %s60, 1
      %p394 = por %p392, %p393
      %p396 = scmp.ne.s32.totalorder %s381, %s395
      %p397 = scmp.eq.s32.totalorder %s60, 0
      %p398 = por %p396, %p397
      %s400 = sadd.s32 %s399, 1
      %p403 = scmp.eq.s32.totalorder %s54, 1
      %p404 = scmp.ne.s32.totalorder %s399, %s401
      %p405 = scmp.eq.s32.totalorder %s54, 0
      %p406 = por %p404, %p405
      %p407 = scmp.ne.s32.totalorder %s399, %s401
      %p408 = scmp.eq.s32.totalorder %s59, 1
      %p409 = por %p407, %p408
      %p410 = scmp.ne.s32.totalorder %s401, %s402
      %p411 = scmp.eq.s32.totalorder %s59, 0
      %p412 = por %p410, %p411
      %p413 = scmp.ne.s32.totalorder %s401, %s402
      %p414 = scmp.eq.s32.totalorder %s60, 1
      %p415 = por %p413, %p414
      %p417 = scmp.ne.s32.totalorder %s402, %s416
      %p418 = scmp.eq.s32.totalorder %s60, 0
      %p419 = por %p417, %p418
      %s421 = sadd.s32 %s420, 1
      %p424 = scmp.eq.s32.totalorder %s54, 1
      %p425 = scmp.ne.s32.totalorder %s420, %s422
      %p426 = scmp.eq.s32.totalorder %s54, 0
      %p427 = por %p425, %p426
      %p428 = scmp.ne.s32.totalorder %s420, %s422
      %p429 = scmp.eq.s32.totalorder %s59, 1
      %p430 = por %p428, %p429
      %p431 = scmp.ne.s32.totalorder %s422, %s423
      %p432 = scmp.eq.s32.totalorder %s59, 0
      %p433 = por %p431, %p432
      %p434 = scmp.ne.s32.totalorder %s422, %s423
      %p435 = scmp.eq.s32.totalorder %s60, 1
      %p436 = por %p434, %p435
      %p438 = scmp.ne.s32.totalorder %s423, %s437
      %p439 = scmp.eq.s32.totalorder %s60, 0
      %p440 = por %p438, %p439
      %s442 = sadd.s32 %s441, 1
      %p445 = scmp.eq.s32.totalorder %s54, 1
      %p446 = scmp.ne.s32.totalorder %s441, %s443
      %p447 = scmp.eq.s32.totalorder %s54, 0
      %p448 = por %p446, %p447
      %p449 = scmp.ne.s32.totalorder %s441, %s443
      %p450 = scmp.eq.s32.totalorder %s59, 1
      %p451 = por %p449, %p450
      %p452 = scmp.ne.s32.totalorder %s443, %s444
      %p453 = scmp.eq.s32.totalorder %s59, 0
      %p454 = por %p452, %p453
      %p455 = scmp.ne.s32.totalorder %s443, %s444
      %p456 = scmp.eq.s32.totalorder %s60, 1
      %p457 = por %p455, %p456
      %p459 = scmp.ne.s32.totalorder %s444, %s458
      %p460 = scmp.eq.s32.totalorder %s60, 0
      %p461 = por %p459, %p460
      %s463 = sadd.s32 %s462, 1
      %p466 = scmp.eq.s32.totalorder %s54, 1
      %p467 = scmp.ne.s32.totalorder %s462, %s464
      %p468 = scmp.eq.s32.totalorder %s54, 0
      %p469 = por %p467, %p468
      %p470 = scmp.ne.s32.totalorder %s462, %s464
      %p471 = scmp.eq.s32.totalorder %s59, 1
      %p472 = por %p470, %p471
      %p473 = scmp.ne.s32.totalorder %s464, %s465
      %p474 = scmp.eq.s32.totalorder %s59, 0
      %p475 = por %p473, %p474
      %p476 = scmp.ne.s32.totalorder %s464, %s465
      %p477 = scmp.eq.s32.totalorder %s60, 1
      %p478 = por %p476, %p477
      %p480 = scmp.ne.s32.totalorder %s465, %s479
      %p481 = scmp.eq.s32.totalorder %s60, 0
      %p482 = por %p480, %p481
      %s484 = sadd.s32 %s483, 1
      %p487 = scmp.eq.s32.totalorder %s54, 1
      %p488 = scmp.ne.s32.totalorder %s483, %s485
      %p489 = scmp.eq.s32.totalorder %s54, 0
      %p490 = por %p488, %p489
      %p491 = scmp.ne.s32.totalorder %s483, %s485
      %p492 = scmp.eq.s32.totalorder %s59, 1
      %p493 = por %p491, %p492
      %p494 = scmp.ne.s32.totalorder %s485, %s486
      %p495 = scmp.eq.s32.totalorder %s59, 0
      %p496 = por %p494, %p495
      %p497 = scmp.ne.s32.totalorder %s485, %s486
      %p498 = scmp.eq.s32.totalorder %s60, 1
      %p499 = por %p497, %p498
      %p501 = scmp.ne.s32.totalorder %s486, %s500
      %p502 = scmp.eq.s32.totalorder %s60, 0
      %p503 = por %p501, %p502
      %s505 = sadd.s32 %s504, 1
      %p508 = scmp.eq.s32.totalorder %s54, 1
      %p509 = scmp.ne.s32.totalorder %s504, %s506
      %p510 = scmp.eq.s32.totalorder %s54, 0
      %p511 = por %p509, %p510
      %p512 = scmp.ne.s32.totalorder %s504, %s506
      %p513 = scmp.eq.s32.totalorder %s59, 1
      %p514 = por %p512, %p513
      %p515 = scmp.ne.s32.totalorder %s506, %s507
      %p516 = scmp.eq.s32.totalorder %s59, 0
      %p517 = por %p515, %p516
      %p518 = scmp.ne.s32.totalorder %s506, %s507
      %p519 = scmp.eq.s32.totalorder %s60, 1
      %p520 = por %p518, %p519
      %p522 = scmp.ne.s32.totalorder %s507, %s521
      %p523 = scmp.eq.s32.totalorder %s60, 0
      %p524 = por %p522, %p523
      %s526 = sadd.s32 %s525, 1
      %p529 = scmp.eq.s32.totalorder %s54, 1
      %p530 = scmp.ne.s32.totalorder %s525, %s527
      %p531 = scmp.eq.s32.totalorder %s54, 0
      %p532 = por %p530, %p531
      %p533 = scmp.ne.s32.totalorder %s525, %s527
      %p534 = scmp.eq.s32.totalorder %s59, 1
      %p535 = por %p533, %p534
      %p536 = scmp.ne.s32.totalorder %s527, %s528
      %p537 = scmp.eq.s32.totalorder %s59, 0
      %p538 = por %p536, %p537
      %p539 = scmp.ne.s32.totalorder %s527, %s528
      %p540 = scmp.eq.s32.totalorder %s60, 1
      %p541 = por %p539, %p540
      %p543 = scmp.ne.s32.totalorder %s528, %s542
      %p544 = scmp.eq.s32.totalorder %s60, 0
      %p545 = por %p543, %p544
      %s546 = ssub.s32 %s61, %s73
      %s547 = ssub.s32 %s62, %s69
      %s548 = sor.u32 %s546, %s547
      %p549 = scmp.eq.s32.totalorder %s548, 0
      %s551 = sadd.s32 %s550, 1
      %s552 = scalar_select %p549, %s550, %s551
      %p555 = pneg %p549
      %p556 = scmp.eq.s32.totalorder %s54, 1
      %p557 = por %p555, %p556
      %p558 = scmp.ne.s32.totalorder %s550, %s553
      %p559 = scmp.eq.s32.totalorder %s54, 0
      %p560 = por %p558, %p559
      %p561 = scmp.ne.s32.totalorder %s550, %s553
      %p562 = scmp.eq.s32.totalorder %s59, 1
      %p563 = por %p561, %p562
      %p564 = scmp.ne.s32.totalorder %s553, %s554
      %p565 = scmp.eq.s32.totalorder %s59, 0
      %p566 = por %p564, %p565
      %p567 = scmp.ne.s32.totalorder %s553, %s554
      %p568 = scmp.eq.s32.totalorder %s60, 1
      %p569 = por %p567, %p568
      %p571 = scmp.ne.s32.totalorder %s554, %s570
      %p572 = scmp.eq.s32.totalorder %s60, 0
      %p573 = por %p571, %p572
      %p574 = scmp.le.s32.totalorder 1, %s54
      %p575 = scmp.lt.s32.totalorder %s54, 3
      %p576 = pnand %p574, %p575
      %p577 = pneg %p576
      // Predicated region
      $region9: #{tpu_custom_call.1} parent=5 // pred_check
        _
      $region10: #{tpu_custom_call.1} parent=5 // pred_check_branch
        %579 = sbr.rel (%p576) target = $region12
      $region11: #{tpu_custom_call.1} parent=5 // pred_region
        %s580 = ssub.s32 %s54, 1
        // Predicated region
        $region13: #{tpu_custom_call.1} parent=11 // pred_check
          %p581 = pneg %p139
        $region14: #{tpu_custom_call.1} parent=11 // pred_check_branch
          %583 = sbr.rel (%p581) target = $region16
        $region15: #{tpu_custom_call.1} parent=11 // pred_region
          _
        $region16: #{tpu_custom_call.1} parent=11 // pred_fallthru
          _
        // Predicated region
        $region17: #{tpu_custom_call.1} parent=11 // pred_check
          %p584 = pneg %p160
        $region18: #{tpu_custom_call.1} parent=11 // pred_check_branch
          %586 = sbr.rel (%p584) target = $region20
        $region19: #{tpu_custom_call.1} parent=11 // pred_region
          _
        $region20: #{tpu_custom_call.1} parent=11 // pred_fallthru
          _
        // Predicated region
        $region21: #{tpu_custom_call.1} parent=11 // pred_check
          %p587 = pneg %p181
        $region22: #{tpu_custom_call.1} parent=11 // pred_check_branch
          %589 = sbr.rel (%p587) target = $region24
        $region23: #{tpu_custom_call.1} parent=11 // pred_region
          _
        $region24: #{tpu_custom_call.1} parent=11 // pred_fallthru
          _
        // Predicated region
        $region25: #{tpu_custom_call.1} parent=11 // pred_check
          %p590 = pneg %p202
        $region26: #{tpu_custom_call.1} parent=11 // pred_check_branch
          %592 = sbr.rel (%p590) target = $region28
        $region27: #{tpu_custom_call.1} parent=11 // pred_region
          _
        $region28: #{tpu_custom_call.1} parent=11 // pred_fallthru
          _
        // Predicated region
        $region29: #{tpu_custom_call.1} parent=11 // pred_check
          %p593 = pneg %p223
        $region30: #{tpu_custom_call.1} parent=11 // pred_check_branch
          %595 = sbr.rel (%p593) target = $region32
        $region31: #{tpu_custom_call.1} parent=11 // pred_region
          _
        $region32: #{tpu_custom_call.1} parent=11 // pred_fallthru
          _
        // Predicated region
        $region33: #{tpu_custom_call.1} parent=11 // pred_check
          %p596 = pneg %p244
        $region34: #{tpu_custom_call.1} parent=11 // pred_check_branch
          %598 = sbr.rel (%p596) target = $region36
        $region35: #{tpu_custom_call.1} parent=11 // pred_region
          _
        $region36: #{tpu_custom_call.1} parent=11 // pred_fallthru
          _
        // Predicated region
        $region37: #{tpu_custom_call.1} parent=11 // pred_check
          %p599 = pneg %p265
        $region38: #{tpu_custom_call.1} parent=11 // pred_check_branch
          %601 = sbr.rel (%p599) target = $region40
        $region39: #{tpu_custom_call.1} parent=11 // pred_region
          _
        $region40: #{tpu_custom_call.1} parent=11 // pred_fallthru
          _
        // Predicated region
        $region41: #{tpu_custom_call.1} parent=11 // pred_check
          %p602 = pneg %p286
        $region42: #{tpu_custom_call.1} parent=11 // pred_check_branch
          %604 = sbr.rel (%p602) target = $region44
        $region43: #{tpu_custom_call.1} parent=11 // pred_region
          _
        $region44: #{tpu_custom_call.1} parent=11 // pred_fallthru
          _
        // Predicated region
        $region45: #{tpu_custom_call.1} parent=11 // pred_check
          %p605 = pneg %p307
        $region46: #{tpu_custom_call.1} parent=11 // pred_check_branch
          %607 = sbr.rel (%p605) target = $region48
        $region47: #{tpu_custom_call.1} parent=11 // pred_region
          %609 = vsyncadd [#allocation9], 0
          %s610 = sshll.u32 %s12, 4
          %s611 = int_to_ptr.hbm [resolvable:$true] %s610
          %s612 = sshll.u32 [#allocation10], 4
          %s613 = int_to_ptr.vmem [resolvable:$true] %s612
          %618 = dma.hbm_to_vmem [thread:$0]  %s611, 512, %s613, [#allocation9], 128, 128, 8
        $region48: #{tpu_custom_call.1} parent=11 // pred_fallthru
          _
        // Predicated region
        $region49: #{tpu_custom_call.1} parent=11 // pred_check
          %p619 = pneg %p328
        $region50: #{tpu_custom_call.1} parent=11 // pred_check_branch
          %621 = sbr.rel (%p619) target = $region52
        $region51: #{tpu_custom_call.1} parent=11 // pred_region
          %623 = vsyncadd [#allocation12], 0
          %s624 = sshll.u32 %s13, 4
          %s625 = int_to_ptr.hbm [resolvable:$true] %s624
          %s626 = sshll.u32 [#allocation11], 4
          %s627 = int_to_ptr.vmem [resolvable:$true] %s626
          %632 = dma.hbm_to_vmem [thread:$0]  %s625, 512, %s627, [#allocation12], 128, 128, 8
        $region52: #{tpu_custom_call.1} parent=11 // pred_fallthru
          _
        // Predicated region
        $region53: #{tpu_custom_call.1} parent=11 // pred_check
          %p633 = pneg %p349
        $region54: #{tpu_custom_call.1} parent=11 // pred_check_branch
          %635 = sbr.rel (%p633) target = $region56
        $region55: #{tpu_custom_call.1} parent=11 // pred_region
          %637 = vsyncadd [#allocation12], 0
          %s638 = sshll.u32 %s14, 4
          %s639 = int_to_ptr.hbm [resolvable:$true] %s638
          %s640 = sshll.u32 [#allocation13], 4
          %s641 = int_to_ptr.vmem [resolvable:$true] %s640
          %646 = dma.hbm_to_vmem [thread:$0]  %s639, 512, %s641, [#allocation12], 128, 128, 8
        $region56: #{tpu_custom_call.1} parent=11 // pred_fallthru
          _
        // Predicated region
        $region57: #{tpu_custom_call.1} parent=11 // pred_check
          %p647 = pneg %p370
        $region58: #{tpu_custom_call.1} parent=11 // pred_check_branch
          %649 = sbr.rel (%p647) target = $region60
        $region59: #{tpu_custom_call.1} parent=11 // pred_region
          _
        $region60: #{tpu_custom_call.1} parent=11 // pred_fallthru
          _
        // Predicated region
        $region61: #{tpu_custom_call.1} parent=11 // pred_check
          %p650 = pneg %p391
        $region62: #{tpu_custom_call.1} parent=11 // pred_check_branch
          %652 = sbr.rel (%p650) target = $region64
        $region63: #{tpu_custom_call.1} parent=11 // pred_region
          _
        $region64: #{tpu_custom_call.1} parent=11 // pred_fallthru
          _
        // Predicated region
        $region65: #{tpu_custom_call.1} parent=11 // pred_check
          %p653 = pneg %p412
        $region66: #{tpu_custom_call.1} parent=11 // pred_check_branch
          %655 = sbr.rel (%p653) target = $region68
        $region67: #{tpu_custom_call.1} parent=11 // pred_region
          _
        $region68: #{tpu_custom_call.1} parent=11 // pred_fallthru
          _
        // Predicated region
        $region69: #{tpu_custom_call.1} parent=11 // pred_check
          %p656 = pneg %p433
        $region70: #{tpu_custom_call.1} parent=11 // pred_check_branch
          %658 = sbr.rel (%p656) target = $region72
        $region71: #{tpu_custom_call.1} parent=11 // pred_region
          %660 = vsyncadd [#allocation15], 0
          %s661 = sshll.u32 %s18, 4
          %s662 = int_to_ptr.hbm [resolvable:$true] %s661
          %s663 = sshll.u32 [#allocation14], 4
          %s664 = int_to_ptr.vmem [resolvable:$true] %s663
          %669 = dma.hbm_to_vmem [thread:$0]  %s662, 512, %s664, [#allocation15], 128, 128, 8
        $region72: #{tpu_custom_call.1} parent=11 // pred_fallthru
          _
        // Predicated region
        $region73: #{tpu_custom_call.1} parent=11 // pred_check
          %p670 = pneg %p454
        $region74: #{tpu_custom_call.1} parent=11 // pred_check_branch
          %672 = sbr.rel (%p670) target = $region76
        $region75: #{tpu_custom_call.1} parent=11 // pred_region
          _
        $region76: #{tpu_custom_call.1} parent=11 // pred_fallthru
          _
        // Predicated region
        $region77: #{tpu_custom_call.1} parent=11 // pred_check
          %p673 = pneg %p475
        $region78: #{tpu_custom_call.1} parent=11 // pred_check_branch
          %675 = sbr.rel (%p673) target = $region80
        $region79: #{tpu_custom_call.1} parent=11 // pred_region
          _
        $region80: #{tpu_custom_call.1} parent=11 // pred_fallthru
          _
        // Predicated region
        $region81: #{tpu_custom_call.1} parent=11 // pred_check
          %p676 = pneg %p496
        $region82: #{tpu_custom_call.1} parent=11 // pred_check_branch
          %678 = sbr.rel (%p676) target = $region84
        $region83: #{tpu_custom_call.1} parent=11 // pred_region
          _
        $region84: #{tpu_custom_call.1} parent=11 // pred_fallthru
          _
        // Predicated region
        $region85: #{tpu_custom_call.1} parent=11 // pred_check
          %p679 = pneg %p517
        $region86: #{tpu_custom_call.1} parent=11 // pred_check_branch
          %681 = sbr.rel (%p679) target = $region88
        $region87: #{tpu_custom_call.1} parent=11 // pred_region
          _
        $region88: #{tpu_custom_call.1} parent=11 // pred_fallthru
          _
        // Predicated region
        $region89: #{tpu_custom_call.1} parent=11 // pred_check
          %p682 = pneg %p538
        $region90: #{tpu_custom_call.1} parent=11 // pred_check_branch
          %684 = sbr.rel (%p682) target = $region92
        $region91: #{tpu_custom_call.1} parent=11 // pred_region
          _
        $region92: #{tpu_custom_call.1} parent=11 // pred_fallthru
          _
      $region12: #{tpu_custom_call.1} parent=5 // pred_fallthru
        _
      %p685 = scmp.lt.s32.totalorder %s54, 2
      // Predicated region
      $region93: #{tpu_custom_call.1} parent=5 // pred_check
        %p686 = pneg %p685
      $region94: #{tpu_custom_call.1} parent=5 // pred_check_branch
        %688 = sbr.rel (%p686) target = $region96
      $region95: #{tpu_custom_call.1} parent=5 // pred_region
        // Predicated region
        $region97: #{tpu_custom_call.1} parent=95 // pred_check
          %p689 = pneg %p86
        $region98: #{tpu_custom_call.1} parent=95 // pred_check_branch
          %691 = sbr.rel (%p689) target = $region100
        $region99: #{tpu_custom_call.1} parent=95 // pred_region
          %s692 = sand.u32 %s76, 1
          %s693 = scalar_lea.sflag [#allocation6], %s692
          %s694 = sand.u32 %s76, 1
          %s695 = smul.addr %s694, 8
          %s696 = scalar_lea.vmem [#allocation5], %s695
          %698 = vsyncadd %s693, 0
          %s699 = smul.addr %s61, 8
          %s700 = scalar_lea.hbm %s2, %s699
          %s702 = sshll.u32 %s700, 4
          %s703 = int_to_ptr.hbm [resolvable:$true] %s702
          %s704 = sshll.u32 %s696, 4
          %s705 = int_to_ptr.vmem [resolvable:$true] %s704
          %707 = dma.hbm_to_vmem [thread:$0]  %s703, 128, %s705, %s693
        $region100: #{tpu_custom_call.1} parent=95 // pred_fallthru
          _
        // Predicated region
        $region101: #{tpu_custom_call.1} parent=95 // pred_check
          %p708 = pneg %p112
        $region102: #{tpu_custom_call.1} parent=95 // pred_check_branch
          %710 = sbr.rel (%p708) target = $region104
        $region103: #{tpu_custom_call.1} parent=95 // pred_region
          %s711 = sand.u32 %s54, 1
          %s712 = scalar_lea.sflag [#allocation9], %s711
          %s713 = sand.u32 %s102, 1
          %s714 = smul.addr %s713, 8
          %s715 = scalar_lea.vmem [#allocation8], %s714
          %717 = vsyncadd %s712, 0
          %s718 = smul.addr %s61, 8
          %s719 = scalar_lea.hbm %s3, %s718
          %s721 = sshll.u32 %s719, 4
          %s722 = int_to_ptr.hbm [resolvable:$true] %s721
          %s723 = sshll.u32 %s715, 4
          %s724 = int_to_ptr.vmem [resolvable:$true] %s723
          %726 = dma.hbm_to_vmem [thread:$0]  %s722, 128, %s724, %s712
        $region104: #{tpu_custom_call.1} parent=95 // pred_fallthru
          _
      $region96: #{tpu_custom_call.1} parent=5 // pred_fallthru
        _
      %p727 = scmp.le.s32.totalorder 1, %s54
      %p728 = scmp.lt.s32.totalorder %s54, 3
      %p729 = pnand %p727, %p728
      %p730 = pneg %p729
      // Predicated region
      $region105: #{tpu_custom_call.1} parent=5 // pred_check
        _
      $region106: #{tpu_custom_call.1} parent=5 // pred_check_branch
        %732 = sbr.rel (%p729) target = $region108
      $region107: #{tpu_custom_call.1} parent=5 // pred_region
        %s733 = ssub.s32 %s54, 1
        %s734 = sand.u32 %s79, 1
        %s735 = scalar_lea.sflag [#allocation6], %s734
        %s736 = sand.u32 %s79, 1
        %s737 = smul.addr %s736, 8
        %s738 = scalar_lea.vmem [#allocation5], %s737
        // Predicated region
        $region109: #{tpu_custom_call.1} parent=107 // pred_check
          %p739 = pneg %p92
        $region110: #{tpu_custom_call.1} parent=107 // pred_check_branch
          %741 = sbr.rel (%p739) target = $region112
        $region111: #{tpu_custom_call.1} parent=107 // pred_region
          %743 = dma.done %s735, 128
        $region112: #{tpu_custom_call.1} parent=107 // pred_fallthru
          _
        %s744 = sand.u32 %s59, 1
        %s745 = scalar_lea.sflag [#allocation9], %s744
        %s746 = sand.u32 %s105, 1
        %s747 = smul.addr %s746, 8
        %s748 = scalar_lea.vmem [#allocation8], %s747
        // Predicated region
        $region113: #{tpu_custom_call.1} parent=107 // pred_check
          %p749 = pneg %p118
        $region114: #{tpu_custom_call.1} parent=107 // pred_check_branch
          %751 = sbr.rel (%p749) target = $region116
        $region115: #{tpu_custom_call.1} parent=107 // pred_region
          %753 = dma.done %s745, 128
        $region116: #{tpu_custom_call.1} parent=107 // pred_fallthru
          _
        // Predicated region
        $region117: #{tpu_custom_call.1} parent=107 // pred_check
          %p754 = pneg %p307
        $region118: #{tpu_custom_call.1} parent=107 // pred_check_branch
          %756 = sbr.rel (%p754) target = $region120
        $region119: #{tpu_custom_call.1} parent=107 // pred_region
          %758 = dma.done [#allocation9], 512
        $region120: #{tpu_custom_call.1} parent=107 // pred_fallthru
          _
        // Predicated region
        $region121: #{tpu_custom_call.1} parent=107 // pred_check
          %p759 = pneg %p328
        $region122: #{tpu_custom_call.1} parent=107 // pred_check_branch
          %761 = sbr.rel (%p759) target = $region124
        $region123: #{tpu_custom_call.1} parent=107 // pred_region
          %763 = dma.done [#allocation12], 512
        $region124: #{tpu_custom_call.1} parent=107 // pred_fallthru
          _
        // Predicated region
        $region125: #{tpu_custom_call.1} parent=107 // pred_check
          %p764 = pneg %p349
        $region126: #{tpu_custom_call.1} parent=107 // pred_check_branch
          %766 = sbr.rel (%p764) target = $region128
        $region127: #{tpu_custom_call.1} parent=107 // pred_region
          %768 = dma.done [#allocation12], 512
        $region128: #{tpu_custom_call.1} parent=107 // pred_fallthru
          _
        // Predicated region
        $region129: #{tpu_custom_call.1} parent=107 // pred_check
          %p769 = pneg %p433
        $region130: #{tpu_custom_call.1} parent=107 // pred_check_branch
          %771 = sbr.rel (%p769) target = $region132
        $region131: #{tpu_custom_call.1} parent=107 // pred_region
          %773 = dma.done [#allocation15], 512
        $region132: #{tpu_custom_call.1} parent=107 // pred_fallthru
          _
        %s774 = sand.u32 %s79, 1
        %s775 = scalar_lea.sflag [#allocation6], %s774
        %s776 = sand.u32 %s79, 1
        %s777 = smul.addr %s776, 8
        %s778 = scalar_lea.vmem [#allocation5], %s777
        %p779 = pneg %p92
        %p780 = pneg %p89
        %s781 = sand.u32 %s59, 1
        %s782 = scalar_lea.sflag [#allocation9], %s781
        %s783 = sand.u32 %s105, 1
        %s784 = smul.addr %s783, 8
        %s785 = scalar_lea.vmem [#allocation8], %s784
        %p786 = pneg %p118
        %p787 = pneg %p115
        %p788 = pneg %p139
        %p789 = pneg %p136
        %p790 = pneg %p160
        %p791 = pneg %p157
        %p792 = pneg %p181
        %p793 = pneg %p178
        %p794 = pneg %p202
        %p795 = pneg %p199
        %p796 = pneg %p223
        %p797 = pneg %p220
        %p798 = pneg %p244
        %p799 = pneg %p241
        %p800 = pneg %p265
        %p801 = pneg %p262
        %p802 = pneg %p286
        %p803 = pneg %p283
        %p804 = pneg %p307
        %p805 = pneg %p304
        %p806 = pneg %p328
        %p807 = pneg %p325
        %p808 = pneg %p349
        %p809 = pneg %p346
        %p810 = pneg %p370
        %p811 = pneg %p367
        %p812 = pneg %p391
        %p813 = pneg %p388
        %p814 = pneg %p412
        %p815 = pneg %p409
        %p816 = pneg %p433
        %p817 = pneg %p430
        %p818 = pneg %p454
        %p819 = pneg %p451
        %p820 = pneg %p475
        %p821 = pneg %p472
        %p822 = pneg %p496
        %p823 = pneg %p493
        %p824 = pneg %p517
        %p825 = pneg %p514
        %p826 = pneg %p538
        %p827 = pneg %p535
        %p828 = pneg %p566
        %p829 = pneg %p563
        %s830 = sand.u32 %s553, 1
        %s831 = scalar_lea.sflag [#allocation7], %s830
        %s832 = sand.u32 %s553, 1
        %s833 = smul.addr %s832, 8
        %s834 = scalar_lea.vmem [#allocation16], %s833
        %v835 = vld [vmem:[%s4] sm:$0xff]
        %v836 = vld [vmem:[%s4 + $0x8] sm:$0xff]
        %v837 = vld [vmem:[%s4 + $0x10] sm:$0xff]
        %v838 = vld [vmem:[%s4 + $0x18] sm:$0xff]
        %v839 = vld [vmem:[%s5] sm:$0xff]
        %v840 = vld [vmem:[%s5 + $0x8] sm:$0xff]
        %v841 = vld [vmem:[%s5 + $0x10] sm:$0xff]
        %v842 = vld [vmem:[%s5 + $0x18] sm:$0xff]
        %v843 = vld [vmem:[%s6] sm:$0xff]
        %v844 = vld [vmem:[%s6 + $0x8] sm:$0xff]
        %v845 = vld [vmem:[%s6 + $0x10] sm:$0xff]
        %v846 = vld [vmem:[%s6 + $0x18] sm:$0xff]
        %v847 = vld [vmem:[%s7] sm:$0xff]
        %v848 = vld [vmem:[%s7 + $0x8] sm:$0xff]
        %v849 = vld [vmem:[%s7 + $0x10] sm:$0xff]
        %v850 = vld [vmem:[%s7 + $0x18] sm:$0xff]
        %v851 = vld [vmem:[%s8] sm:$0x1]
        %v852 = vld [vmem:[%s9] sm:$0x1]
        %v853 = vld [vmem:[%s10] sm:$0x1]
        %v854 = vld [vmem:[%s11] sm:$0xff]
        %v855 = vld [vmem:[%s11 + $0x8] sm:$0xff]
        %v856 = vld [vmem:[%s11 + $0x10] sm:$0xff]
        %v857 = vld [vmem:[%s11 + $0x18] sm:$0xff]
        %v858 = vld [vmem:[#allocation10] sm:$0xff]
        %v859 = vld [vmem:[#allocation10 + $0x8] sm:$0xff]
        %v860 = vld [vmem:[#allocation10 + $0x10] sm:$0xff]
        %v861 = vld [vmem:[#allocation10 + $0x18] sm:$0xff]
        %v862 = vld [vmem:[#allocation11] sm:$0xff]
        %v863 = vld [vmem:[#allocation11 + $0x8] sm:$0xff]
        %v864 = vld [vmem:[#allocation11 + $0x10] sm:$0xff]
        %v865 = vld [vmem:[#allocation11 + $0x18] sm:$0xff]
        %v866 = vld [vmem:[#allocation13] sm:$0xff]
        %v867 = vld [vmem:[#allocation13 + $0x8] sm:$0xff]
        %v868 = vld [vmem:[#allocation13 + $0x10] sm:$0xff]
        %v869 = vld [vmem:[#allocation13 + $0x18] sm:$0xff]
        %v870 = vld [vmem:[%s15] sm:$0x1]
        %v871 = vld [vmem:[%s16] sm:$0x1]
        %v872 = vld [vmem:[%s17] sm:$0x1]
        %v873 = vld [vmem:[#allocation14] sm:$0xff]
        %v874 = vld [vmem:[#allocation14 + $0x8] sm:$0xff]
        %v875 = vld [vmem:[#allocation14 + $0x10] sm:$0xff]
        %v876 = vld [vmem:[#allocation14 + $0x18] sm:$0xff]
        %v877 = vld [vmem:[%s19] sm:$0x1]
        %v878 = vld [vmem:[%s20] sm:$0xff]
        %v879 = vld [vmem:[%s20 + $0x8] sm:$0xff]
        %v880 = vld [vmem:[%s20 + $0x10] sm:$0xff]
        %v881 = vld [vmem:[%s20 + $0x18] sm:$0xff]
        %v882 = vld [vmem:[%s20 + $0x20] sm:$0xff]
        %v883 = vld [vmem:[%s20 + $0x28] sm:$0xff]
        %v884 = vld [vmem:[%s20 + $0x30] sm:$0xff]
        %v885 = vld [vmem:[%s20 + $0x38] sm:$0xff]
        %v886 = vld [vmem:[%s20 + $0x40] sm:$0xff]
        %v887 = vld [vmem:[%s20 + $0x48] sm:$0xff]
        %v888 = vld [vmem:[%s20 + $0x50] sm:$0xff]
        %v889 = vld [vmem:[%s20 + $0x58] sm:$0xff]
        %v890 = vld [vmem:[%s20 + $0x60] sm:$0xff]
        %v891 = vld [vmem:[%s20 + $0x68] sm:$0xff]
        %v892 = vld [vmem:[%s20 + $0x70] sm:$0xff]
        %v893 = vld [vmem:[%s20 + $0x78] sm:$0xff]
        %v894 = vld [vmem:[%s21] sm:$0x1]
        %v895 = vld [vmem:[%s22] sm:$0x1]
        %v896 = vld [vmem:[%s23] sm:$0x1]
        %s897 = smul.u32 %s64, 8
        %s898 = sld [smem:[#allocation3 + %s63]]
        %s899 = sld [smem:[#allocation4 + %s63]]
        %v900 = vld [vmem:[%s738] sm:$0xff]
        %s901 = scalar_lea.vmem %s738, %s897 [#allocation5]
        %v902 = vld [vmem:[%s901] sm:$0xff]
        %v903 = vld [vmem:[%s748] sm:$0xff]
        %vm904 = vcmask 261120
        %v906 = vsel %vm904, %v902, 0
        %908 = vmatpush.msra.mxu0 0.0
        %909 = vmatpush.msra.mxu0 0.0
        %910 = vmatpush.msra.mxu0 0.0
        %911 = vmatpush.msra.mxu0 0.0
        %912 = vmatpush.msra.mxu0 0.0
        %913 = vmatpush.msra.mxu0 0.0
        %914 = vmatpush.msra.mxu0 0.0
        %915 = vmatpush.msra.mxu0 0.0
        %916 = vmatpush.msra.mxu0 0.0
        %917 = vmatpush.msra.mxu0 0.0
        %918 = vmatpush.msra.mxu0 0.0
        %919 = vmatpush.msra.mxu0 0.0
        %920 = vmatpush.msra.mxu0 %v838
        %921 = vmatpush.msra.mxu0 %v837
        %922 = vmatpush.msra.mxu0 %v836
        %923 = vmatpush.msra.mxu0 %v835
        %924 = vmatmul.f32.gmra.mxu0 %v906
        %v925 = vpop.f32.mrf.mxu0
        %v926 = vadd.f32 0.0, %v925
        %927 = vdwg.mxu0
        %v928 = vmul.f32 %v926, 0.25
        %v930 = vsel %vm904, %v900, 0
        %932 = vmatpush.msra.mxu0 0.0
        %933 = vmatpush.msra.mxu0 0.0
        %934 = vmatpush.msra.mxu0 0.0
        %935 = vmatpush.msra.mxu0 0.0
        %936 = vmatpush.msra.mxu0 0.0
        %937 = vmatpush.msra.mxu0 0.0
        %938 = vmatpush.msra.mxu0 0.0
        %939 = vmatpush.msra.mxu0 0.0
        %940 = vmatpush.msra.mxu0 0.0
        %941 = vmatpush.msra.mxu0 0.0
        %942 = vmatpush.msra.mxu0 0.0
        %943 = vmatpush.msra.mxu0 0.0
        %944 = vmatpush.msra.mxu0 %v842
        %945 = vmatpush.msra.mxu0 %v841
        %946 = vmatpush.msra.mxu0 %v840
        %947 = vmatpush.msra.mxu0 %v839
        %948 = vmatmul.f32.gmra.mxu0 %v930
        %v949 = vpop.f32.mrf.mxu0
        %v950 = vadd.f32 0.0, %v949
        %951 = vdwg.mxu0
        %952 = vmatpush.msra.mxu0 0.0
        %953 = vmatpush.msra.mxu0 0.0
        %954 = vmatpush.msra.mxu0 0.0
        %955 = vmatpush.msra.mxu0 0.0
        %956 = vmatpush.msra.mxu0 0.0
        %957 = vmatpush.msra.mxu0 0.0
        %958 = vmatpush.msra.mxu0 0.0
        %959 = vmatpush.msra.mxu0 0.0
        %960 = vmatpush.msra.mxu0 0.0
        %961 = vmatpush.msra.mxu0 0.0
        %962 = vmatpush.msra.mxu0 0.0
        %963 = vmatpush.msra.mxu0 0.0
        %964 = vmatpush.msra.mxu0 %v846
        %965 = vmatpush.msra.mxu0 %v845
        %966 = vmatpush.msra.mxu0 %v844
        %967 = vmatpush.msra.mxu0 %v843
        %968 = vmatmul.f32.gmra.mxu0 %v930
        %v969 = vpop.f32.mrf.mxu0
        %v970 = vadd.f32 0.0, %v969
        %971 = vdwg.mxu0
        %v972 = vlaneseq
        %v973 = vand.u32 %v972, 127
        %v974 = vstv %s898
        %vm975 = vcmp.lt.s32.totalorder %v973, %v974
        %v976 = vlaneseq
        %v977 = vshrl.u32 %v976, 7
        %v978 = vstv %s897
        %v979 = vadd.s32 %v977, %v978
        %vm980 = vcmp.ge.s32.totalorder %v979, %v973
        %vm981 = vmand %vm975, %vm980
        %vm982 = vcmask 130048
        %v984 = vsel %vm982, %v928, 0
        %v987 = vsel %vm982, %v950, 0
        %989 = vmatpush.xpose.msra.mxu0 0.0
        %990 = vmatpush.xpose.msra.mxu0 0.0
        %991 = vmatpush.xpose.msra.mxu0 0.0
        %992 = vmatpush.xpose.msra.mxu0 0.0
        %993 = vmatpush.xpose.msra.mxu0 0.0
        %994 = vmatpush.xpose.msra.mxu0 0.0
        %995 = vmatpush.xpose.msra.mxu0 0.0
        %996 = vmatpush.xpose.msra.mxu0 0.0
        %997 = vmatpush.xpose.msra.mxu0 0.0
        %998 = vmatpush.xpose.msra.mxu0 0.0
        %999 = vmatpush.xpose.msra.mxu0 0.0
        %1000 = vmatpush.xpose.msra.mxu0 0.0
        %1001 = vmatpush.xpose.msra.mxu0 0.0
        %1002 = vmatpush.xpose.msra.mxu0 0.0
        %1003 = vmatpush.xpose.msra.mxu0 0.0
        %1004 = vmatpush.xpose.msra.mxu0 %v987
        %1005 = vmatmul.f32.gmra.mxu0 %v984
        %v1006 = vpop.f32.mrf.mxu0
        %v1007 = vadd.f32 0.0, %v1006
        %1008 = vdwg.mxu0
        %vm1009 = vcmp.ne.f32.partialorder %v1007, 0.0
        %vm1010 = vmand %vm981, %vm1009
        %v1011 = vsel %vm1010, %v1007, -1e+20
        %vm1012 = vcmask 64512
        %v1013 = vsel %vm1012, %v1011, -inf
        %1014 = vmax.xlane.f32.xlu0 %v1013
        %v1015 = vpop.xlane.xlu0 %1014
        %v1016 = vsub.f32 %v1011, %v1015
        %v1017 = vmul.f32 %v1016, 1.442695
        %v1018 = vpow.pop %v1017
        %v1019 = vsel %vm1012, %v1018, 0.0
        %1020 = vadd.xlane.f32.xlu0 %v1019
        %v1021 = vpop.xlane.xlu0 %1020
        %v1022 = vrcp.pop %v1021
        %v1023 = vmul.f32 %v1021, %v1022
        %v1024 = vsub.f32 2.0, %v1023
        %v1025 = vmul.f32 %v1022, %v1024
        %v1026 = vmul.f32 %v1018, %v1025
        %v1028 = vsel %vm1012, %v1026, 0
        %1030 = vmatpush.msra.mxu0 0.0
        %1031 = vmatpush.msra.mxu0 0.0
        %1032 = vmatpush.msra.mxu0 0.0
        %1033 = vmatpush.msra.mxu0 0.0
        %1034 = vmatpush.msra.mxu0 0.0
        %1035 = vmatpush.msra.mxu0 0.0
        %1036 = vmatpush.msra.mxu0 0.0
        %1037 = vmatpush.msra.mxu0 0.0
        %1038 = vmatpush.msra.mxu0 0.0
        %1039 = vmatpush.msra.mxu0 0.0
        %1040 = vmatpush.msra.mxu0 0.0
        %1041 = vmatpush.msra.mxu0 0.0
        %1042 = vmatpush.msra.mxu0 0.0
        %1043 = vmatpush.msra.mxu0 0.0
        %1044 = vmatpush.msra.mxu0 0.0
        %1045 = vmatpush.msra.mxu0 %v970
        %1046 = vmatmul.f32.gmra.mxu0 %v1028
        %v1047 = vpop.f32.mrf.mxu0
        %v1048 = vadd.f32 0.0, %v1047
        %1049 = vdwg.mxu0
        %1050 = vrot.lane.b32.xlu0 %v928, 112
        %v1051 = vpop.permute.xlu0 %1050
        %1052 = vrot.lane.b32.xlu0 %v950, 112
        %v1053 = vpop.permute.xlu0 %1052
        %v1054 = vsel %vm982, %v1051, 0
        %v1056 = vsel %vm982, %v1053, 0
        %1058 = vmatpush.xpose.msra.mxu0 0.0
        %1059 = vmatpush.xpose.msra.mxu0 0.0
        %1060 = vmatpush.xpose.msra.mxu0 0.0
        %1061 = vmatpush.xpose.msra.mxu0 0.0
        %1062 = vmatpush.xpose.msra.mxu0 0.0
        %1063 = vmatpush.xpose.msra.mxu0 0.0
        %1064 = vmatpush.xpose.msra.mxu0 0.0
        %1065 = vmatpush.xpose.msra.mxu0 0.0
        %1066 = vmatpush.xpose.msra.mxu0 0.0
        %1067 = vmatpush.xpose.msra.mxu0 0.0
        %1068 = vmatpush.xpose.msra.mxu0 0.0
        %1069 = vmatpush.xpose.msra.mxu0 0.0
        %1070 = vmatpush.xpose.msra.mxu0 0.0
        %1071 = vmatpush.xpose.msra.mxu0 0.0
        %1072 = vmatpush.xpose.msra.mxu0 0.0
        %1073 = vmatpush.xpose.msra.mxu0 %v1056
        %1074 = vmatmul.f32.gmra.mxu0 %v1054
        %v1075 = vpop.f32.mrf.mxu0
        %v1076 = vadd.f32 0.0, %v1075
        %1077 = vdwg.mxu0
        %vm1078 = vcmp.ne.f32.partialorder %v1076, 0.0
        %vm1079 = vmand %vm981, %vm1078
        %v1080 = vsel %vm1079, %v1076, -1e+20
        %v1081 = vsel %vm1012, %v1080, -inf
        %1082 = vmax.xlane.f32.xlu0 %v1081
        %v1083 = vpop.xlane.xlu0 %1082
        %v1084 = vsub.f32 %v1080, %v1083
        %v1085 = vmul.f32 %v1084, 1.442695
        %v1086 = vpow.pop %v1085
        %v1087 = vsel %vm1012, %v1086, 0.0
        %1088 = vadd.xlane.f32.xlu0 %v1087
        %v1089 = vpop.xlane.xlu0 %1088
        %v1090 = vrcp.pop %v1089
        %v1091 = vmul.f32 %v1089, %v1090
        %v1092 = vsub.f32 2.0, %v1091
        %v1093 = vmul.f32 %v1090, %v1092
        %v1094 = vmul.f32 %v1086, %v1093
        %1096 = vrot.lane.b32.xlu0 %v970, 112
        %v1097 = vpop.permute.xlu0 %1096
        %v1100 = vsel %vm1012, %v1094, 0
        %1102 = vmatpush.msra.mxu0 0.0
        %1103 = vmatpush.msra.mxu0 0.0
        %1104 = vmatpush.msra.mxu0 0.0
        %1105 = vmatpush.msra.mxu0 0.0
        %1106 = vmatpush.msra.mxu0 0.0
        %1107 = vmatpush.msra.mxu0 0.0
        %1108 = vmatpush.msra.mxu0 0.0
        %1109 = vmatpush.msra.mxu0 0.0
        %1110 = vmatpush.msra.mxu0 0.0
        %1111 = vmatpush.msra.mxu0 0.0
        %1112 = vmatpush.msra.mxu0 0.0
        %1113 = vmatpush.msra.mxu0 0.0
        %1114 = vmatpush.msra.mxu0 0.0
        %1115 = vmatpush.msra.mxu0 0.0
        %1116 = vmatpush.msra.mxu0 0.0
        %1117 = vmatpush.msra.mxu0 %v1097
        %1118 = vmatmul.f32.gmra.mxu0 %v1100
        %v1119 = vpop.f32.mrf.mxu0
        %v1120 = vadd.f32 0.0, %v1119
        %1121 = vdwg.mxu0
        %1123 = vrot.lane.b32.xlu0 %v1120, 16
        %v1124 = vpop.permute.xlu0 %1123
        %v1126 = vsel %vm982, %v1048, %v1124
        %v1128 = vperm.slane %v851, 0
        %v1131 = vsel %vm904, %v1126, 0
        %1133 = vmatpush.msra.mxu0 0.0
        %1134 = vmatpush.msra.mxu0 0.0
        %1135 = vmatpush.msra.mxu0 0.0
        %1136 = vmatpush.msra.mxu0 0.0
        %1137 = vmatpush.msra.mxu0 0.0
        %1138 = vmatpush.msra.mxu0 0.0
        %1139 = vmatpush.msra.mxu0 0.0
        %1140 = vmatpush.msra.mxu0 0.0
        %1141 = vmatpush.msra.mxu0 0.0
        %1142 = vmatpush.msra.mxu0 0.0
        %1143 = vmatpush.msra.mxu0 0.0
        %1144 = vmatpush.msra.mxu0 0.0
        %1145 = vmatpush.msra.mxu0 %v850
        %1146 = vmatpush.msra.mxu0 %v849
        %1147 = vmatpush.msra.mxu0 %v848
        %1148 = vmatpush.msra.mxu0 %v847
        %1149 = vmatmul.f32.gmra.mxu0 %v1131
        %v1150 = vpop.f32.mrf.mxu0
        %v1151 = vadd.f32 %v1128, %v1150
        %1152 = vdwg.mxu0
        %v1153 = vadd.f32 %v1151, %v902
        %v1154 = vsel %vm904, %v1153, 0.0
        %1155 = vadd.xlane.f32.xlu0 %v1154
        %v1156 = vpop.xlane.xlu0 %1155
        %v1157 = vrcp.pop 32.0
        %v1158 = vmul.f32 32.0, %v1157
        %v1159 = vsub.f32 1.0, %v1158
        %v1160 = vmul.f32 %v1157, %v1159
        %v1161 = vadd.f32 %v1157, %v1160
        %vm1162 = vweird.f32 %v1157
        %v1163 = vsel %vm1162, %v1157, %v1161
        %v1164 = vmul.f32 %v1156, %v1163
        %v1165 = vsub.f32 %v1153, %v1164
        %v1166 = vmul.f32 %v1165, %v1165
        %v1167 = vsel %vm904, %v1166, 0.0
        %1168 = vadd.xlane.f32.xlu0 %v1167
        %v1169 = vpop.xlane.xlu0 %1168
        %v1170 = vmul.f32 %v1169, %v1163
        %v1171 = vadd.f32 %v1170, 1e-06
        %v1172 = vrsqrt.pop %v1171
        %v1173 = vmul.f32 %v1172, %v1171
        %v1174 = vmul.f32 %v1173, %v1172
        %v1175 = vmul.f32 0.5, %v1174
        %v1176 = vsub.f32 1.5, %v1175
        %v1177 = vmul.f32 %v1172, %v1176
        %vm1178 = vweird.f32 %v1171
        %vm1179 = vweird.f32 %v1172
        %vm1180 = vmor %vm1178, %vm1179
        %v1181 = vsel %vm1180, %v1172, %v1177
        %v1182 = vmul.f32 %v1165, %v1181
        %v1184 = vperm.slane %v852, 0
        %v1186 = vmul.f32 %v1182, %v1184
        %v1188 = vperm.slane %v853, 0
        %v1190 = vadd.f32 %v1186, %v1188
        %v1192 = vsel %vm904, %v1190, 0
        %1194 = vmatpush.msra.mxu0 0.0
        %1195 = vmatpush.msra.mxu0 0.0
        %1196 = vmatpush.msra.mxu0 0.0
        %1197 = vmatpush.msra.mxu0 0.0
        %1198 = vmatpush.msra.mxu0 0.0
        %1199 = vmatpush.msra.mxu0 0.0
        %1200 = vmatpush.msra.mxu0 0.0
        %1201 = vmatpush.msra.mxu0 0.0
        %1202 = vmatpush.msra.mxu0 0.0
        %1203 = vmatpush.msra.mxu0 0.0
        %1204 = vmatpush.msra.mxu0 0.0
        %1205 = vmatpush.msra.mxu0 0.0
        %1206 = vmatpush.msra.mxu0 %v857
        %1207 = vmatpush.msra.mxu0 %v856
        %1208 = vmatpush.msra.mxu0 %v855
        %1209 = vmatpush.msra.mxu0 %v854
        %1210 = vmatmul.f32.gmra.mxu0 %v1192
        %v1211 = vpop.f32.mrf.mxu0
        %v1212 = vadd.f32 0.0, %v1211
        %1213 = vdwg.mxu0
        %v1214 = vmul.f32 %v1212, 0.25
        %v1216 = vsel %vm904, %v903, 0
        %1218 = vmatpush.msra.mxu0 0.0
        %1219 = vmatpush.msra.mxu0 0.0
        %1220 = vmatpush.msra.mxu0 0.0
        %1221 = vmatpush.msra.mxu0 0.0
        %1222 = vmatpush.msra.mxu0 0.0
        %1223 = vmatpush.msra.mxu0 0.0
        %1224 = vmatpush.msra.mxu0 0.0
        %1225 = vmatpush.msra.mxu0 0.0
        %1226 = vmatpush.msra.mxu0 0.0
        %1227 = vmatpush.msra.mxu0 0.0
        %1228 = vmatpush.msra.mxu0 0.0
        %1229 = vmatpush.msra.mxu0 0.0
        %1230 = vmatpush.msra.mxu0 %v861
        %1231 = vmatpush.msra.mxu0 %v860
        %1232 = vmatpush.msra.mxu0 %v859
        %1233 = vmatpush.msra.mxu0 %v858
        %1234 = vmatmul.f32.gmra.mxu0 %v1216
        %v1235 = vpop.f32.mrf.mxu0
        %v1236 = vadd.f32 0.0, %v1235
        %1237 = vdwg.mxu0
        %1238 = vmatpush.msra.mxu0 0.0
        %1239 = vmatpush.msra.mxu0 0.0
        %1240 = vmatpush.msra.mxu0 0.0
        %1241 = vmatpush.msra.mxu0 0.0
        %1242 = vmatpush.msra.mxu0 0.0
        %1243 = vmatpush.msra.mxu0 0.0
        %1244 = vmatpush.msra.mxu0 0.0
        %1245 = vmatpush.msra.mxu0 0.0
        %1246 = vmatpush.msra.mxu0 0.0
        %1247 = vmatpush.msra.mxu0 0.0
        %1248 = vmatpush.msra.mxu0 0.0
        %1249 = vmatpush.msra.mxu0 0.0
        %1250 = vmatpush.msra.mxu0 %v865
        %1251 = vmatpush.msra.mxu0 %v864
        %1252 = vmatpush.msra.mxu0 %v863
        %1253 = vmatpush.msra.mxu0 %v862
        %1254 = vmatmul.f32.gmra.mxu0 %v1216
        %v1255 = vpop.f32.mrf.mxu0
        %v1256 = vadd.f32 0.0, %v1255
        %1257 = vdwg.mxu0
        %v1258 = vstv %s899
        %vm1259 = vcmp.lt.s32.totalorder %v973, %v1258
        %v1261 = vsel %vm982, %v1214, 0
        %v1264 = vsel %vm982, %v1236, 0
        %1266 = vmatpush.xpose.msra.mxu0 0.0
        %1267 = vmatpush.xpose.msra.mxu0 0.0
        %1268 = vmatpush.xpose.msra.mxu0 0.0
        %1269 = vmatpush.xpose.msra.mxu0 0.0
        %1270 = vmatpush.xpose.msra.mxu0 0.0
        %1271 = vmatpush.xpose.msra.mxu0 0.0
        %1272 = vmatpush.xpose.msra.mxu0 0.0
        %1273 = vmatpush.xpose.msra.mxu0 0.0
        %1274 = vmatpush.xpose.msra.mxu0 0.0
        %1275 = vmatpush.xpose.msra.mxu0 0.0
        %1276 = vmatpush.xpose.msra.mxu0 0.0
        %1277 = vmatpush.xpose.msra.mxu0 0.0
        %1278 = vmatpush.xpose.msra.mxu0 0.0
        %1279 = vmatpush.xpose.msra.mxu0 0.0
        %1280 = vmatpush.xpose.msra.mxu0 0.0
        %1281 = vmatpush.xpose.msra.mxu0 %v1264
        %1282 = vmatmul.f32.gmra.mxu0 %v1261
        %v1283 = vpop.f32.mrf.mxu0
        %v1284 = vadd.f32 0.0, %v1283
        %1285 = vdwg.mxu0
        %v1286 = vsel %vm1259, %v1284, -1e+20
        %v1287 = vsel %vm1012, %v1286, -inf
        %1288 = vmax.xlane.f32.xlu0 %v1287
        %v1289 = vpop.xlane.xlu0 %1288
        %v1290 = vsub.f32 %v1286, %v1289
        %v1291 = vmul.f32 %v1290, 1.442695
        %v1292 = vpow.pop %v1291
        %v1293 = vsel %vm1012, %v1292, 0.0
        %1294 = vadd.xlane.f32.xlu0 %v1293
        %v1295 = vpop.xlane.xlu0 %1294
        %v1296 = vrcp.pop %v1295
        %v1297 = vmul.f32 %v1295, %v1296
        %v1298 = vsub.f32 2.0, %v1297
        %v1299 = vmul.f32 %v1296, %v1298
        %v1300 = vmul.f32 %v1292, %v1299
        %v1302 = vsel %vm1012, %v1300, 0
        %1304 = vmatpush.msra.mxu0 0.0
        %1305 = vmatpush.msra.mxu0 0.0
        %1306 = vmatpush.msra.mxu0 0.0
        %1307 = vmatpush.msra.mxu0 0.0
        %1308 = vmatpush.msra.mxu0 0.0
        %1309 = vmatpush.msra.mxu0 0.0
        %1310 = vmatpush.msra.mxu0 0.0
        %1311 = vmatpush.msra.mxu0 0.0
        %1312 = vmatpush.msra.mxu0 0.0
        %1313 = vmatpush.msra.mxu0 0.0
        %1314 = vmatpush.msra.mxu0 0.0
        %1315 = vmatpush.msra.mxu0 0.0
        %1316 = vmatpush.msra.mxu0 0.0
        %1317 = vmatpush.msra.mxu0 0.0
        %1318 = vmatpush.msra.mxu0 0.0
        %1319 = vmatpush.msra.mxu0 %v1256
        %1320 = vmatmul.f32.gmra.mxu0 %v1302
        %v1321 = vpop.f32.mrf.mxu0
        %v1322 = vadd.f32 0.0, %v1321
        %1323 = vdwg.mxu0
        %1324 = vrot.lane.b32.xlu0 %v1214, 112
        %v1325 = vpop.permute.xlu0 %1324
        %1326 = vrot.lane.b32.xlu0 %v1236, 112
        %v1327 = vpop.permute.xlu0 %1326
        %v1328 = vsel %vm982, %v1325, 0
        %v1330 = vsel %vm982, %v1327, 0
        %1332 = vmatpush.xpose.msra.mxu0 0.0
        %1333 = vmatpush.xpose.msra.mxu0 0.0
        %1334 = vmatpush.xpose.msra.mxu0 0.0
        %1335 = vmatpush.xpose.msra.mxu0 0.0
        %1336 = vmatpush.xpose.msra.mxu0 0.0
        %1337 = vmatpush.xpose.msra.mxu0 0.0
        %1338 = vmatpush.xpose.msra.mxu0 0.0
        %1339 = vmatpush.xpose.msra.mxu0 0.0
        %1340 = vmatpush.xpose.msra.mxu0 0.0
        %1341 = vmatpush.xpose.msra.mxu0 0.0
        %1342 = vmatpush.xpose.msra.mxu0 0.0
        %1343 = vmatpush.xpose.msra.mxu0 0.0
        %1344 = vmatpush.xpose.msra.mxu0 0.0
        %1345 = vmatpush.xpose.msra.mxu0 0.0
        %1346 = vmatpush.xpose.msra.mxu0 0.0
        %1347 = vmatpush.xpose.msra.mxu0 %v1330
        %1348 = vmatmul.f32.gmra.mxu0 %v1328
        %v1349 = vpop.f32.mrf.mxu0
        %v1350 = vadd.f32 0.0, %v1349
        %1351 = vdwg.mxu0
        %v1352 = vsel %vm1259, %v1350, -1e+20
        %v1353 = vsel %vm1012, %v1352, -inf
        %1354 = vmax.xlane.f32.xlu0 %v1353
        %v1355 = vpop.xlane.xlu0 %1354
        %v1356 = vsub.f32 %v1352, %v1355
        %v1357 = vmul.f32 %v1356, 1.442695
        %v1358 = vpow.pop %v1357
        %v1359 = vsel %vm1012, %v1358, 0.0
        %1360 = vadd.xlane.f32.xlu0 %v1359
        %v1361 = vpop.xlane.xlu0 %1360
        %v1362 = vrcp.pop %v1361
        %v1363 = vmul.f32 %v1361, %v1362
        %v1364 = vsub.f32 2.0, %v1363
        %v1365 = vmul.f32 %v1362, %v1364
        %v1366 = vmul.f32 %v1358, %v1365
        %1368 = vrot.lane.b32.xlu0 %v1256, 112
        %v1369 = vpop.permute.xlu0 %1368
        %v1372 = vsel %vm1012, %v1366, 0
        %1374 = vmatpush.msra.mxu0 0.0
        %1375 = vmatpush.msra.mxu0 0.0
        %1376 = vmatpush.msra.mxu0 0.0
        %1377 = vmatpush.msra.mxu0 0.0
        %1378 = vmatpush.msra.mxu0 0.0
        %1379 = vmatpush.msra.mxu0 0.0
        %1380 = vmatpush.msra.mxu0 0.0
        %1381 = vmatpush.msra.mxu0 0.0
        %1382 = vmatpush.msra.mxu0 0.0
        %1383 = vmatpush.msra.mxu0 0.0
        %1384 = vmatpush.msra.mxu0 0.0
        %1385 = vmatpush.msra.mxu0 0.0
        %1386 = vmatpush.msra.mxu0 0.0
        %1387 = vmatpush.msra.mxu0 0.0
        %1388 = vmatpush.msra.mxu0 0.0
        %1389 = vmatpush.msra.mxu0 %v1369
        %1390 = vmatmul.f32.gmra.mxu0 %v1372
        %v1391 = vpop.f32.mrf.mxu0
        %v1392 = vadd.f32 0.0, %v1391
        %1393 = vdwg.mxu0
        %1395 = vrot.lane.b32.xlu0 %v1392, 16
        %v1396 = vpop.permute.xlu0 %1395
        %v1398 = vsel %vm982, %v1322, %v1396
        %v1400 = vperm.slane %v870, 0
        %v1403 = vsel %vm904, %v1398, 0
        %1405 = vmatpush.msra.mxu0 0.0
        %1406 = vmatpush.msra.mxu0 0.0
        %1407 = vmatpush.msra.mxu0 0.0
        %1408 = vmatpush.msra.mxu0 0.0
        %1409 = vmatpush.msra.mxu0 0.0
        %1410 = vmatpush.msra.mxu0 0.0
        %1411 = vmatpush.msra.mxu0 0.0
        %1412 = vmatpush.msra.mxu0 0.0
        %1413 = vmatpush.msra.mxu0 0.0
        %1414 = vmatpush.msra.mxu0 0.0
        %1415 = vmatpush.msra.mxu0 0.0
        %1416 = vmatpush.msra.mxu0 0.0
        %1417 = vmatpush.msra.mxu0 %v869
        %1418 = vmatpush.msra.mxu0 %v868
        %1419 = vmatpush.msra.mxu0 %v867
        %1420 = vmatpush.msra.mxu0 %v866
        %1421 = vmatmul.f32.gmra.mxu0 %v1403
        %v1422 = vpop.f32.mrf.mxu0
        %v1423 = vadd.f32 %v1400, %v1422
        %1424 = vdwg.mxu0
        %v1425 = vadd.f32 %v1423, %v1190
        %v1426 = vsel %vm904, %v1425, 0.0
        %1427 = vadd.xlane.f32.xlu0 %v1426
        %v1428 = vpop.xlane.xlu0 %1427
        %v1429 = vmul.f32 %v1428, %v1163
        %v1430 = vsub.f32 %v1425, %v1429
        %v1431 = vmul.f32 %v1430, %v1430
        %v1432 = vsel %vm904, %v1431, 0.0
        %1433 = vadd.xlane.f32.xlu0 %v1432
        %v1434 = vpop.xlane.xlu0 %1433
        %v1435 = vmul.f32 %v1434, %v1163
        %v1436 = vadd.f32 %v1435, 1e-06
        %v1437 = vrsqrt.pop %v1436
        %v1438 = vmul.f32 %v1437, %v1436
        %v1439 = vmul.f32 %v1438, %v1437
        %v1440 = vmul.f32 0.5, %v1439
        %v1441 = vsub.f32 1.5, %v1440
        %v1442 = vmul.f32 %v1437, %v1441
        %vm1443 = vweird.f32 %v1436
        %vm1444 = vweird.f32 %v1437
        %vm1445 = vmor %vm1443, %vm1444
        %v1446 = vsel %vm1445, %v1437, %v1442
        %v1447 = vmul.f32 %v1430, %v1446
        %v1449 = vperm.slane %v871, 0
        %v1451 = vmul.f32 %v1447, %v1449
        %v1453 = vperm.slane %v872, 0
        %v1455 = vadd.f32 %v1451, %v1453
        %v1457 = vperm.slane %v877, 0
        %v1460 = vsel %vm904, %v1455, 0
        %1462 = vmatpush.msra.mxu0 0.0
        %1463 = vmatpush.msra.mxu0 0.0
        %1464 = vmatpush.msra.mxu0 0.0
        %1465 = vmatpush.msra.mxu0 0.0
        %1466 = vmatpush.msra.mxu0 0.0
        %1467 = vmatpush.msra.mxu0 0.0
        %1468 = vmatpush.msra.mxu0 0.0
        %1469 = vmatpush.msra.mxu0 0.0
        %1470 = vmatpush.msra.mxu0 0.0
        %1471 = vmatpush.msra.mxu0 0.0
        %1472 = vmatpush.msra.mxu0 0.0
        %1473 = vmatpush.msra.mxu0 0.0
        %1474 = vmatpush.msra.mxu0 %v876
        %1475 = vmatpush.msra.mxu0 %v875
        %1476 = vmatpush.msra.mxu0 %v874
        %1477 = vmatpush.msra.mxu0 %v873
        %1478 = vmatmul.f32.gmra.mxu0 %v1460
        %v1479 = vpop.f32.mrf.mxu0
        %v1480 = vadd.f32 %v1457, %v1479
        %1481 = vdwg.mxu0
        %v1482 = vmax.f32 %v1480, 0.0
        %v1484 = vperm.slane %v894, 0
        %1486 = vmatpush.msra.mxu0 %v893
        %1487 = vmatpush.msra.mxu0 %v892
        %1488 = vmatpush.msra.mxu0 %v891
        %1489 = vmatpush.msra.mxu0 %v890
        %1490 = vmatpush.msra.mxu0 %v889
        %1491 = vmatpush.msra.mxu0 %v888
        %1492 = vmatpush.msra.mxu0 %v887
        %1493 = vmatpush.msra.mxu0 %v886
        %1494 = vmatpush.msra.mxu0 %v885
        %1495 = vmatpush.msra.mxu0 %v884
        %1496 = vmatpush.msra.mxu0 %v883
        %1497 = vmatpush.msra.mxu0 %v882
        %1498 = vmatpush.msra.mxu0 %v881
        %1499 = vmatpush.msra.mxu0 %v880
        %1500 = vmatpush.msra.mxu0 %v879
        %1501 = vmatpush.msra.mxu0 %v878
        %1502 = vmatmul.f32.gmra.mxu0 %v1482
        %v1503 = vpop.f32.mrf.mxu0
        %v1504 = vadd.f32 %v1484, %v1503
        %1505 = vdwg.mxu0
        %v1506 = vadd.f32 %v1504, %v1455
        %v1507 = vsel %vm904, %v1506, 0.0
        %1508 = vadd.xlane.f32.xlu0 %v1507
        %v1509 = vpop.xlane.xlu0 %1508
        %v1510 = vmul.f32 %v1509, %v1163
        %v1511 = vsub.f32 %v1506, %v1510
        %v1512 = vmul.f32 %v1511, %v1511
        %v1513 = vsel %vm904, %v1512, 0.0
        %1514 = vadd.xlane.f32.xlu0 %v1513
        %v1515 = vpop.xlane.xlu0 %1514
        %v1516 = vmul.f32 %v1515, %v1163
        %v1517 = vadd.f32 %v1516, 1e-06
        %v1518 = vrsqrt.pop %v1517
        %v1519 = vmul.f32 %v1518, %v1517
        %v1520 = vmul.f32 %v1519, %v1518
        %v1521 = vmul.f32 0.5, %v1520
        %v1522 = vsub.f32 1.5, %v1521
        %v1523 = vmul.f32 %v1518, %v1522
        %vm1524 = vweird.f32 %v1517
        %vm1525 = vweird.f32 %v1518
        %vm1526 = vmor %vm1524, %vm1525
        %v1527 = vsel %vm1526, %v1518, %v1523
        %v1528 = vmul.f32 %v1511, %v1527
        %v1530 = vperm.slane %v895, 0
        %v1532 = vmul.f32 %v1528, %v1530
        %v1534 = vperm.slane %v896, 0
        %v1536 = vadd.f32 %v1532, %v1534
        %1537 = vst.msk [vmem:[%s834] sm:$0xff] %vm904, %v1536
        %s1538 = sand.u32 %s553, 1
        %s1539 = scalar_lea.sflag [#allocation7], %s1538
        %s1540 = sand.u32 %s553, 1
        %s1541 = smul.addr %s1540, 8
        %s1542 = scalar_lea.vmem [#allocation16], %s1541
        // Predicated region
        $region133: #{tpu_custom_call.1} parent=107 // pred_check
          %p1543 = pneg %p563
        $region134: #{tpu_custom_call.1} parent=107 // pred_check_branch
          %1545 = sbr.rel (%p1543) target = $region136
        $region135: #{tpu_custom_call.1} parent=107 // pred_region
          %1547 = vsyncadd %s1539, 0
          %s1548 = sadd.s32 %s64, %s63
          %s1549 = smul.addr %s1548, 8
          %s1550 = scalar_lea.hbm %s24, %s1549
          %s1552 = sshll.u32 %s1542, 4
          %s1553 = int_to_ptr.vmem [resolvable:$true] %s1552
          %s1554 = sshll.u32 %s1550, 4
          %s1555 = int_to_ptr.hbm [resolvable:$true] %s1554
          %1557 = dma.vmem_to_hbm [thread:$0]  %s1553, 128, %s1555, %s1539
        $region136: #{tpu_custom_call.1} parent=107 // pred_fallthru
          _
      $region108: #{tpu_custom_call.1} parent=5 // pred_fallthru
        _
      %p1558 = scmp.le.s32.totalorder 2, %s54
      // Predicated region
      $region137: #{tpu_custom_call.1} parent=5 // pred_check
        %p1559 = pneg %p1558
      $region138: #{tpu_custom_call.1} parent=5 // pred_check_branch
        %1561 = sbr.rel (%p1559) target = $region140
      $region139: #{tpu_custom_call.1} parent=5 // pred_region
        %s1562 = ssub.s32 %s54, 2
        // Predicated region
        $region141: #{tpu_custom_call.1} parent=139 // pred_check
          %p1563 = pneg %p569
        $region142: #{tpu_custom_call.1} parent=139 // pred_check_branch
          %1565 = sbr.rel (%p1563) target = $region144
        $region143: #{tpu_custom_call.1} parent=139 // pred_region
          %s1566 = sand.u32 %s554, 1
          %s1567 = scalar_lea.sflag [#allocation7], %s1566
          %s1568 = sand.u32 %s554, 1
          %s1569 = smul.addr %s1568, 8
          %s1570 = scalar_lea.vmem [#allocation16], %s1569
          %1572 = dma.done %s1567, 128
        $region144: #{tpu_custom_call.1} parent=139 // pred_fallthru
          _
      $region140: #{tpu_custom_call.1} parent=5 // pred_fallthru
        _
    $region6: #{tpu_custom_call.1} parent=1 // loop_footer
      %s58 = sadd.s32 1, %s54
    $region7: #{tpu_custom_call.1} parent=1 // loop_footer_branch
      %53 = sbr.rel target = $region3
    $region8: #{tpu_custom_call.1} parent=1 // loop_exit
      _
    %1573 = vsyncpa [#allocation6], 1
    %s1574 = scalar_lea.sflag [#allocation6], 1
    %1575 = vsyncpa %s1574, 1
    %1576 = vsyncpa [#allocation9], 1
    %s1577 = scalar_lea.sflag [#allocation9], 1
    %1578 = vsyncpa %s1577, 1
    %1579 = vsyncpa [#allocation12], 1
    %1580 = vsyncpa [#allocation15], 1
    %1581 = vsyncpa [#allocation7], 1
    %s1582 = scalar_lea.sflag [#allocation7], 1
    %1583 = vsyncpa %s1582, 1

</llo_original>
